<compile_context>
chip_gen: v7x
topology: tpu7x:2x2x1
jax: 0.10.0
libtpu: 0.0.40
codegen_flags: <defaults>
</compile_context>

<pallas_src>
import functools
import math

import numpy as np
import jax
import jax.numpy as jnp
from jax.experimental import pallas as pl
from jax.experimental.pallas import tpu as pltpu


NUM_COMPRESSION_LEVELS = 6  # len(CompressionLevel)


# ============================================================================
# Fused kernel
# ============================================================================
def _dense(h, m, slab_refs, bgb_ref):
    """Packed Linear [+ LayerNorm(eps=1e-5)] [+ activation] on all tokens.

    Weights live in one of a few VMEM-resident slabs; all slices are static.
    """
    din, dout, c0, b0 = m["din"], m["dout"], m["col"], m["bcol"]
    w = slab_refs[m["slab"]][0:din, c0:c0 + dout]
    b = bgb_ref[0:1, b0:b0 + dout]
    y = jnp.dot(h, w, preferred_element_type=jnp.float32) + b
    if m["ln"]:
        g = bgb_ref[1:2, b0:b0 + dout]
        be = bgb_ref[2:3, b0:b0 + dout]
        mu = jnp.mean(y, axis=-1, keepdims=True)
        var = jnp.mean(jnp.square(y - mu), axis=-1, keepdims=True)
        y = (y - mu) * jax.lax.rsqrt(var + 1e-5)
        y = y * g + be
    if m["act"] == "relu":
        y = jnp.maximum(y, 0.0)
    elif m["act"] == "sigmoid":
        y = jax.nn.sigmoid(y)
    return y


def _fused_kernel(x_ref, ctx_ref, bgb_ref, *rest, meta, dims):
    *slab_refs, out_ref = rest
    B, S, D = dims["B"], dims["S"], dims["D"]
    H = dims["H"]
    hd = D // H
    L = NUM_COMPRESSION_LEVELS

    x3 = x_ref[...]                      # (B, S, D)
    xt = x3.reshape(B * S, D)            # all tokens, one lane-dense matrix

    # ---------------- multi-head self-attention -----------------------------
    m_in, m_out = meta["attn_in"], meta["attn_out"]
    w_in = slab_refs[m_in["slab"]][0:D, m_in["col"]:m_in["col"] + 3 * D]
    b_in = bgb_ref[0:1, m_in["bcol"]:m_in["bcol"] + 3 * D]
    # ONE fused lane-dense QKV matmul for every token of every batch element.
    qkv = jnp.dot(xt, w_in, preferred_element_type=jnp.float32) + b_in  # (B*S, 3D)

    scale = 1.0 / math.sqrt(hd)
    per_batch = []
    for b in range(B):                                   # B is small & static
        rows = slice(b * S, (b + 1) * S)
        q3 = jnp.stack([qkv[rows, h * hd:(h + 1) * hd] for h in range(H)], axis=0)
        k3 = jnp.stack([qkv[rows, D + h * hd:D + (h + 1) * hd] for h in range(H)], axis=0)
        v3 = jnp.stack([qkv[rows, 2 * D + h * hd:2 * D + (h + 1) * hd] for h in range(H)], axis=0)
        s3 = jax.lax.dot_general(q3, k3, (((2,), (2,)), ((0,), (0,))),
                                 preferred_element_type=jnp.float32) * scale   # (H,S,S)
        s3 = s3 - jnp.max(s3, axis=-1, keepdims=True)
        p3 = jnp.exp(s3)
        p3 = p3 / jnp.sum(p3, axis=-1, keepdims=True)    # exact softmax (parity)
        c3 = jax.lax.dot_general(p3, v3, (((2,), (1,)), ((0,), (0,))),
                                 preferred_element_type=jnp.float32)           # (H,S,hd)
        per_batch.append(jnp.concatenate([c3[h] for h in range(H)], axis=-1))  # (S,D)
    heads_cat = jnp.concatenate(per_batch, axis=0)                             # (B*S, D)

    # ONE output-projection matmul on the concatenated heads.
    w_out = slab_refs[m_out["slab"]][0:D, m_out["col"]:m_out["col"] + D]
    b_out = bgb_ref[0:1, m_out["bcol"]:m_out["bcol"] + D]
    attn_out = jnp.dot(heads_cat, w_out, preferred_element_type=jnp.float32) + b_out

    # ---------------- importance head ---------------------------------------
    h = attn_out
    for i in range(dims["n_imp"]):
        h = _dense(h, meta[f"imp{i}"], slab_refs, bgb_ref)
    importance = h                                       # (B*S, 1)

    # ---------------- encoder / decoder (Dropout = identity in eval) --------
    h = xt
    for i in range(dims["n_enc"]):
        h = _dense(h, meta[f"enc{i}"], slab_refs, bgb_ref)
    compressed = h                                       # (B*S, cd)
    for i in range(dims["n_dec"]):
        h = _dense(h, meta[f"dec{i}"], slab_refs, bgb_ref)
    reconstructed = h                                    # (B*S, D)

    # ---------------- compression-strategy selector -------------------------
    x_means = jnp.mean(x3, axis=1)                       # (B, D)
    c_means = ctx_ref[...] if dims["use_ctx"] else x_means
    combined = jnp.concatenate([x_means, c_means], axis=-1)  # (B, 2D)
    hh = _dense(combined, meta["sel0"], slab_refs, bgb_ref)
    logits = _dense(hh, meta["sel1"], slab_refs, bgb_ref)    # (B, L)
    logits = logits - jnp.max(logits, axis=-1, keepdims=True)
    e = jnp.exp(logits)
    strategy = e / jnp.sum(e, axis=-1, keepdims=True)        # exact softmax
    strat_bc = jnp.concatenate(
        [jnp.broadcast_to(strategy[b:b + 1, :], (S, L)) for b in range(B)], axis=0)

    # ---------------- single lane-dense output slab --------------------------
    parts = [compressed, reconstructed, importance, strat_bc]
    used = sum(p.shape[-1] for p in parts)
    if used < dims["out_w"]:
        parts.append(jnp.zeros((B * S, dims["out_w"] - used), jnp.float32))
    out_ref[...] = jnp.concatenate(parts, axis=-1)


# ============================================================================
# Deterministic synthetic parameters (mirrors __init__ shapes / structure)
# ============================================================================
def _init_linear(key, din, dout):
    k1, k2 = jax.random.split(key)
    bound = 1.0 / math.sqrt(din)
    w = jax.random.uniform(k1, (din, dout), jnp.float32, -bound, bound)
    b = jax.random.uniform(k2, (dout,), jnp.float32, -bound, bound)
    return w, b


def init_params(key, input_dim=64, compression_ratio=0.1, num_layers=4):
    compressed_dim = int(input_dim * compression_ratio)
    if compressed_dim <= 0:
        compressed_dim = 1
    keys = iter(jax.random.split(key, 64))
    params = {"input_dim": input_dim, "compressed_dim": compressed_dim}

    # encoder: Linear -> LayerNorm -> ReLU -> Dropout  (x num_layers)
    enc, cur = [], input_dim
    for i in range(num_layers):
        nxt = int(cur * 0.7) if i < num_layers - 1 else compressed_dim
        if nxt <= 0:
            nxt = 1
        w, b = _init_linear(next(keys), cur, nxt)
        enc.append(dict(w=w, b=b,
                        gamma=jnp.ones((nxt,), jnp.float32),
                        beta=jnp.zeros((nxt,), jnp.float32)))
        cur = nxt
    params["encoder"] = enc

    # decoder: Linear -> (LN, ReLU, Dropout) except the final layer
    dec, cur = [], compressed_dim
    for i in range(num_layers):
        nxt = int(cur / 0.7) if i < num_layers - 1 else input_dim
        if nxt <= 0:
            nxt = input_dim
        w, b = _init_linear(next(keys), cur, nxt)
        layer = dict(w=w, b=b, has_ln=(i < num_layers - 1))
        if layer["has_ln"]:
            layer["gamma"] = jnp.ones((nxt,), jnp.float32)
            layer["beta"] = jnp.zeros((nxt,), jnp.float32)
        dec.append(layer)
        cur = nxt
    params["decoder"] = dec

    # importance_attention: MultiheadAttention(embed_dim=D, num_heads=8)
    d = input_dim
    bound = 1.0 / math.sqrt(d)
    attn = {}
    for name in ("wq", "wk", "wv", "wo"):
        attn[name] = jax.random.uniform(next(keys), (d, d), jnp.float32, -bound, bound)
    for name in ("bq", "bk", "bv", "bo"):
        attn[name] = jnp.zeros((d,), jnp.float32)
    params["attn"] = attn

    # importance_head: D -> 256 -> 64 -> 1
    ih = []
    for din, dout in ((d, 256), (256, 64), (64, 1)):
        w, b = _init_linear(next(keys), din, dout)
        ih.append(dict(w=w, b=b))
    params["importance_head"] = ih

    # compression_selector: 2D -> 256 -> len(CompressionLevel)
    sel = []
    for din, dout in ((2 * d, 256), (256, NUM_COMPRESSION_LEVELS)):
        w, b = _init_linear(next(keys), din, dout)
        sel.append(dict(w=w, b=b))
    params["selector"] = sel
    return params


# ============================================================================
# One-time parameter packing (hoisted out of the per-call forward)
# ============================================================================
def _pad128(n):
    return max(128, ((n + 127) // 128) * 128)


def _hclass(din):
    c = 64
    while c < din:
        c *= 2
    return c


def pack_params(params, num_heads=8):
    d = params["input_dim"]
    assert d % num_heads == 0
    attn = params["attn"]
    w_in = np.concatenate([np.asarray(attn["wq"]), np.asarray(attn["wk"]),
                           np.asarray(attn["wv"])], axis=1)      # (D, 3D)  q|k|v
    b_in = np.concatenate([np.asarray(attn["bq"]), np.asarray(attn["bk"]),
                           np.asarray(attn["bv"])])

    entries = []

    def add(key, w, b, gamma=None, beta=None, ln=False, act=None):
        entries.append(dict(
            key=key,
            w=np.asarray(w, np.float32),
            b=np.asarray(b, np.float32),
            gamma=None if gamma is None else np.asarray(gamma, np.float32),
            beta=None if beta is None else np.asarray(beta, np.float32),
            ln=ln, act=act))

    add("attn_in", w_in, b_in)
    add("attn_out", attn["wo"], attn["bo"])
    for i, lyr in enumerate(params["encoder"]):
        add(f"enc{i}", lyr["w"], lyr["b"], lyr["gamma"], lyr["beta"], ln=True, act="relu")
    for i, lyr in enumerate(params["decoder"]):
        if lyr["has_ln"]:
            add(f"dec{i}", lyr["w"], lyr["b"], lyr["gamma"], lyr["beta"], ln=True, act="relu")
        else:
            add(f"dec{i}", lyr["w"], lyr["b"])
    imp_acts = ("relu", "relu", "sigmoid")
    for i, lyr in enumerate(params["importance_head"]):
        add(f"imp{i}", lyr["w"], lyr["b"], act=imp_acts[i])
    add("sel0", params["selector"][0]["w"], params["selector"][0]["b"], act="relu")
    add("sel1", params["selector"][1]["w"], params["selector"][1]["b"], act=None)

    # group the weight matrices by padded row-height class -> one slab each
    classes = sorted({_hclass(e["w"].shape[0]) for e in entries})
    cidx = {c: i for i, c in enumerate(classes)}
    col = [0] * len(classes)
    bcol = 0
    meta = {}
    for e in entries:
        din, dout = e["w"].shape
        ci = cidx[_hclass(din)]
        meta[e["key"]] = dict(slab=ci, din=din, dout=dout, col=col[ci],
                              bcol=bcol, ln=e["ln"], act=e["act"])
        col[ci] += dout
        bcol += dout

    slabs = [np.zeros((classes[i], _pad128(col[i])), np.float32)
             for i in range(len(classes))]
    bgb = np.zeros((8, _pad128(bcol)), np.float32)   # row0=bias, row1=gamma, row2=beta
    bgb[1, :] = 1.0
    for e in entries:
        m = meta[e["key"]]
        din, dout = e["w"].shape
        slabs[m["slab"]][:din, m["col"]:m["col"] + dout] = e["w"]
        bgb[0, m["bcol"]:m["bcol"] + dout] = e["b"]
        if e["gamma"] is not None:
            bgb[1, m["bcol"]:m["bcol"] + dout] = e["gamma"]
            bgb[2, m["bcol"]:m["bcol"] + dout] = e["beta"]

    return dict(
        slabs=tuple(jnp.asarray(s) for s in slabs),
        bgb=jnp.asarray(bgb),
        meta=meta,
        input_dim=d,
        compressed_dim=params["compressed_dim"],
        num_heads=num_heads,
        n_enc=len(params["encoder"]),
        n_dec=len(params["decoder"]),
        n_imp=len(params["importance_head"]),
    )


# ============================================================================
# Forward pass (eval mode) — one fused pallas_call, no grid
# ============================================================================
def learned_compression_forward(packed, x, context=None):
    d = packed["input_dim"]
    cd = packed["compressed_dim"]
    H = packed["num_heads"]
    L = NUM_COMPRESSION_LEVELS

    x = jnp.asarray(x, jnp.float32)
    if x.ndim == 1:
        x = x[None, None, :]
    elif x.ndim == 2:
        x = x[:, None, :]
    B, S, D = x.shape
    if D != d or D % H != 0:
        raise ValueError("input feature dim does not match packed params")

    # ---- context handling (mirrors the PyTorch fallbacks) -------------------
    if context is None:
        use_ctx = False
        ctx_mean = jnp.zeros((B, D), jnp.float32)
    else:
        context = jnp.asarray(context, jnp.float32)
        if context.ndim == 1:
            context = context[None, :]
        context_mean = jnp.mean(context, axis=1) if context.ndim == 3 else context
        if context_mean.shape[0] != B and context_mean.shape[0] == 1:
            ctx_mean = jnp.broadcast_to(context_mean, (B, D))
            use_ctx = True
        elif context_mean.shape[0] != B:
            # batch mismatch: reference model falls back to x_mean.clone()
            ctx_mean = jnp.zeros((B, D), jnp.float32)
            use_ctx = False
        else:
            ctx_mean = context_mean
            use_ctx = True

    used = cd + D + 1 + L
    out_w = _pad128(used)
    dims = dict(B=B, S=S, D=D, H=H, use_ctx=use_ctx, out_w=out_w,
                n_enc=packed["n_enc"], n_dec=packed["n_dec"], n_imp=packed["n_imp"])

    kern = functools.partial(_fused_kernel, meta=packed["meta"], dims=dims)
    n_in = 3 + len(packed["slabs"])
    vmem = pltpu.MemorySpace.VMEM

    slab = pl.pallas_call(
        kern,
        out_shape=jax.ShapeDtypeStruct((B * S, out_w), jnp.float32),
        in_specs=[pl.BlockSpec(memory_space=vmem)] * n_in,
        out_specs=pl.BlockSpec(memory_space=vmem),
    )(x, ctx_mean, packed["bgb"], *packed["slabs"])

    compressed = slab[:, :cd].reshape(B, S, cd)
    reconstructed = slab[:, cd:cd + D].reshape(B, S, D)
    importance = slab[:, cd + D].reshape(B, S)                      # squeeze(-1)
    strategy = slab.reshape(B, S, out_w)[:, 0, cd + D + 1:cd + D + 1 + L]
    return compressed, reconstructed, importance, strategy


# ============================================================================
# Pure-JAX reference (for a structural sanity check against the kernel)
# ============================================================================
def reference_forward(params, x, context=None, num_heads=8):
    hp = jax.lax.Precision.HIGHEST
    x = jnp.asarray(x, jnp.float32)
    if x.ndim == 1:
        x = x[None, None, :]
    elif x.ndim == 2:
        x = x[:, None, :]
    B, S, D = x.shape
    hd = D // num_heads
    attn = params["attn"]

    q = jnp.matmul(x, attn["wq"], precision=hp) + attn["bq"]
    k = jnp.matmul(x, attn["wk"], precision=hp) + attn["bk"]
    v = jnp.matmul(x, attn["wv"], precision=hp) + attn["bv"]

    def split(t):
        return t.reshape(B, S, num_heads, hd).transpose(0, 2, 1, 3)

    qh, kh, vh = split(q), split(k), split(v)
    sc = jnp.einsum("bhqd,bhkd->bhqk", qh, kh, precision=hp) / math.sqrt(hd)
    p = jax.nn.softmax(sc, axis=-1)
    ctx = jnp.einsum("bhqk,bhkd->bhqd", p, vh, precision=hp)
    ctx = ctx.transpose(0, 2, 1, 3).reshape(B, S, D)
    attn_out = jnp.matmul(ctx, attn["wo"], precision=hp) + attn["bo"]

    def lin(h, layer):
        return jnp.matmul(h, layer["w"], precision=hp) + layer["b"]

    def lnorm(h, layer):
        mu = jnp.mean(h, -1, keepdims=True)
        var = jnp.mean(jnp.square(h - mu), -1, keepdims=True)
        return (h - mu) * jax.lax.rsqrt(var + 1e-5) * layer["gamma"] + layer["beta"]

    ih = params["importance_head"]
    h = jax.nn.relu(lin(attn_out, ih[0]))
    h = jax.nn.relu(lin(h, ih[1]))
    importance = jax.nn.sigmoid(lin(h, ih[2]))[..., 0]

    h = x
    for layer in params["encoder"]:
        h = jax.nn.relu(lnorm(lin(h, layer), layer))
    compressed = h
    h = compressed
    for layer in params["decoder"]:
        h = lin(h, layer)
        if layer["has_ln"]:
            h = jax.nn.relu(lnorm(h, layer))
    reconstructed = h

    x_mean = jnp.mean(x, axis=1)
    if context is None:
        combined = jnp.concatenate([x_mean, x_mean], axis=-1)
    else:
        context = jnp.asarray(context, jnp.float32)
        if context.ndim == 1:
            context = context[None, :]
        cm = jnp.mean(context, axis=1) if context.ndim == 3 else context
        if cm.shape[0] != B and cm.shape[0] == 1:
            cm = jnp.broadcast_to(cm, (B, D))
        elif cm.shape[0] != B:
            cm = x_mean
        combined = jnp.concatenate([x_mean, cm], axis=-1)
    sel = params["selector"]
    hh = jax.nn.relu(lin(combined, sel[0]))
    strategy = jax.nn.softmax(lin(hh, sel[1]), axis=-1)
    return compressed, reconstructed, importance, strategy


# ============================================================================
if __name__ == "__main__":
    key = jax.random.PRNGKey(0)
    pkey, xkey = jax.random.split(key)

    # Small shapes consistent with the module (D divisible by 8 heads).
    B, S, D = 2, 8, 64
    params = init_params(pkey, input_dim=D, compression_ratio=0.1, num_layers=4)
    packed = pack_params(params, num_heads=8)          # one-time layout prep
    x = jax.random.normal(xkey, (B, S, D), jnp.float32)

    outs = learned_compression_forward(packed, x, context=None)
    compressed, reconstructed, importance, strategy = jax.block_until_ready(outs)

    # shape / structural checks
    assert compressed.shape == (B, S, params["compressed_dim"])
    assert reconstructed.shape == (B, S, D)
    assert importance.shape == (B, S)
    assert strategy.shape == (B, NUM_COMPRESSION_LEVELS)
    for a in (compressed, reconstructed, importance, strategy):
        assert bool(jnp.all(jnp.isfinite(a)))
    assert bool(jnp.all((importance >= 0.0) & (importance <= 1.0)))
    assert bool(jnp.all(jnp.abs(jnp.sum(strategy, axis=-1) - 1.0) < 1e-4))

    # sanity check against a pure-JAX reference (loose tol: MXU f32 precision)
    ref = reference_forward(params, x, context=None, num_heads=8)
    for got, want in zip((compressed, reconstructed, importance, strategy), ref):
        assert got.shape == want.shape
        assert bool(jnp.max(jnp.abs(got - want)) < 1e-1)

    print("KERNEL_OK")
</pallas_src>

<mosaic_0001>
module attributes {stable_mosaic.version = 11 : i64} {
  func.func @_fused_kernel(%arg0: memref<2x8x64xf32, #tpu.memory_space<vmem>>, %arg1: memref<2x64xf32, #tpu.memory_space<vmem>>, %arg2: memref<8x1152xf32, #tpu.memory_space<vmem>>, %arg3: memref<64x768xf32, #tpu.memory_space<vmem>>, %arg4: memref<128x256xf32, #tpu.memory_space<vmem>>, %arg5: memref<256x128xf32, #tpu.memory_space<vmem>>, %arg6: memref<16x128xf32, #tpu.memory_space<vmem>>) attributes {dimension_semantics = [], scalar_prefetch = 0 : i64, scratch_operands = 0 : i64, tpu.core_type = #tpu.core_type<tc>} {
    %c0 = arith.constant 0 : index
    %c0_0 = arith.constant 0 : index
    %c0_1 = arith.constant 0 : index
    %0 = vector.load %arg0[%c0, %c0_0, %c0_1] : memref<2x8x64xf32, #tpu.memory_space<vmem>>, vector<2x8x64xf32>
    %1 = vector.shape_cast %0 : vector<2x8x64xf32> to vector<16x64xf32>
    %c0_2 = arith.constant 0 : index
    %c0_3 = arith.constant 0 : index
    %2 = vector.load %arg3[%c0_2, %c0_3] : memref<64x768xf32, #tpu.memory_space<vmem>>, vector<64x192xf32>
    %c0_4 = arith.constant 0 : index
    %c0_5 = arith.constant 0 : index
    %3 = vector.load %arg2[%c0_4, %c0_5] : memref<8x1152xf32, #tpu.memory_space<vmem>>, vector<1x192xf32>
    %cst = arith.constant dense<0.000000e+00> : vector<16x192xf32>
    %4 = tpu.matmul %1, %2, %cst {dimension_numbers = #tpu.dot_dimension_numbers<[1], [0], [0], [1], [0, 0, 1, 1], [], []>} : vector<16x64xf32>, vector<64x192xf32>, vector<16x192xf32> -> vector<16x192xf32>
    %5 = vector.broadcast %3 : vector<1x192xf32> to vector<16x192xf32>
    %6 = arith.addf %4, %5 : vector<16x192xf32>
    %7 = vector.extract_strided_slice %6 {offsets = [0, 0], sizes = [8, 8], strides = [1, 1]} : vector<16x192xf32> to vector<8x8xf32>
    %8 = vector.extract_strided_slice %6 {offsets = [0, 8], sizes = [8, 8], strides = [1, 1]} : vector<16x192xf32> to vector<8x8xf32>
    %9 = vector.extract_strided_slice %6 {offsets = [0, 16], sizes = [8, 8], strides = [1, 1]} : vector<16x192xf32> to vector<8x8xf32>
    %10 = vector.extract_strided_slice %6 {offsets = [0, 24], sizes = [8, 8], strides = [1, 1]} : vector<16x192xf32> to vector<8x8xf32>
    %11 = vector.extract_strided_slice %6 {offsets = [0, 32], sizes = [8, 8], strides = [1, 1]} : vector<16x192xf32> to vector<8x8xf32>
    %12 = vector.extract_strided_slice %6 {offsets = [0, 40], sizes = [8, 8], strides = [1, 1]} : vector<16x192xf32> to vector<8x8xf32>
    %13 = vector.extract_strided_slice %6 {offsets = [0, 48], sizes = [8, 8], strides = [1, 1]} : vector<16x192xf32> to vector<8x8xf32>
    %14 = vector.extract_strided_slice %6 {offsets = [0, 56], sizes = [8, 8], strides = [1, 1]} : vector<16x192xf32> to vector<8x8xf32>
    %15 = vector.shape_cast %7 : vector<8x8xf32> to vector<1x8x8xf32>
    %16 = vector.shape_cast %8 : vector<8x8xf32> to vector<1x8x8xf32>
    %17 = vector.shape_cast %9 : vector<8x8xf32> to vector<1x8x8xf32>
    %18 = vector.shape_cast %10 : vector<8x8xf32> to vector<1x8x8xf32>
    %19 = vector.shape_cast %11 : vector<8x8xf32> to vector<1x8x8xf32>
    %20 = vector.shape_cast %12 : vector<8x8xf32> to vector<1x8x8xf32>
    %21 = vector.shape_cast %13 : vector<8x8xf32> to vector<1x8x8xf32>
    %22 = vector.shape_cast %14 : vector<8x8xf32> to vector<1x8x8xf32>
    %23 = tpu.concatenate %15, %16, %17, %18, %19, %20, %21, %22 in 0 : vector<1x8x8xf32>, vector<1x8x8xf32>, vector<1x8x8xf32>, vector<1x8x8xf32>, vector<1x8x8xf32>, vector<1x8x8xf32>, vector<1x8x8xf32>, vector<1x8x8xf32> -> vector<8x8x8xf32>
    %24 = vector.extract_strided_slice %6 {offsets = [0, 64], sizes = [8, 8], strides = [1, 1]} : vector<16x192xf32> to vector<8x8xf32>
    %25 = vector.extract_strided_slice %6 {offsets = [0, 72], sizes = [8, 8], strides = [1, 1]} : vector<16x192xf32> to vector<8x8xf32>
    %26 = vector.extract_strided_slice %6 {offsets = [0, 80], sizes = [8, 8], strides = [1, 1]} : vector<16x192xf32> to vector<8x8xf32>
    %27 = vector.extract_strided_slice %6 {offsets = [0, 88], sizes = [8, 8], strides = [1, 1]} : vector<16x192xf32> to vector<8x8xf32>
    %28 = vector.extract_strided_slice %6 {offsets = [0, 96], sizes = [8, 8], strides = [1, 1]} : vector<16x192xf32> to vector<8x8xf32>
    %29 = vector.extract_strided_slice %6 {offsets = [0, 104], sizes = [8, 8], strides = [1, 1]} : vector<16x192xf32> to vector<8x8xf32>
    %30 = vector.extract_strided_slice %6 {offsets = [0, 112], sizes = [8, 8], strides = [1, 1]} : vector<16x192xf32> to vector<8x8xf32>
    %31 = vector.extract_strided_slice %6 {offsets = [0, 120], sizes = [8, 8], strides = [1, 1]} : vector<16x192xf32> to vector<8x8xf32>
    %32 = vector.shape_cast %24 : vector<8x8xf32> to vector<1x8x8xf32>
    %33 = vector.shape_cast %25 : vector<8x8xf32> to vector<1x8x8xf32>
    %34 = vector.shape_cast %26 : vector<8x8xf32> to vector<1x8x8xf32>
    %35 = vector.shape_cast %27 : vector<8x8xf32> to vector<1x8x8xf32>
    %36 = vector.shape_cast %28 : vector<8x8xf32> to vector<1x8x8xf32>
    %37 = vector.shape_cast %29 : vector<8x8xf32> to vector<1x8x8xf32>
    %38 = vector.shape_cast %30 : vector<8x8xf32> to vector<1x8x8xf32>
    %39 = vector.shape_cast %31 : vector<8x8xf32> to vector<1x8x8xf32>
    %40 = tpu.concatenate %32, %33, %34, %35, %36, %37, %38, %39 in 0 : vector<1x8x8xf32>, vector<1x8x8xf32>, vector<1x8x8xf32>, vector<1x8x8xf32>, vector<1x8x8xf32>, vector<1x8x8xf32>, vector<1x8x8xf32>, vector<1x8x8xf32> -> vector<8x8x8xf32>
    %41 = vector.extract_strided_slice %6 {offsets = [0, 128], sizes = [8, 8], strides = [1, 1]} : vector<16x192xf32> to vector<8x8xf32>
    %42 = vector.extract_strided_slice %6 {offsets = [0, 136], sizes = [8, 8], strides = [1, 1]} : vector<16x192xf32> to vector<8x8xf32>
    %43 = vector.extract_strided_slice %6 {offsets = [0, 144], sizes = [8, 8], strides = [1, 1]} : vector<16x192xf32> to vector<8x8xf32>
    %44 = vector.extract_strided_slice %6 {offsets = [0, 152], sizes = [8, 8], strides = [1, 1]} : vector<16x192xf32> to vector<8x8xf32>
    %45 = vector.extract_strided_slice %6 {offsets = [0, 160], sizes = [8, 8], strides = [1, 1]} : vector<16x192xf32> to vector<8x8xf32>
    %46 = vector.extract_strided_slice %6 {offsets = [0, 168], sizes = [8, 8], strides = [1, 1]} : vector<16x192xf32> to vector<8x8xf32>
    %47 = vector.extract_strided_slice %6 {offsets = [0, 176], sizes = [8, 8], strides = [1, 1]} : vector<16x192xf32> to vector<8x8xf32>
    %48 = vector.extract_strided_slice %6 {offsets = [0, 184], sizes = [8, 8], strides = [1, 1]} : vector<16x192xf32> to vector<8x8xf32>
    %49 = vector.shape_cast %41 : vector<8x8xf32> to vector<1x8x8xf32>
    %50 = vector.shape_cast %42 : vector<8x8xf32> to vector<1x8x8xf32>
    %51 = vector.shape_cast %43 : vector<8x8xf32> to vector<1x8x8xf32>
    %52 = vector.shape_cast %44 : vector<8x8xf32> to vector<1x8x8xf32>
    %53 = vector.shape_cast %45 : vector<8x8xf32> to vector<1x8x8xf32>
    %54 = vector.shape_cast %46 : vector<8x8xf32> to vector<1x8x8xf32>
    %55 = vector.shape_cast %47 : vector<8x8xf32> to vector<1x8x8xf32>
    %56 = vector.shape_cast %48 : vector<8x8xf32> to vector<1x8x8xf32>
    %57 = tpu.concatenate %49, %50, %51, %52, %53, %54, %55, %56 in 0 : vector<1x8x8xf32>, vector<1x8x8xf32>, vector<1x8x8xf32>, vector<1x8x8xf32>, vector<1x8x8xf32>, vector<1x8x8xf32>, vector<1x8x8xf32>, vector<1x8x8xf32> -> vector<8x8x8xf32>
    %cst_6 = arith.constant dense<0.000000e+00> : vector<8x8x8xf32>
    %58 = tpu.matmul %23, %40, %cst_6 {dimension_numbers = #tpu.dot_dimension_numbers<[2], [2], [1], [1], [0, 0, 0, 1, 1, 1], [0], [0]>} : vector<8x8x8xf32>, vector<8x8x8xf32>, vector<8x8x8xf32> -> vector<8x8x8xf32>
    %cst_7 = arith.constant 0.353553385 : f32
    %59 = vector.broadcast %cst_7 : f32 to vector<8x8x8xf32>
    %60 = arith.mulf %58, %59 : vector<8x8x8xf32>
    %cst_8 = arith.constant dense<0xFF800000> : vector<8x8xf32>
    %61 = vector.multi_reduction <maximumf>, %60, %cst_8 [2] : vector<8x8x8xf32> to vector<8x8xf32>
    %62 = vector.shape_cast %61 : vector<8x8xf32> to vector<8x8x1xf32>
    %63 = vector.broadcast %62 : vector<8x8x1xf32> to vector<8x8x8xf32>
    %64 = arith.subf %60, %63 : vector<8x8x8xf32>
    %65 = math.exp %64 : vector<8x8x8xf32>
    %cst_9 = arith.constant dense<0.000000e+00> : vector<8x8xf32>
    %66 = vector.multi_reduction <add>, %65, %cst_9 [2] : vector<8x8x8xf32> to vector<8x8xf32>
    %67 = vector.shape_cast %66 : vector<8x8xf32> to vector<8x8x1xf32>
    %68 = vector.broadcast %67 : vector<8x8x1xf32> to vector<8x8x8xf32>
    %69 = arith.divf %65, %68 : vector<8x8x8xf32>
    %cst_10 = arith.constant dense<0.000000e+00> : vector<8x8x8xf32>
    %70 = tpu.matmul %69, %57, %cst_10 {dimension_numbers = #tpu.dot_dimension_numbers<[2], [1], [1], [2], [0, 0, 0, 1, 1, 2], [0], [0]>} : vector<8x8x8xf32>, vector<8x8x8xf32>, vector<8x8x8xf32> -> vector<8x8x8xf32>
    %71 = vector.extract_strided_slice %70 {offsets = [0, 0, 0], sizes = [1, 8, 8], strides = [1, 1, 1]} : vector<8x8x8xf32> to vector<1x8x8xf32>
    %72 = vector.shape_cast %71 : vector<1x8x8xf32> to vector<8x8xf32>
    %73 = vector.extract_strided_slice %70 {offsets = [1, 0, 0], sizes = [1, 8, 8], strides = [1, 1, 1]} : vector<8x8x8xf32> to vector<1x8x8xf32>
    %74 = vector.shape_cast %73 : vector<1x8x8xf32> to vector<8x8xf32>
    %75 = vector.extract_strided_slice %70 {offsets = [2, 0, 0], sizes = [1, 8, 8], strides = [1, 1, 1]} : vector<8x8x8xf32> to vector<1x8x8xf32>
    %76 = vector.shape_cast %75 : vector<1x8x8xf32> to vector<8x8xf32>
    %77 = vector.extract_strided_slice %70 {offsets = [3, 0, 0], sizes = [1, 8, 8], strides = [1, 1, 1]} : vector<8x8x8xf32> to vector<1x8x8xf32>
    %78 = vector.shape_cast %77 : vector<1x8x8xf32> to vector<8x8xf32>
    %79 = vector.extract_strided_slice %70 {offsets = [4, 0, 0], sizes = [1, 8, 8], strides = [1, 1, 1]} : vector<8x8x8xf32> to vector<1x8x8xf32>
    %80 = vector.shape_cast %79 : vector<1x8x8xf32> to vector<8x8xf32>
    %81 = vector.extract_strided_slice %70 {offsets = [5, 0, 0], sizes = [1, 8, 8], strides = [1, 1, 1]} : vector<8x8x8xf32> to vector<1x8x8xf32>
    %82 = vector.shape_cast %81 : vector<1x8x8xf32> to vector<8x8xf32>
    %83 = vector.extract_strided_slice %70 {offsets = [6, 0, 0], sizes = [1, 8, 8], strides = [1, 1, 1]} : vector<8x8x8xf32> to vector<1x8x8xf32>
    %84 = vector.shape_cast %83 : vector<1x8x8xf32> to vector<8x8xf32>
    %85 = vector.extract_strided_slice %70 {offsets = [7, 0, 0], sizes = [1, 8, 8], strides = [1, 1, 1]} : vector<8x8x8xf32> to vector<1x8x8xf32>
    %86 = vector.shape_cast %85 : vector<1x8x8xf32> to vector<8x8xf32>
    %87 = tpu.concatenate %72, %74, %76, %78, %80, %82, %84, %86 in 1 : vector<8x8xf32>, vector<8x8xf32>, vector<8x8xf32>, vector<8x8xf32>, vector<8x8xf32>, vector<8x8xf32>, vector<8x8xf32>, vector<8x8xf32> -> vector<8x64xf32>
    %88 = vector.extract_strided_slice %6 {offsets = [8, 0], sizes = [8, 8], strides = [1, 1]} : vector<16x192xf32> to vector<8x8xf32>
    %89 = vector.extract_strided_slice %6 {offsets = [8, 8], sizes = [8, 8], strides = [1, 1]} : vector<16x192xf32> to vector<8x8xf32>
    %90 = vector.extract_strided_slice %6 {offsets = [8, 16], sizes = [8, 8], strides = [1, 1]} : vector<16x192xf32> to vector<8x8xf32>
    %91 = vector.extract_strided_slice %6 {offsets = [8, 24], sizes = [8, 8], strides = [1, 1]} : vector<16x192xf32> to vector<8x8xf32>
    %92 = vector.extract_strided_slice %6 {offsets = [8, 32], sizes = [8, 8], strides = [1, 1]} : vector<16x192xf32> to vector<8x8xf32>
    %93 = vector.extract_strided_slice %6 {offsets = [8, 40], sizes = [8, 8], strides = [1, 1]} : vector<16x192xf32> to vector<8x8xf32>
    %94 = vector.extract_strided_slice %6 {offsets = [8, 48], sizes = [8, 8], strides = [1, 1]} : vector<16x192xf32> to vector<8x8xf32>
    %95 = vector.extract_strided_slice %6 {offsets = [8, 56], sizes = [8, 8], strides = [1, 1]} : vector<16x192xf32> to vector<8x8xf32>
    %96 = vector.shape_cast %88 : vector<8x8xf32> to vector<1x8x8xf32>
    %97 = vector.shape_cast %89 : vector<8x8xf32> to vector<1x8x8xf32>
    %98 = vector.shape_cast %90 : vector<8x8xf32> to vector<1x8x8xf32>
    %99 = vector.shape_cast %91 : vector<8x8xf32> to vector<1x8x8xf32>
    %100 = vector.shape_cast %92 : vector<8x8xf32> to vector<1x8x8xf32>
    %101 = vector.shape_cast %93 : vector<8x8xf32> to vector<1x8x8xf32>
    %102 = vector.shape_cast %94 : vector<8x8xf32> to vector<1x8x8xf32>
    %103 = vector.shape_cast %95 : vector<8x8xf32> to vector<1x8x8xf32>
    %104 = tpu.concatenate %96, %97, %98, %99, %100, %101, %102, %103 in 0 : vector<1x8x8xf32>, vector<1x8x8xf32>, vector<1x8x8xf32>, vector<1x8x8xf32>, vector<1x8x8xf32>, vector<1x8x8xf32>, vector<1x8x8xf32>, vector<1x8x8xf32> -> vector<8x8x8xf32>
    %105 = vector.extract_strided_slice %6 {offsets = [8, 64], sizes = [8, 8], strides = [1, 1]} : vector<16x192xf32> to vector<8x8xf32>
    %106 = vector.extract_strided_slice %6 {offsets = [8, 72], sizes = [8, 8], strides = [1, 1]} : vector<16x192xf32> to vector<8x8xf32>
    %107 = vector.extract_strided_slice %6 {offsets = [8, 80], sizes = [8, 8], strides = [1, 1]} : vector<16x192xf32> to vector<8x8xf32>
    %108 = vector.extract_strided_slice %6 {offsets = [8, 88], sizes = [8, 8], strides = [1, 1]} : vector<16x192xf32> to vector<8x8xf32>
    %109 = vector.extract_strided_slice %6 {offsets = [8, 96], sizes = [8, 8], strides = [1, 1]} : vector<16x192xf32> to vector<8x8xf32>
    %110 = vector.extract_strided_slice %6 {offsets = [8, 104], sizes = [8, 8], strides = [1, 1]} : vector<16x192xf32> to vector<8x8xf32>
    %111 = vector.extract_strided_slice %6 {offsets = [8, 112], sizes = [8, 8], strides = [1, 1]} : vector<16x192xf32> to vector<8x8xf32>
    %112 = vector.extract_strided_slice %6 {offsets = [8, 120], sizes = [8, 8], strides = [1, 1]} : vector<16x192xf32> to vector<8x8xf32>
    %113 = vector.shape_cast %105 : vector<8x8xf32> to vector<1x8x8xf32>
    %114 = vector.shape_cast %106 : vector<8x8xf32> to vector<1x8x8xf32>
    %115 = vector.shape_cast %107 : vector<8x8xf32> to vector<1x8x8xf32>
    %116 = vector.shape_cast %108 : vector<8x8xf32> to vector<1x8x8xf32>
    %117 = vector.shape_cast %109 : vector<8x8xf32> to vector<1x8x8xf32>
    %118 = vector.shape_cast %110 : vector<8x8xf32> to vector<1x8x8xf32>
    %119 = vector.shape_cast %111 : vector<8x8xf32> to vector<1x8x8xf32>
    %120 = vector.shape_cast %112 : vector<8x8xf32> to vector<1x8x8xf32>
    %121 = tpu.concatenate %113, %114, %115, %116, %117, %118, %119, %120 in 0 : vector<1x8x8xf32>, vector<1x8x8xf32>, vector<1x8x8xf32>, vector<1x8x8xf32>, vector<1x8x8xf32>, vector<1x8x8xf32>, vector<1x8x8xf32>, vector<1x8x8xf32> -> vector<8x8x8xf32>
    %122 = vector.extract_strided_slice %6 {offsets = [8, 128], sizes = [8, 8], strides = [1, 1]} : vector<16x192xf32> to vector<8x8xf32>
    %123 = vector.extract_strided_slice %6 {offsets = [8, 136], sizes = [8, 8], strides = [1, 1]} : vector<16x192xf32> to vector<8x8xf32>
    %124 = vector.extract_strided_slice %6 {offsets = [8, 144], sizes = [8, 8], strides = [1, 1]} : vector<16x192xf32> to vector<8x8xf32>
    %125 = vector.extract_strided_slice %6 {offsets = [8, 152], sizes = [8, 8], strides = [1, 1]} : vector<16x192xf32> to vector<8x8xf32>
    %126 = vector.extract_strided_slice %6 {offsets = [8, 160], sizes = [8, 8], strides = [1, 1]} : vector<16x192xf32> to vector<8x8xf32>
    %127 = vector.extract_strided_slice %6 {offsets = [8, 168], sizes = [8, 8], strides = [1, 1]} : vector<16x192xf32> to vector<8x8xf32>
    %128 = vector.extract_strided_slice %6 {offsets = [8, 176], sizes = [8, 8], strides = [1, 1]} : vector<16x192xf32> to vector<8x8xf32>
    %129 = vector.extract_strided_slice %6 {offsets = [8, 184], sizes = [8, 8], strides = [1, 1]} : vector<16x192xf32> to vector<8x8xf32>
    %130 = vector.shape_cast %122 : vector<8x8xf32> to vector<1x8x8xf32>
    %131 = vector.shape_cast %123 : vector<8x8xf32> to vector<1x8x8xf32>
    %132 = vector.shape_cast %124 : vector<8x8xf32> to vector<1x8x8xf32>
    %133 = vector.shape_cast %125 : vector<8x8xf32> to vector<1x8x8xf32>
    %134 = vector.shape_cast %126 : vector<8x8xf32> to vector<1x8x8xf32>
    %135 = vector.shape_cast %127 : vector<8x8xf32> to vector<1x8x8xf32>
    %136 = vector.shape_cast %128 : vector<8x8xf32> to vector<1x8x8xf32>
    %137 = vector.shape_cast %129 : vector<8x8xf32> to vector<1x8x8xf32>
    %138 = tpu.concatenate %130, %131, %132, %133, %134, %135, %136, %137 in 0 : vector<1x8x8xf32>, vector<1x8x8xf32>, vector<1x8x8xf32>, vector<1x8x8xf32>, vector<1x8x8xf32>, vector<1x8x8xf32>, vector<1x8x8xf32>, vector<1x8x8xf32> -> vector<8x8x8xf32>
    %cst_11 = arith.constant dense<0.000000e+00> : vector<8x8x8xf32>
    %139 = tpu.matmul %104, %121, %cst_11 {dimension_numbers = #tpu.dot_dimension_numbers<[2], [2], [1], [1], [0, 0, 0, 1, 1, 1], [0], [0]>} : vector<8x8x8xf32>, vector<8x8x8xf32>, vector<8x8x8xf32> -> vector<8x8x8xf32>
    %cst_12 = arith.constant 0.353553385 : f32
    %140 = vector.broadcast %cst_12 : f32 to vector<8x8x8xf32>
    %141 = arith.mulf %139, %140 : vector<8x8x8xf32>
    %cst_13 = arith.constant dense<0xFF800000> : vector<8x8xf32>
    %142 = vector.multi_reduction <maximumf>, %141, %cst_13 [2] : vector<8x8x8xf32> to vector<8x8xf32>
    %143 = vector.shape_cast %142 : vector<8x8xf32> to vector<8x8x1xf32>
    %144 = vector.broadcast %143 : vector<8x8x1xf32> to vector<8x8x8xf32>
    %145 = arith.subf %141, %144 : vector<8x8x8xf32>
    %146 = math.exp %145 : vector<8x8x8xf32>
    %cst_14 = arith.constant dense<0.000000e+00> : vector<8x8xf32>
    %147 = vector.multi_reduction <add>, %146, %cst_14 [2] : vector<8x8x8xf32> to vector<8x8xf32>
    %148 = vector.shape_cast %147 : vector<8x8xf32> to vector<8x8x1xf32>
    %149 = vector.broadcast %148 : vector<8x8x1xf32> to vector<8x8x8xf32>
    %150 = arith.divf %146, %149 : vector<8x8x8xf32>
    %cst_15 = arith.constant dense<0.000000e+00> : vector<8x8x8xf32>
    %151 = tpu.matmul %150, %138, %cst_15 {dimension_numbers = #tpu.dot_dimension_numbers<[2], [1], [1], [2], [0, 0, 0, 1, 1, 2], [0], [0]>} : vector<8x8x8xf32>, vector<8x8x8xf32>, vector<8x8x8xf32> -> vector<8x8x8xf32>
    %152 = vector.extract_strided_slice %151 {offsets = [0, 0, 0], sizes = [1, 8, 8], strides = [1, 1, 1]} : vector<8x8x8xf32> to vector<1x8x8xf32>
    %153 = vector.shape_cast %152 : vector<1x8x8xf32> to vector<8x8xf32>
    %154 = vector.extract_strided_slice %151 {offsets = [1, 0, 0], sizes = [1, 8, 8], strides = [1, 1, 1]} : vector<8x8x8xf32> to vector<1x8x8xf32>
    %155 = vector.shape_cast %154 : vector<1x8x8xf32> to vector<8x8xf32>
    %156 = vector.extract_strided_slice %151 {offsets = [2, 0, 0], sizes = [1, 8, 8], strides = [1, 1, 1]} : vector<8x8x8xf32> to vector<1x8x8xf32>
    %157 = vector.shape_cast %156 : vector<1x8x8xf32> to vector<8x8xf32>
    %158 = vector.extract_strided_slice %151 {offsets = [3, 0, 0], sizes = [1, 8, 8], strides = [1, 1, 1]} : vector<8x8x8xf32> to vector<1x8x8xf32>
    %159 = vector.shape_cast %158 : vector<1x8x8xf32> to vector<8x8xf32>
    %160 = vector.extract_strided_slice %151 {offsets = [4, 0, 0], sizes = [1, 8, 8], strides = [1, 1, 1]} : vector<8x8x8xf32> to vector<1x8x8xf32>
    %161 = vector.shape_cast %160 : vector<1x8x8xf32> to vector<8x8xf32>
    %162 = vector.extract_strided_slice %151 {offsets = [5, 0, 0], sizes = [1, 8, 8], strides = [1, 1, 1]} : vector<8x8x8xf32> to vector<1x8x8xf32>
    %163 = vector.shape_cast %162 : vector<1x8x8xf32> to vector<8x8xf32>
    %164 = vector.extract_strided_slice %151 {offsets = [6, 0, 0], sizes = [1, 8, 8], strides = [1, 1, 1]} : vector<8x8x8xf32> to vector<1x8x8xf32>
    %165 = vector.shape_cast %164 : vector<1x8x8xf32> to vector<8x8xf32>
    %166 = vector.extract_strided_slice %151 {offsets = [7, 0, 0], sizes = [1, 8, 8], strides = [1, 1, 1]} : vector<8x8x8xf32> to vector<1x8x8xf32>
    %167 = vector.shape_cast %166 : vector<1x8x8xf32> to vector<8x8xf32>
    %168 = tpu.concatenate %153, %155, %157, %159, %161, %163, %165, %167 in 1 : vector<8x8xf32>, vector<8x8xf32>, vector<8x8xf32>, vector<8x8xf32>, vector<8x8xf32>, vector<8x8xf32>, vector<8x8xf32>, vector<8x8xf32> -> vector<8x64xf32>
    %169 = tpu.concatenate %87, %168 in 0 : vector<8x64xf32>, vector<8x64xf32> -> vector<16x64xf32>
    %c0_16 = arith.constant 0 : index
    %c192 = arith.constant 192 : index
    %170 = vector.load %arg3[%c0_16, %c192] : memref<64x768xf32, #tpu.memory_space<vmem>>, vector<64x64xf32>
    %c0_17 = arith.constant 0 : index
    %c192_18 = arith.constant 192 : index
    %171 = vector.load %arg2[%c0_17, %c192_18] : memref<8x1152xf32, #tpu.memory_space<vmem>>, vector<1x64xf32>
    %cst_19 = arith.constant dense<0.000000e+00> : vector<16x64xf32>
    %172 = tpu.matmul %169, %170, %cst_19 {dimension_numbers = #tpu.dot_dimension_numbers<[1], [0], [0], [1], [0, 0, 1, 1], [], []>} : vector<16x64xf32>, vector<64x64xf32>, vector<16x64xf32> -> vector<16x64xf32>
    %173 = vector.broadcast %171 : vector<1x64xf32> to vector<16x64xf32>
    %174 = arith.addf %172, %173 : vector<16x64xf32>
    %c0_20 = arith.constant 0 : index
    %c455 = arith.constant 455 : index
    %175 = vector.load %arg3[%c0_20, %c455] : memref<64x768xf32, #tpu.memory_space<vmem>>, vector<64x256xf32>
    %c0_21 = arith.constant 0 : index
    %c455_22 = arith.constant 455 : index
    %176 = vector.load %arg2[%c0_21, %c455_22] : memref<8x1152xf32, #tpu.memory_space<vmem>>, vector<1x256xf32>
    %cst_23 = arith.constant dense<0.000000e+00> : vector<16x256xf32>
    %177 = tpu.matmul %174, %175, %cst_23 {dimension_numbers = #tpu.dot_dimension_numbers<[1], [0], [0], [1], [0, 0, 1, 1], [], []>} : vector<16x64xf32>, vector<64x256xf32>, vector<16x256xf32> -> vector<16x256xf32>
    %178 = vector.broadcast %176 : vector<1x256xf32> to vector<16x256xf32>
    %179 = arith.addf %177, %178 : vector<16x256xf32>
    %cst_24 = arith.constant 0.000000e+00 : f32
    %180 = vector.broadcast %cst_24 : f32 to vector<16x256xf32>
    %181 = arith.maximumf %179, %180 : vector<16x256xf32>
    %c0_25 = arith.constant 0 : index
    %c0_26 = arith.constant 0 : index
    %182 = vector.load %arg5[%c0_25, %c0_26] : memref<256x128xf32, #tpu.memory_space<vmem>>, vector<256x64xf32>
    %c0_27 = arith.constant 0 : index
    %c711 = arith.constant 711 : index
    %183 = vector.load %arg2[%c0_27, %c711] : memref<8x1152xf32, #tpu.memory_space<vmem>>, vector<1x64xf32>
    %cst_28 = arith.constant dense<0.000000e+00> : vector<16x64xf32>
    %184 = tpu.matmul %181, %182, %cst_28 {dimension_numbers = #tpu.dot_dimension_numbers<[1], [0], [0], [1], [0, 0, 1, 1], [], []>} : vector<16x256xf32>, vector<256x64xf32>, vector<16x64xf32> -> vector<16x64xf32>
    %185 = vector.broadcast %183 : vector<1x64xf32> to vector<16x64xf32>
    %186 = arith.addf %184, %185 : vector<16x64xf32>
    %cst_29 = arith.constant 0.000000e+00 : f32
    %187 = vector.broadcast %cst_29 : f32 to vector<16x64xf32>
    %188 = arith.maximumf %186, %187 : vector<16x64xf32>
    %c0_30 = arith.constant 0 : index
    %c711_31 = arith.constant 711 : index
    %189 = vector.load %arg3[%c0_30, %c711_31] : memref<64x768xf32, #tpu.memory_space<vmem>>, vector<64x1xf32>
    %c0_32 = arith.constant 0 : index
    %c775 = arith.constant 775 : index
    %190 = vector.load %arg2[%c0_32, %c775] : memref<8x1152xf32, #tpu.memory_space<vmem>>, vector<1x1xf32>
    %cst_33 = arith.constant dense<0.000000e+00> : vector<16x1xf32>
    %191 = tpu.matmul %188, %189, %cst_33 {dimension_numbers = #tpu.dot_dimension_numbers<[1], [0], [0], [1], [0, 0, 1, 1], [], []>} : vector<16x64xf32>, vector<64x1xf32>, vector<16x1xf32> -> vector<16x1xf32>
    %192 = vector.broadcast %190 : vector<1x1xf32> to vector<16x1xf32>
    %193 = arith.addf %191, %192 : vector<16x1xf32>
    %194 = arith.negf %193 : vector<16x1xf32>
    %195 = math.exp %194 : vector<16x1xf32>
    %cst_34 = arith.constant 1.000000e+00 : f32
    %196 = vector.broadcast %cst_34 : f32 to vector<16x1xf32>
    %197 = arith.addf %196, %195 : vector<16x1xf32>
    %198 = arith.divf %196, %197 : vector<16x1xf32>
    %c0_35 = arith.constant 0 : index
    %c256 = arith.constant 256 : index
    %199 = vector.load %arg3[%c0_35, %c256] : memref<64x768xf32, #tpu.memory_space<vmem>>, vector<64x44xf32>
    %c0_36 = arith.constant 0 : index
    %c256_37 = arith.constant 256 : index
    %200 = vector.load %arg2[%c0_36, %c256_37] : memref<8x1152xf32, #tpu.memory_space<vmem>>, vector<1x44xf32>
    %cst_38 = arith.constant dense<0.000000e+00> : vector<16x44xf32>
    %201 = tpu.matmul %1, %199, %cst_38 {dimension_numbers = #tpu.dot_dimension_numbers<[1], [0], [0], [1], [0, 0, 1, 1], [], []>} : vector<16x64xf32>, vector<64x44xf32>, vector<16x44xf32> -> vector<16x44xf32>
    %202 = vector.broadcast %200 : vector<1x44xf32> to vector<16x44xf32>
    %203 = arith.addf %201, %202 : vector<16x44xf32>
    %c1 = arith.constant 1 : index
    %c256_39 = arith.constant 256 : index
    %204 = vector.load %arg2[%c1, %c256_39] : memref<8x1152xf32, #tpu.memory_space<vmem>>, vector<1x44xf32>
    %c2 = arith.constant 2 : index
    %c256_40 = arith.constant 256 : index
    %205 = vector.load %arg2[%c2, %c256_40] : memref<8x1152xf32, #tpu.memory_space<vmem>>, vector<1x44xf32>
    %cst_41 = arith.constant dense<0.000000e+00> : vector<16xf32>
    %206 = vector.multi_reduction <add>, %203, %cst_41 [1] : vector<16x44xf32> to vector<16xf32>
    %207 = vector.shape_cast %206 : vector<16xf32> to vector<16x1xf32>
    %cst_42 = arith.constant 4.400000e+01 : f32
    %208 = vector.broadcast %cst_42 : f32 to vector<16x1xf32>
    %209 = arith.divf %207, %208 : vector<16x1xf32>
    %210 = vector.broadcast %209 : vector<16x1xf32> to vector<16x44xf32>
    %211 = arith.subf %203, %210 : vector<16x44xf32>
    %212 = arith.mulf %211, %211 : vector<16x44xf32>
    %cst_43 = arith.constant dense<0.000000e+00> : vector<16xf32>
    %213 = vector.multi_reduction <add>, %212, %cst_43 [1] : vector<16x44xf32> to vector<16xf32>
    %214 = vector.shape_cast %213 : vector<16xf32> to vector<16x1xf32>
    %cst_44 = arith.constant 4.400000e+01 : f32
    %215 = vector.broadcast %cst_44 : f32 to vector<16x1xf32>
    %216 = arith.divf %214, %215 : vector<16x1xf32>
    %217 = vector.broadcast %209 : vector<16x1xf32> to vector<16x44xf32>
    %218 = arith.subf %203, %217 : vector<16x44xf32>
    %cst_45 = arith.constant 9.99999974E-6 : f32
    %219 = vector.broadcast %cst_45 : f32 to vector<16x1xf32>
    %220 = arith.addf %216, %219 : vector<16x1xf32>
    %221 = math.rsqrt %220 : vector<16x1xf32>
    %222 = vector.broadcast %221 : vector<16x1xf32> to vector<16x44xf32>
    %223 = arith.mulf %218, %222 : vector<16x44xf32>
    %224 = vector.broadcast %204 : vector<1x44xf32> to vector<16x44xf32>
    %225 = arith.mulf %223, %224 : vector<16x44xf32>
    %226 = vector.broadcast %205 : vector<1x44xf32> to vector<16x44xf32>
    %227 = arith.addf %225, %226 : vector<16x44xf32>
    %cst_46 = arith.constant 0.000000e+00 : f32
    %228 = vector.broadcast %cst_46 : f32 to vector<16x44xf32>
    %229 = arith.maximumf %227, %228 : vector<16x44xf32>
    %c0_47 = arith.constant 0 : index
    %c300 = arith.constant 300 : index
    %230 = vector.load %arg3[%c0_47, %c300] : memref<64x768xf32, #tpu.memory_space<vmem>>, vector<44x30xf32>
    %c0_48 = arith.constant 0 : index
    %c300_49 = arith.constant 300 : index
    %231 = vector.load %arg2[%c0_48, %c300_49] : memref<8x1152xf32, #tpu.memory_space<vmem>>, vector<1x30xf32>
    %cst_50 = arith.constant dense<0.000000e+00> : vector<16x30xf32>
    %232 = tpu.matmul %229, %230, %cst_50 {dimension_numbers = #tpu.dot_dimension_numbers<[1], [0], [0], [1], [0, 0, 1, 1], [], []>} : vector<16x44xf32>, vector<44x30xf32>, vector<16x30xf32> -> vector<16x30xf32>
    %233 = vector.broadcast %231 : vector<1x30xf32> to vector<16x30xf32>
    %234 = arith.addf %232, %233 : vector<16x30xf32>
    %c1_51 = arith.constant 1 : index
    %c300_52 = arith.constant 300 : index
    %235 = vector.load %arg2[%c1_51, %c300_52] : memref<8x1152xf32, #tpu.memory_space<vmem>>, vector<1x30xf32>
    %c2_53 = arith.constant 2 : index
    %c300_54 = arith.constant 300 : index
    %236 = vector.load %arg2[%c2_53, %c300_54] : memref<8x1152xf32, #tpu.memory_space<vmem>>, vector<1x30xf32>
    %cst_55 = arith.constant dense<0.000000e+00> : vector<16xf32>
    %237 = vector.multi_reduction <add>, %234, %cst_55 [1] : vector<16x30xf32> to vector<16xf32>
    %238 = vector.shape_cast %237 : vector<16xf32> to vector<16x1xf32>
    %cst_56 = arith.constant 3.000000e+01 : f32
    %239 = vector.broadcast %cst_56 : f32 to vector<16x1xf32>
    %240 = arith.divf %238, %239 : vector<16x1xf32>
    %241 = vector.broadcast %240 : vector<16x1xf32> to vector<16x30xf32>
    %242 = arith.subf %234, %241 : vector<16x30xf32>
    %243 = arith.mulf %242, %242 : vector<16x30xf32>
    %cst_57 = arith.constant dense<0.000000e+00> : vector<16xf32>
    %244 = vector.multi_reduction <add>, %243, %cst_57 [1] : vector<16x30xf32> to vector<16xf32>
    %245 = vector.shape_cast %244 : vector<16xf32> to vector<16x1xf32>
    %cst_58 = arith.constant 3.000000e+01 : f32
    %246 = vector.broadcast %cst_58 : f32 to vector<16x1xf32>
    %247 = arith.divf %245, %246 : vector<16x1xf32>
    %248 = vector.broadcast %240 : vector<16x1xf32> to vector<16x30xf32>
    %249 = arith.subf %234, %248 : vector<16x30xf32>
    %cst_59 = arith.constant 9.99999974E-6 : f32
    %250 = vector.broadcast %cst_59 : f32 to vector<16x1xf32>
    %251 = arith.addf %247, %250 : vector<16x1xf32>
    %252 = math.rsqrt %251 : vector<16x1xf32>
    %253 = vector.broadcast %252 : vector<16x1xf32> to vector<16x30xf32>
    %254 = arith.mulf %249, %253 : vector<16x30xf32>
    %255 = vector.broadcast %235 : vector<1x30xf32> to vector<16x30xf32>
    %256 = arith.mulf %254, %255 : vector<16x30xf32>
    %257 = vector.broadcast %236 : vector<1x30xf32> to vector<16x30xf32>
    %258 = arith.addf %256, %257 : vector<16x30xf32>
    %cst_60 = arith.constant 0.000000e+00 : f32
    %259 = vector.broadcast %cst_60 : f32 to vector<16x30xf32>
    %260 = arith.maximumf %258, %259 : vector<16x30xf32>
    %c0_61 = arith.constant 0 : index
    %c330 = arith.constant 330 : index
    %261 = vector.load %arg3[%c0_61, %c330] : memref<64x768xf32, #tpu.memory_space<vmem>>, vector<30x21xf32>
    %c0_62 = arith.constant 0 : index
    %c330_63 = arith.constant 330 : index
    %262 = vector.load %arg2[%c0_62, %c330_63] : memref<8x1152xf32, #tpu.memory_space<vmem>>, vector<1x21xf32>
    %cst_64 = arith.constant dense<0.000000e+00> : vector<16x21xf32>
    %263 = tpu.matmul %260, %261, %cst_64 {dimension_numbers = #tpu.dot_dimension_numbers<[1], [0], [0], [1], [0, 0, 1, 1], [], []>} : vector<16x30xf32>, vector<30x21xf32>, vector<16x21xf32> -> vector<16x21xf32>
    %264 = vector.broadcast %262 : vector<1x21xf32> to vector<16x21xf32>
    %265 = arith.addf %263, %264 : vector<16x21xf32>
    %c1_65 = arith.constant 1 : index
    %c330_66 = arith.constant 330 : index
    %266 = vector.load %arg2[%c1_65, %c330_66] : memref<8x1152xf32, #tpu.memory_space<vmem>>, vector<1x21xf32>
    %c2_67 = arith.constant 2 : index
    %c330_68 = arith.constant 330 : index
    %267 = vector.load %arg2[%c2_67, %c330_68] : memref<8x1152xf32, #tpu.memory_space<vmem>>, vector<1x21xf32>
    %cst_69 = arith.constant dense<0.000000e+00> : vector<16xf32>
    %268 = vector.multi_reduction <add>, %265, %cst_69 [1] : vector<16x21xf32> to vector<16xf32>
    %269 = vector.shape_cast %268 : vector<16xf32> to vector<16x1xf32>
    %cst_70 = arith.constant 2.100000e+01 : f32
    %270 = vector.broadcast %cst_70 : f32 to vector<16x1xf32>
    %271 = arith.divf %269, %270 : vector<16x1xf32>
    %272 = vector.broadcast %271 : vector<16x1xf32> to vector<16x21xf32>
    %273 = arith.subf %265, %272 : vector<16x21xf32>
    %274 = arith.mulf %273, %273 : vector<16x21xf32>
    %cst_71 = arith.constant dense<0.000000e+00> : vector<16xf32>
    %275 = vector.multi_reduction <add>, %274, %cst_71 [1] : vector<16x21xf32> to vector<16xf32>
    %276 = vector.shape_cast %275 : vector<16xf32> to vector<16x1xf32>
    %cst_72 = arith.constant 2.100000e+01 : f32
    %277 = vector.broadcast %cst_72 : f32 to vector<16x1xf32>
    %278 = arith.divf %276, %277 : vector<16x1xf32>
    %279 = vector.broadcast %271 : vector<16x1xf32> to vector<16x21xf32>
    %280 = arith.subf %265, %279 : vector<16x21xf32>
    %cst_73 = arith.constant 9.99999974E-6 : f32
    %281 = vector.broadcast %cst_73 : f32 to vector<16x1xf32>
    %282 = arith.addf %278, %281 : vector<16x1xf32>
    %283 = math.rsqrt %282 : vector<16x1xf32>
    %284 = vector.broadcast %283 : vector<16x1xf32> to vector<16x21xf32>
    %285 = arith.mulf %280, %284 : vector<16x21xf32>
    %286 = vector.broadcast %266 : vector<1x21xf32> to vector<16x21xf32>
    %287 = arith.mulf %285, %286 : vector<16x21xf32>
    %288 = vector.broadcast %267 : vector<1x21xf32> to vector<16x21xf32>
    %289 = arith.addf %287, %288 : vector<16x21xf32>
    %cst_74 = arith.constant 0.000000e+00 : f32
    %290 = vector.broadcast %cst_74 : f32 to vector<16x21xf32>
    %291 = arith.maximumf %289, %290 : vector<16x21xf32>
    %c0_75 = arith.constant 0 : index
    %c351 = arith.constant 351 : index
    %292 = vector.load %arg3[%c0_75, %c351] : memref<64x768xf32, #tpu.memory_space<vmem>>, vector<21x6xf32>
    %c0_76 = arith.constant 0 : index
    %c351_77 = arith.constant 351 : index
    %293 = vector.load %arg2[%c0_76, %c351_77] : memref<8x1152xf32, #tpu.memory_space<vmem>>, vector<1x6xf32>
    %cst_78 = arith.constant dense<0.000000e+00> : vector<16x6xf32>
    %294 = tpu.matmul %291, %292, %cst_78 {dimension_numbers = #tpu.dot_dimension_numbers<[1], [0], [0], [1], [0, 0, 1, 1], [], []>} : vector<16x21xf32>, vector<21x6xf32>, vector<16x6xf32> -> vector<16x6xf32>
    %295 = vector.broadcast %293 : vector<1x6xf32> to vector<16x6xf32>
    %296 = arith.addf %294, %295 : vector<16x6xf32>
    %c1_79 = arith.constant 1 : index
    %c351_80 = arith.constant 351 : index
    %297 = vector.load %arg2[%c1_79, %c351_80] : memref<8x1152xf32, #tpu.memory_space<vmem>>, vector<1x6xf32>
    %c2_81 = arith.constant 2 : index
    %c351_82 = arith.constant 351 : index
    %298 = vector.load %arg2[%c2_81, %c351_82] : memref<8x1152xf32, #tpu.memory_space<vmem>>, vector<1x6xf32>
    %cst_83 = arith.constant dense<0.000000e+00> : vector<16xf32>
    %299 = vector.multi_reduction <add>, %296, %cst_83 [1] : vector<16x6xf32> to vector<16xf32>
    %300 = vector.shape_cast %299 : vector<16xf32> to vector<16x1xf32>
    %cst_84 = arith.constant 6.000000e+00 : f32
    %301 = vector.broadcast %cst_84 : f32 to vector<16x1xf32>
    %302 = arith.divf %300, %301 : vector<16x1xf32>
    %303 = vector.broadcast %302 : vector<16x1xf32> to vector<16x6xf32>
    %304 = arith.subf %296, %303 : vector<16x6xf32>
    %305 = arith.mulf %304, %304 : vector<16x6xf32>
    %cst_85 = arith.constant dense<0.000000e+00> : vector<16xf32>
    %306 = vector.multi_reduction <add>, %305, %cst_85 [1] : vector<16x6xf32> to vector<16xf32>
    %307 = vector.shape_cast %306 : vector<16xf32> to vector<16x1xf32>
    %cst_86 = arith.constant 6.000000e+00 : f32
    %308 = vector.broadcast %cst_86 : f32 to vector<16x1xf32>
    %309 = arith.divf %307, %308 : vector<16x1xf32>
    %310 = vector.broadcast %302 : vector<16x1xf32> to vector<16x6xf32>
    %311 = arith.subf %296, %310 : vector<16x6xf32>
    %cst_87 = arith.constant 9.99999974E-6 : f32
    %312 = vector.broadcast %cst_87 : f32 to vector<16x1xf32>
    %313 = arith.addf %309, %312 : vector<16x1xf32>
    %314 = math.rsqrt %313 : vector<16x1xf32>
    %315 = vector.broadcast %314 : vector<16x1xf32> to vector<16x6xf32>
    %316 = arith.mulf %311, %315 : vector<16x6xf32>
    %317 = vector.broadcast %297 : vector<1x6xf32> to vector<16x6xf32>
    %318 = arith.mulf %316, %317 : vector<16x6xf32>
    %319 = vector.broadcast %298 : vector<1x6xf32> to vector<16x6xf32>
    %320 = arith.addf %318, %319 : vector<16x6xf32>
    %cst_88 = arith.constant 0.000000e+00 : f32
    %321 = vector.broadcast %cst_88 : f32 to vector<16x6xf32>
    %322 = arith.maximumf %320, %321 : vector<16x6xf32>
    %c0_89 = arith.constant 0 : index
    %c357 = arith.constant 357 : index
    %323 = vector.load %arg3[%c0_89, %c357] : memref<64x768xf32, #tpu.memory_space<vmem>>, vector<6x8xf32>
    %c0_90 = arith.constant 0 : index
    %c357_91 = arith.constant 357 : index
    %324 = vector.load %arg2[%c0_90, %c357_91] : memref<8x1152xf32, #tpu.memory_space<vmem>>, vector<1x8xf32>
    %cst_92 = arith.constant dense<0.000000e+00> : vector<16x8xf32>
    %325 = tpu.matmul %322, %323, %cst_92 {dimension_numbers = #tpu.dot_dimension_numbers<[1], [0], [0], [1], [0, 0, 1, 1], [], []>} : vector<16x6xf32>, vector<6x8xf32>, vector<16x8xf32> -> vector<16x8xf32>
    %326 = vector.broadcast %324 : vector<1x8xf32> to vector<16x8xf32>
    %327 = arith.addf %325, %326 : vector<16x8xf32>
    %c1_93 = arith.constant 1 : index
    %c357_94 = arith.constant 357 : index
    %328 = vector.load %arg2[%c1_93, %c357_94] : memref<8x1152xf32, #tpu.memory_space<vmem>>, vector<1x8xf32>
    %c2_95 = arith.constant 2 : index
    %c357_96 = arith.constant 357 : index
    %329 = vector.load %arg2[%c2_95, %c357_96] : memref<8x1152xf32, #tpu.memory_space<vmem>>, vector<1x8xf32>
    %cst_97 = arith.constant dense<0.000000e+00> : vector<16xf32>
    %330 = vector.multi_reduction <add>, %327, %cst_97 [1] : vector<16x8xf32> to vector<16xf32>
    %331 = vector.shape_cast %330 : vector<16xf32> to vector<16x1xf32>
    %cst_98 = arith.constant 8.000000e+00 : f32
    %332 = vector.broadcast %cst_98 : f32 to vector<16x1xf32>
    %333 = arith.divf %331, %332 : vector<16x1xf32>
    %334 = vector.broadcast %333 : vector<16x1xf32> to vector<16x8xf32>
    %335 = arith.subf %327, %334 : vector<16x8xf32>
    %336 = arith.mulf %335, %335 : vector<16x8xf32>
    %cst_99 = arith.constant dense<0.000000e+00> : vector<16xf32>
    %337 = vector.multi_reduction <add>, %336, %cst_99 [1] : vector<16x8xf32> to vector<16xf32>
    %338 = vector.shape_cast %337 : vector<16xf32> to vector<16x1xf32>
    %cst_100 = arith.constant 8.000000e+00 : f32
    %339 = vector.broadcast %cst_100 : f32 to vector<16x1xf32>
    %340 = arith.divf %338, %339 : vector<16x1xf32>
    %341 = vector.broadcast %333 : vector<16x1xf32> to vector<16x8xf32>
    %342 = arith.subf %327, %341 : vector<16x8xf32>
    %cst_101 = arith.constant 9.99999974E-6 : f32
    %343 = vector.broadcast %cst_101 : f32 to vector<16x1xf32>
    %344 = arith.addf %340, %343 : vector<16x1xf32>
    %345 = math.rsqrt %344 : vector<16x1xf32>
    %346 = vector.broadcast %345 : vector<16x1xf32> to vector<16x8xf32>
    %347 = arith.mulf %342, %346 : vector<16x8xf32>
    %348 = vector.broadcast %328 : vector<1x8xf32> to vector<16x8xf32>
    %349 = arith.mulf %347, %348 : vector<16x8xf32>
    %350 = vector.broadcast %329 : vector<1x8xf32> to vector<16x8xf32>
    %351 = arith.addf %349, %350 : vector<16x8xf32>
    %cst_102 = arith.constant 0.000000e+00 : f32
    %352 = vector.broadcast %cst_102 : f32 to vector<16x8xf32>
    %353 = arith.maximumf %351, %352 : vector<16x8xf32>
    %c0_103 = arith.constant 0 : index
    %c365 = arith.constant 365 : index
    %354 = vector.load %arg3[%c0_103, %c365] : memref<64x768xf32, #tpu.memory_space<vmem>>, vector<8x11xf32>
    %c0_104 = arith.constant 0 : index
    %c365_105 = arith.constant 365 : index
    %355 = vector.load %arg2[%c0_104, %c365_105] : memref<8x1152xf32, #tpu.memory_space<vmem>>, vector<1x11xf32>
    %cst_106 = arith.constant dense<0.000000e+00> : vector<16x11xf32>
    %356 = tpu.matmul %353, %354, %cst_106 {dimension_numbers = #tpu.dot_dimension_numbers<[1], [0], [0], [1], [0, 0, 1, 1], [], []>} : vector<16x8xf32>, vector<8x11xf32>, vector<16x11xf32> -> vector<16x11xf32>
    %357 = vector.broadcast %355 : vector<1x11xf32> to vector<16x11xf32>
    %358 = arith.addf %356, %357 : vector<16x11xf32>
    %c1_107 = arith.constant 1 : index
    %c365_108 = arith.constant 365 : index
    %359 = vector.load %arg2[%c1_107, %c365_108] : memref<8x1152xf32, #tpu.memory_space<vmem>>, vector<1x11xf32>
    %c2_109 = arith.constant 2 : index
    %c365_110 = arith.constant 365 : index
    %360 = vector.load %arg2[%c2_109, %c365_110] : memref<8x1152xf32, #tpu.memory_space<vmem>>, vector<1x11xf32>
    %cst_111 = arith.constant dense<0.000000e+00> : vector<16xf32>
    %361 = vector.multi_reduction <add>, %358, %cst_111 [1] : vector<16x11xf32> to vector<16xf32>
    %362 = vector.shape_cast %361 : vector<16xf32> to vector<16x1xf32>
    %cst_112 = arith.constant 1.100000e+01 : f32
    %363 = vector.broadcast %cst_112 : f32 to vector<16x1xf32>
    %364 = arith.divf %362, %363 : vector<16x1xf32>
    %365 = vector.broadcast %364 : vector<16x1xf32> to vector<16x11xf32>
    %366 = arith.subf %358, %365 : vector<16x11xf32>
    %367 = arith.mulf %366, %366 : vector<16x11xf32>
    %cst_113 = arith.constant dense<0.000000e+00> : vector<16xf32>
    %368 = vector.multi_reduction <add>, %367, %cst_113 [1] : vector<16x11xf32> to vector<16xf32>
    %369 = vector.shape_cast %368 : vector<16xf32> to vector<16x1xf32>
    %cst_114 = arith.constant 1.100000e+01 : f32
    %370 = vector.broadcast %cst_114 : f32 to vector<16x1xf32>
    %371 = arith.divf %369, %370 : vector<16x1xf32>
    %372 = vector.broadcast %364 : vector<16x1xf32> to vector<16x11xf32>
    %373 = arith.subf %358, %372 : vector<16x11xf32>
    %cst_115 = arith.constant 9.99999974E-6 : f32
    %374 = vector.broadcast %cst_115 : f32 to vector<16x1xf32>
    %375 = arith.addf %371, %374 : vector<16x1xf32>
    %376 = math.rsqrt %375 : vector<16x1xf32>
    %377 = vector.broadcast %376 : vector<16x1xf32> to vector<16x11xf32>
    %378 = arith.mulf %373, %377 : vector<16x11xf32>
    %379 = vector.broadcast %359 : vector<1x11xf32> to vector<16x11xf32>
    %380 = arith.mulf %378, %379 : vector<16x11xf32>
    %381 = vector.broadcast %360 : vector<1x11xf32> to vector<16x11xf32>
    %382 = arith.addf %380, %381 : vector<16x11xf32>
    %cst_116 = arith.constant 0.000000e+00 : f32
    %383 = vector.broadcast %cst_116 : f32 to vector<16x11xf32>
    %384 = arith.maximumf %382, %383 : vector<16x11xf32>
    %c0_117 = arith.constant 0 : index
    %c376 = arith.constant 376 : index
    %385 = vector.load %arg3[%c0_117, %c376] : memref<64x768xf32, #tpu.memory_space<vmem>>, vector<11x15xf32>
    %c0_118 = arith.constant 0 : index
    %c376_119 = arith.constant 376 : index
    %386 = vector.load %arg2[%c0_118, %c376_119] : memref<8x1152xf32, #tpu.memory_space<vmem>>, vector<1x15xf32>
    %cst_120 = arith.constant dense<0.000000e+00> : vector<16x15xf32>
    %387 = tpu.matmul %384, %385, %cst_120 {dimension_numbers = #tpu.dot_dimension_numbers<[1], [0], [0], [1], [0, 0, 1, 1], [], []>} : vector<16x11xf32>, vector<11x15xf32>, vector<16x15xf32> -> vector<16x15xf32>
    %388 = vector.broadcast %386 : vector<1x15xf32> to vector<16x15xf32>
    %389 = arith.addf %387, %388 : vector<16x15xf32>
    %c1_121 = arith.constant 1 : index
    %c376_122 = arith.constant 376 : index
    %390 = vector.load %arg2[%c1_121, %c376_122] : memref<8x1152xf32, #tpu.memory_space<vmem>>, vector<1x15xf32>
    %c2_123 = arith.constant 2 : index
    %c376_124 = arith.constant 376 : index
    %391 = vector.load %arg2[%c2_123, %c376_124] : memref<8x1152xf32, #tpu.memory_space<vmem>>, vector<1x15xf32>
    %cst_125 = arith.constant dense<0.000000e+00> : vector<16xf32>
    %392 = vector.multi_reduction <add>, %389, %cst_125 [1] : vector<16x15xf32> to vector<16xf32>
    %393 = vector.shape_cast %392 : vector<16xf32> to vector<16x1xf32>
    %cst_126 = arith.constant 1.500000e+01 : f32
    %394 = vector.broadcast %cst_126 : f32 to vector<16x1xf32>
    %395 = arith.divf %393, %394 : vector<16x1xf32>
    %396 = vector.broadcast %395 : vector<16x1xf32> to vector<16x15xf32>
    %397 = arith.subf %389, %396 : vector<16x15xf32>
    %398 = arith.mulf %397, %397 : vector<16x15xf32>
    %cst_127 = arith.constant dense<0.000000e+00> : vector<16xf32>
    %399 = vector.multi_reduction <add>, %398, %cst_127 [1] : vector<16x15xf32> to vector<16xf32>
    %400 = vector.shape_cast %399 : vector<16xf32> to vector<16x1xf32>
    %cst_128 = arith.constant 1.500000e+01 : f32
    %401 = vector.broadcast %cst_128 : f32 to vector<16x1xf32>
    %402 = arith.divf %400, %401 : vector<16x1xf32>
    %403 = vector.broadcast %395 : vector<16x1xf32> to vector<16x15xf32>
    %404 = arith.subf %389, %403 : vector<16x15xf32>
    %cst_129 = arith.constant 9.99999974E-6 : f32
    %405 = vector.broadcast %cst_129 : f32 to vector<16x1xf32>
    %406 = arith.addf %402, %405 : vector<16x1xf32>
    %407 = math.rsqrt %406 : vector<16x1xf32>
    %408 = vector.broadcast %407 : vector<16x1xf32> to vector<16x15xf32>
    %409 = arith.mulf %404, %408 : vector<16x15xf32>
    %410 = vector.broadcast %390 : vector<1x15xf32> to vector<16x15xf32>
    %411 = arith.mulf %409, %410 : vector<16x15xf32>
    %412 = vector.broadcast %391 : vector<1x15xf32> to vector<16x15xf32>
    %413 = arith.addf %411, %412 : vector<16x15xf32>
    %cst_130 = arith.constant 0.000000e+00 : f32
    %414 = vector.broadcast %cst_130 : f32 to vector<16x15xf32>
    %415 = arith.maximumf %413, %414 : vector<16x15xf32>
    %c0_131 = arith.constant 0 : index
    %c391 = arith.constant 391 : index
    %416 = vector.load %arg3[%c0_131, %c391] : memref<64x768xf32, #tpu.memory_space<vmem>>, vector<15x64xf32>
    %c0_132 = arith.constant 0 : index
    %c391_133 = arith.constant 391 : index
    %417 = vector.load %arg2[%c0_132, %c391_133] : memref<8x1152xf32, #tpu.memory_space<vmem>>, vector<1x64xf32>
    %cst_134 = arith.constant dense<0.000000e+00> : vector<16x64xf32>
    %418 = tpu.matmul %415, %416, %cst_134 {dimension_numbers = #tpu.dot_dimension_numbers<[1], [0], [0], [1], [0, 0, 1, 1], [], []>} : vector<16x15xf32>, vector<15x64xf32>, vector<16x64xf32> -> vector<16x64xf32>
    %419 = vector.broadcast %417 : vector<1x64xf32> to vector<16x64xf32>
    %420 = arith.addf %418, %419 : vector<16x64xf32>
    %cst_135 = arith.constant dense<0.000000e+00> : vector<2x64xf32>
    %421 = vector.multi_reduction <add>, %0, %cst_135 [1] : vector<2x8x64xf32> to vector<2x64xf32>
    %cst_136 = arith.constant 8.000000e+00 : f32
    %422 = vector.broadcast %cst_136 : f32 to vector<2x64xf32>
    %423 = arith.divf %421, %422 : vector<2x64xf32>
    %424 = tpu.concatenate %423, %423 in 1 : vector<2x64xf32>, vector<2x64xf32> -> vector<2x128xf32>
    %c0_137 = arith.constant 0 : index
    %c0_138 = arith.constant 0 : index
    %425 = vector.load %arg4[%c0_137, %c0_138] : memref<128x256xf32, #tpu.memory_space<vmem>>, vector<128x256xf32>
    %c0_139 = arith.constant 0 : index
    %c776 = arith.constant 776 : index
    %426 = vector.load %arg2[%c0_139, %c776] : memref<8x1152xf32, #tpu.memory_space<vmem>>, vector<1x256xf32>
    %cst_140 = arith.constant dense<0.000000e+00> : vector<2x256xf32>
    %427 = tpu.matmul %424, %425, %cst_140 {dimension_numbers = #tpu.dot_dimension_numbers<[1], [0], [0], [1], [0, 0, 1, 1], [], []>} : vector<2x128xf32>, vector<128x256xf32>, vector<2x256xf32> -> vector<2x256xf32>
    %428 = vector.broadcast %426 : vector<1x256xf32> to vector<2x256xf32>
    %429 = arith.addf %427, %428 : vector<2x256xf32>
    %cst_141 = arith.constant 0.000000e+00 : f32
    %430 = vector.broadcast %cst_141 : f32 to vector<2x256xf32>
    %431 = arith.maximumf %429, %430 : vector<2x256xf32>
    %c0_142 = arith.constant 0 : index
    %c64 = arith.constant 64 : index
    %432 = vector.load %arg5[%c0_142, %c64] : memref<256x128xf32, #tpu.memory_space<vmem>>, vector<256x6xf32>
    %c0_143 = arith.constant 0 : index
    %c1032 = arith.constant 1032 : index
    %433 = vector.load %arg2[%c0_143, %c1032] : memref<8x1152xf32, #tpu.memory_space<vmem>>, vector<1x6xf32>
    %cst_144 = arith.constant dense<0.000000e+00> : vector<2x6xf32>
    %434 = tpu.matmul %431, %432, %cst_144 {dimension_numbers = #tpu.dot_dimension_numbers<[1], [0], [0], [1], [0, 0, 1, 1], [], []>} : vector<2x256xf32>, vector<256x6xf32>, vector<2x6xf32> -> vector<2x6xf32>
    %435 = vector.broadcast %433 : vector<1x6xf32> to vector<2x6xf32>
    %436 = arith.addf %434, %435 : vector<2x6xf32>
    %cst_145 = arith.constant dense<0xFF800000> : vector<2xf32>
    %437 = vector.multi_reduction <maximumf>, %436, %cst_145 [1] : vector<2x6xf32> to vector<2xf32>
    %438 = vector.shape_cast %437 : vector<2xf32> to vector<2x1xf32>
    %439 = vector.broadcast %438 : vector<2x1xf32> to vector<2x6xf32>
    %440 = arith.subf %436, %439 : vector<2x6xf32>
    %441 = math.exp %440 : vector<2x6xf32>
    %cst_146 = arith.constant dense<0.000000e+00> : vector<2xf32>
    %442 = vector.multi_reduction <add>, %441, %cst_146 [1] : vector<2x6xf32> to vector<2xf32>
    %443 = vector.shape_cast %442 : vector<2xf32> to vector<2x1xf32>
    %444 = vector.broadcast %443 : vector<2x1xf32> to vector<2x6xf32>
    %445 = arith.divf %441, %444 : vector<2x6xf32>
    %446 = vector.extract_strided_slice %445 {offsets = [0, 0], sizes = [1, 6], strides = [1, 1]} : vector<2x6xf32> to vector<1x6xf32>
    %447 = vector.shape_cast %446 : vector<1x6xf32> to vector<1x6xf32>
    %448 = vector.broadcast %447 : vector<1x6xf32> to vector<8x6xf32>
    %449 = vector.extract_strided_slice %445 {offsets = [1, 0], sizes = [1, 6], strides = [1, 1]} : vector<2x6xf32> to vector<1x6xf32>
    %450 = vector.shape_cast %449 : vector<1x6xf32> to vector<1x6xf32>
    %451 = vector.broadcast %450 : vector<1x6xf32> to vector<8x6xf32>
    %452 = tpu.concatenate %448, %451 in 0 : vector<8x6xf32>, vector<8x6xf32> -> vector<16x6xf32>
    %cst_147 = arith.constant 0.000000e+00 : f32
    %453 = vector.broadcast %cst_147 : f32 to vector<16x51xf32>
    %454 = tpu.concatenate %322, %420, %198, %452, %453 in 1 : vector<16x6xf32>, vector<16x64xf32>, vector<16x1xf32>, vector<16x6xf32>, vector<16x51xf32> -> vector<16x128xf32>
    %c0_148 = arith.constant 0 : index
    %c0_149 = arith.constant 0 : index
    %455 = vector.load %arg6[%c0_148, %c0_149] : memref<16x128xf32, #tpu.memory_space<vmem>>, vector<16x128xf32>
    tpu.vector_store %arg6[%c0_148, %c0_149], %454 {strides = array<i32>} : memref<16x128xf32, #tpu.memory_space<vmem>>, vector<16x128xf32>,
    return
  }
}

</mosaic_0001>

<llo_original>
// kernel: tpu_custom_call.1
$region0: #{tpu_custom_call.1}
  #allocation0 [shape = 'u32[]', space=smem, size = 0x4, offset = 0x4, fixed_abs, tag = 'smem constant byte address 0x4 - core index']
  #allocation1 [shape = 'u32[144,128]{1,0:T(1,128)}', space=vmem, size = 0x12000, scoped, tag = 'internal scratch']
  %s0 = inlined_call_operand.hbm [shape: f32[2,8,64], index: 0, kind: input, shape index: {}]
  %s1 = inlined_call_operand.vmem [shape: f32[2,64], index: 1, kind: input, shape index: {}]
  %s2 = inlined_call_operand.hbm [shape: f32[8,1152], index: 2, kind: input, shape index: {}]
  %s3 = inlined_call_operand.hbm [shape: f32[64,768], index: 3, kind: input, shape index: {}]
  %s4 = inlined_call_operand.hbm [shape: f32[128,256], index: 4, kind: input, shape index: {}]
  %s5 = inlined_call_operand.hbm [shape: f32[256,128], index: 5, kind: input, shape index: {}]
  %s6 = inlined_call_operand.hbm [shape: f32[16,128], index: 6, kind: output, shape index: {}]
  %s7 = sld [smem:[#allocation0]]
  $region54: #{tpu_custom_call.1} parent=0
    _
  %s9 = ssub.s32 1, %s7
  %s10 = scalar_select 0, %s9, %s7
  $region1: #{tpu_custom_call.1} parent=0
    #allocation2 [shape = 'u8[8192]{0}', space=vmem, size = 0x2000, scoped, tag = 'input window, operand 0, single buffered']
    #allocation3 [shape = 's32[1]{0}', space=sflag, size = 0x4, scoped, tag = 'scoped memory for tpu_custom_call.1']
    #allocation4 [shape = 's32[1]{0}', space=sflag, size = 0x4, scoped, tag = 'scoped memory for tpu_custom_call.1']
    #allocation5 [shape = 'u8[36864]{0}', space=vmem, size = 0x9000, scoped, tag = 'input window, operand 2, single buffered']
    #allocation6 [shape = 's32[1]{0}', space=sflag, size = 0x4, scoped, tag = 'scoped memory for tpu_custom_call.1']
    #allocation7 [shape = 'u8[196608]{0}', space=vmem, size = 0x30000, scoped, tag = 'input window, operand 3, single buffered']
    #allocation8 [shape = 'u8[131072]{0}', space=vmem, size = 0x20000, scoped, tag = 'input window, operand 4, single buffered']
    #allocation9 [shape = 's32[1]{0}', space=sflag, size = 0x4, scoped, tag = 'scoped memory for tpu_custom_call.1']
    #allocation10 [shape = 'u8[131072]{0}', space=vmem, size = 0x20000, scoped, tag = 'input window, operand 5, single buffered']
    #allocation11 [shape = 'u8[8192]{0}', space=vmem, size = 0x2000, scoped, tag = 'output window, operand 0, single buffered']
    %11 = vsyncpa [#allocation3], 0
    %12 = vsyncpa [#allocation6], 0
    %13 = vsyncpa [#allocation9], 0
    %14 = vsyncpa [#allocation4], 0
    // Predicated region
    $region2: #{tpu_custom_call.1} parent=1 // pred_check
      _
    $region3: #{tpu_custom_call.1} parent=1 // pred_check_branch
      %16 = sbr.rel (0) target = $region5
    $region4: #{tpu_custom_call.1} parent=1 // pred_region
      %s18 = ssub.s32 256, 256
      %19 = vsyncadd [#allocation3], %s18
      %s20 = sshll.u32 [#allocation2], 4
      %s21 = int_to_ptr.vmem [resolvable:$true] %s20
      %26 = dma.hbm_to_vmem [thread:$0]  %s0, 256, %s21, [#allocation3], 128, 128, 8
    $region5: #{tpu_custom_call.1} parent=1 // pred_fallthru
      _
    // Predicated region
    $region6: #{tpu_custom_call.1} parent=1 // pred_check
      _
    $region7: #{tpu_custom_call.1} parent=1 // pred_check_branch
      %28 = sbr.rel (0) target = $region9
    $region8: #{tpu_custom_call.1} parent=1 // pred_region
      _
    $region9: #{tpu_custom_call.1} parent=1 // pred_fallthru
      _
    // Predicated region
    $region10: #{tpu_custom_call.1} parent=1 // pred_check
      _
    $region11: #{tpu_custom_call.1} parent=1 // pred_check_branch
      %30 = sbr.rel (0) target = $region13
    $region12: #{tpu_custom_call.1} parent=1 // pred_region
      %s32 = ssub.s32 1152, 1152
      %33 = vsyncadd [#allocation6], %s32
      %s35 = sshll.u32 [#allocation5], 4
      %s36 = int_to_ptr.vmem [resolvable:$true] %s35
      %38 = dma.hbm_to_vmem [thread:$0]  %s2, 1152, %s36, [#allocation6]
    $region13: #{tpu_custom_call.1} parent=1 // pred_fallthru
      _
    // Predicated region
    $region14: #{tpu_custom_call.1} parent=1 // pred_check
      _
    $region15: #{tpu_custom_call.1} parent=1 // pred_check_branch
      %40 = sbr.rel (0) target = $region17
    $region16: #{tpu_custom_call.1} parent=1 // pred_region
      %s42 = ssub.s32 6144, 6144
      %43 = vsyncadd [#allocation6], %s42
      %s44 = sshll.u32 [#allocation7], 4
      %s45 = int_to_ptr.vmem [resolvable:$true] %s44
      %50 = dma.hbm_to_vmem [thread:$0]  %s3, 6144, %s45, [#allocation6], 768, 768, 48
    $region17: #{tpu_custom_call.1} parent=1 // pred_fallthru
      _
    // Predicated region
    $region18: #{tpu_custom_call.1} parent=1 // pred_check
      _
    $region19: #{tpu_custom_call.1} parent=1 // pred_check_branch
      %52 = sbr.rel (0) target = $region21
    $region20: #{tpu_custom_call.1} parent=1 // pred_region
      %s54 = ssub.s32 4096, 4096
      %55 = vsyncadd [#allocation9], %s54
      %s56 = sshll.u32 [#allocation8], 4
      %s57 = int_to_ptr.vmem [resolvable:$true] %s56
      %62 = dma.hbm_to_vmem [thread:$0]  %s4, 4096, %s57, [#allocation9], 256, 256, 16
    $region21: #{tpu_custom_call.1} parent=1 // pred_fallthru
      _
    // Predicated region
    $region22: #{tpu_custom_call.1} parent=1 // pred_check
      _
    $region23: #{tpu_custom_call.1} parent=1 // pred_check_branch
      %64 = sbr.rel (0) target = $region25
    $region24: #{tpu_custom_call.1} parent=1 // pred_region
      %s66 = ssub.s32 4096, 4096
      %67 = vsyncadd [#allocation9], %s66
      %s68 = sshll.u32 [#allocation10], 4
      %s69 = int_to_ptr.vmem [resolvable:$true] %s68
      %74 = dma.hbm_to_vmem [thread:$0]  %s5, 4096, %s69, [#allocation9], 128, 128, 8
    $region25: #{tpu_custom_call.1} parent=1 // pred_fallthru
      _
    // Predicated region
    $region26: #{tpu_custom_call.1} parent=1 // pred_check
      _
    $region27: #{tpu_custom_call.1} parent=1 // pred_check_branch
      %76 = sbr.rel (0) target = $region29
    $region28: #{tpu_custom_call.1} parent=1 // pred_region
      %77 = dma.done [#allocation3], 256
    $region29: #{tpu_custom_call.1} parent=1 // pred_fallthru
      _
    // Predicated region
    $region30: #{tpu_custom_call.1} parent=1 // pred_check
      _
    $region31: #{tpu_custom_call.1} parent=1 // pred_check_branch
      %79 = sbr.rel (0) target = $region33
    $region32: #{tpu_custom_call.1} parent=1 // pred_region
      %80 = dma.done [#allocation6], 1152
    $region33: #{tpu_custom_call.1} parent=1 // pred_fallthru
      _
    // Predicated region
    $region34: #{tpu_custom_call.1} parent=1 // pred_check
      _
    $region35: #{tpu_custom_call.1} parent=1 // pred_check_branch
      %82 = sbr.rel (0) target = $region37
    $region36: #{tpu_custom_call.1} parent=1 // pred_region
      %83 = dma.done [#allocation6], 6144
    $region37: #{tpu_custom_call.1} parent=1 // pred_fallthru
      _
    // Predicated region
    $region38: #{tpu_custom_call.1} parent=1 // pred_check
      _
    $region39: #{tpu_custom_call.1} parent=1 // pred_check_branch
      %85 = sbr.rel (0) target = $region41
    $region40: #{tpu_custom_call.1} parent=1 // pred_region
      %86 = dma.done [#allocation9], 4096
    $region41: #{tpu_custom_call.1} parent=1 // pred_fallthru
      _
    // Predicated region
    $region42: #{tpu_custom_call.1} parent=1 // pred_check
      _
    $region43: #{tpu_custom_call.1} parent=1 // pred_check_branch
      %88 = sbr.rel (0) target = $region45
    $region44: #{tpu_custom_call.1} parent=1 // pred_region
      %89 = dma.done [#allocation9], 4096
    $region45: #{tpu_custom_call.1} parent=1 // pred_fallthru
      _
    %v90 = vld [vmem:[#allocation2] sm:$0xff]
    %v91 = vld [vmem:[#allocation2 + $0x8] sm:$0xff]
    %v92 = vld [vmem:[#allocation7] sm:$0xff]
    %v93 = vld [vmem:[#allocation7 + $0x8] sm:$0xff]
    %v94 = vld [vmem:[#allocation7 + $0x30] sm:$0xff]
    %v95 = vld [vmem:[#allocation7 + $0x38] sm:$0xff]
    %v96 = vld [vmem:[#allocation7 + $0x60] sm:$0xff]
    %v97 = vld [vmem:[#allocation7 + $0x68] sm:$0xff]
    %v98 = vld [vmem:[#allocation7 + $0x90] sm:$0xff]
    %v99 = vld [vmem:[#allocation7 + $0x98] sm:$0xff]
    %v100 = vld [vmem:[#allocation7 + $0xc0] sm:$0xff]
    %v101 = vld [vmem:[#allocation7 + $0xc8] sm:$0xff]
    %v102 = vld [vmem:[#allocation7 + $0xf0] sm:$0xff]
    %v103 = vld [vmem:[#allocation7 + $0xf8] sm:$0xff]
    %v104 = vld [vmem:[#allocation7 + $0x120] sm:$0xff]
    %v105 = vld [vmem:[#allocation7 + $0x128] sm:$0xff]
    %v106 = vld [vmem:[#allocation7 + $0x150] sm:$0xff]
    %v107 = vld [vmem:[#allocation7 + $0x158] sm:$0xff]
    %v108 = vld [vmem:[#allocation5] ss:$8 sm:$0x3]
    %v110 = vlaneseq
    %v111 = vshrl.u32 %v110, 7
    %v112 = vsub.s32 0, %v111
    %v113 = vrot.slane %v108, %v112
    %v114 = vlaneseq
    %v115 = vshrl.u32 %v114, 7
    %v116 = vsub.s32 1, %v115
    %v117 = vrot.slane %v108, %v116
    %vm120 = vcmask 523264
    %v122 = vsel %vm120, %v90, 0
    %v125 = vsel %vm120, %v91, 0
    %127 = vmatprep.subr.mxu0 %v93
    %128 = vmatpush1.msra.mxu0 %v92
    %129 = vmatprep.subr.mxu0 %v95
    %130 = vmatpush1.msra.mxu0 %v94
    %131 = vmatprep.subr.mxu0 %v97
    %132 = vmatpush1.msra.mxu0 %v96
    %133 = vmatprep.subr.mxu0 %v99
    %134 = vmatpush1.msra.mxu0 %v98
    %135 = vmatprep.subr.mxu0 %v101
    %136 = vmatpush1.msra.mxu0 %v100
    %137 = vmatprep.subr.mxu0 %v103
    %138 = vmatpush1.msra.mxu0 %v102
    %139 = vmatprep.subr.mxu0 %v105
    %140 = vmatpush1.msra.mxu0 %v104
    %141 = vmatprep.subr.mxu0 %v107
    %142 = vmatpush1.msra.mxu0 %v106
    %143 = vmatprep.subr.mxu0 0.0
    %144 = vmatpush1.msra.mxu0 0.0
    %145 = vmatprep.subr.mxu0 0.0
    %146 = vmatpush1.msra.mxu0 0.0
    %147 = vmatprep.subr.mxu0 0.0
    %148 = vmatpush1.msra.mxu0 0.0
    %149 = vmatprep.subr.mxu0 0.0
    %150 = vmatpush1.msra.mxu0 0.0
    %151 = vmatprep.subr.mxu0 0.0
    %152 = vmatpush1.msra.mxu0 0.0
    %153 = vmatprep.subr.mxu0 0.0
    %154 = vmatpush1.msra.mxu0 0.0
    %155 = vmatprep.subr.mxu0 0.0
    %156 = vmatpush1.msra.mxu0 0.0
    %157 = vmatprep.subr.mxu0 0.0
    %158 = vmatpush1.msra.mxu0 0.0
    %159 = vmatprep.subr.mxu0 0.0
    %160 = vmatpush1.msra.mxu0 0.0
    %161 = vmatprep.subr.mxu0 0.0
    %162 = vmatpush1.msra.mxu0 0.0
    %163 = vmatprep.subr.mxu0 0.0
    %164 = vmatpush1.msra.mxu0 0.0
    %165 = vmatprep.subr.mxu0 0.0
    %166 = vmatpush1.msra.mxu0 0.0
    %167 = vmatprep.subr.mxu0 0.0
    %168 = vmatpush1.msra.mxu0 0.0
    %169 = vmatprep.subr.mxu0 0.0
    %170 = vmatpush1.msra.mxu0 0.0
    %171 = vmatprep.subr.mxu0 0.0
    %172 = vmatpush1.msra.mxu0 0.0
    %173 = vmatprep.subr.mxu0 0.0
    %174 = vmatpush1.msra.mxu0 0.0
    %175 = vmatprep.subr.mxu0 0.0
    %176 = vmatpush1.msra.mxu0 0.0
    %177 = vmatprep.subr.mxu0 0.0
    %178 = vmatpush1.msra.mxu0 0.0
    %179 = vmatprep.subr.mxu0 0.0
    %180 = vmatpush1.msra.mxu0 0.0
    %181 = vmatprep.subr.mxu0 0.0
    %182 = vmatpush1.msra.mxu0 0.0
    %183 = vmatprep.subr.mxu0 0.0
    %184 = vmatpush1.msra.mxu0 0.0
    %185 = vmatprep.subr.mxu0 0.0
    %186 = vmatpush1.msra.mxu0 0.0
    %187 = vmatprep.subr.mxu0 0.0
    %188 = vmatpush1.msra.mxu0 0.0
    %189 = vmatprep.subr.mxu0 0.0
    %190 = vmatpush1.msra.mxu0 0.0
    %191 = vmatprep.mubr.f32.mxu0 0.0
    %192 = vmatmul.mubr.f32.gmra.mrb[0].mxu0 %v122
    %v193 = vpop.f32.mrb[0].mxu0
    %v194 = vadd.f32 %v113, %v193
    %v195 = vpop.f32.mrb[0].mxu0
    %v196 = vadd.f32 %v117, %v195
    %197 = vmatprep.mubr.f32.mxu0 0.0
    %198 = vmatmul.mubr.f32.gmra.mrb[0].mxu0 %v125
    %v199 = vpop.f32.mrb[0].mxu0
    %v200 = vadd.f32 %v113, %v199
    %v201 = vpop.f32.mrb[0].mxu0
    %v202 = vadd.f32 %v117, %v201
    %203 = vdwg.mxu0
    %205 = vrot.lane.b32.xlu0 %v194, 120
    %v206 = vpop.permute.xlu0 %205
    %207 = vrot.lane.b32.xlu0 %v194, 112
    %v208 = vpop.permute.xlu0 %207
    %209 = vrot.lane.b32.xlu0 %v194, 104
    %v210 = vpop.permute.xlu0 %209
    %211 = vrot.lane.b32.xlu0 %v194, 96
    %v212 = vpop.permute.xlu0 %211
    %213 = vrot.lane.b32.xlu0 %v194, 88
    %v214 = vpop.permute.xlu0 %213
    %215 = vrot.lane.b32.xlu0 %v194, 80
    %v216 = vpop.permute.xlu0 %215
    %217 = vrot.lane.b32.xlu0 %v194, 72
    %v218 = vpop.permute.xlu0 %217
    %220 = vrot.lane.b32.xlu0 %v196, 120
    %v221 = vpop.permute.xlu0 %220
    %223 = vrot.lane.b32.xlu0 %v196, 112
    %v224 = vpop.permute.xlu0 %223
    %226 = vrot.lane.b32.xlu0 %v196, 104
    %v227 = vpop.permute.xlu0 %226
    %229 = vrot.lane.b32.xlu0 %v196, 96
    %v230 = vpop.permute.xlu0 %229
    %232 = vrot.lane.b32.xlu0 %v196, 88
    %v233 = vpop.permute.xlu0 %232
    %235 = vrot.lane.b32.xlu0 %v196, 80
    %v236 = vpop.permute.xlu0 %235
    %238 = vrot.lane.b32.xlu0 %v196, 72
    %v239 = vpop.permute.xlu0 %238
    %241 = vrot.lane.b32.xlu0 %v194, 64
    %v242 = vpop.permute.xlu0 %241
    %vm243 = vcmask 64512
    %v244 = vsel %vm243, %v194, 0
    %v246 = vsel %vm243, %v242, 0
    %248 = vmatprep.subr.mxu0 0.0
    %249 = vmatpush1.xpose.msra.mxu0 %v246
    %250 = vmatprep.subr.mxu0 0.0
    %251 = vmatpush1.xpose.msra.mxu0 0.0
    %252 = vmatprep.subr.mxu0 0.0
    %253 = vmatpush1.xpose.msra.mxu0 0.0
    %254 = vmatprep.subr.mxu0 0.0
    %255 = vmatpush1.xpose.msra.mxu0 0.0
    %256 = vmatprep.subr.mxu0 0.0
    %257 = vmatpush1.xpose.msra.mxu0 0.0
    %258 = vmatprep.subr.mxu0 0.0
    %259 = vmatpush1.xpose.msra.mxu0 0.0
    %260 = vmatprep.subr.mxu0 0.0
    %261 = vmatpush1.xpose.msra.mxu0 0.0
    %262 = vmatprep.subr.mxu0 0.0
    %263 = vmatpush1.xpose.msra.mxu0 0.0
    %264 = vmatprep.subr.mxu0 0.0
    %265 = vmatpush1.xpose.msra.mxu0 0.0
    %266 = vmatprep.subr.mxu0 0.0
    %267 = vmatpush1.xpose.msra.mxu0 0.0
    %268 = vmatprep.subr.mxu0 0.0
    %269 = vmatpush1.xpose.msra.mxu0 0.0
    %270 = vmatprep.subr.mxu0 0.0
    %271 = vmatpush1.xpose.msra.mxu0 0.0
    %272 = vmatprep.subr.mxu0 0.0
    %273 = vmatpush1.xpose.msra.mxu0 0.0
    %274 = vmatprep.subr.mxu0 0.0
    %275 = vmatpush1.xpose.msra.mxu0 0.0
    %276 = vmatprep.subr.mxu0 0.0
    %277 = vmatpush1.xpose.msra.mxu0 0.0
    %278 = vmatprep.subr.mxu0 0.0
    %279 = vmatpush1.xpose.msra.mxu0 0.0
    %280 = vmatprep.subr.mxu0 0.0
    %281 = vmatpush1.xpose.msra.mxu0 0.0
    %282 = vmatprep.subr.mxu0 0.0
    %283 = vmatpush1.xpose.msra.mxu0 0.0
    %284 = vmatprep.subr.mxu0 0.0
    %285 = vmatpush1.xpose.msra.mxu0 0.0
    %286 = vmatprep.subr.mxu0 0.0
    %287 = vmatpush1.xpose.msra.mxu0 0.0
    %288 = vmatprep.subr.mxu0 0.0
    %289 = vmatpush1.xpose.msra.mxu0 0.0
    %290 = vmatprep.subr.mxu0 0.0
    %291 = vmatpush1.xpose.msra.mxu0 0.0
    %292 = vmatprep.subr.mxu0 0.0
    %293 = vmatpush1.xpose.msra.mxu0 0.0
    %294 = vmatprep.subr.mxu0 0.0
    %295 = vmatpush1.xpose.msra.mxu0 0.0
    %296 = vmatprep.subr.mxu0 0.0
    %297 = vmatpush1.xpose.msra.mxu0 0.0
    %298 = vmatprep.subr.mxu0 0.0
    %299 = vmatpush1.xpose.msra.mxu0 0.0
    %300 = vmatprep.subr.mxu0 0.0
    %301 = vmatpush1.xpose.msra.mxu0 0.0
    %302 = vmatprep.subr.mxu0 0.0
    %303 = vmatpush1.xpose.msra.mxu0 0.0
    %304 = vmatprep.subr.mxu0 0.0
    %305 = vmatpush1.xpose.msra.mxu0 0.0
    %306 = vmatprep.subr.mxu0 0.0
    %307 = vmatpush1.xpose.msra.mxu0 0.0
    %308 = vmatprep.subr.mxu0 0.0
    %309 = vmatpush1.xpose.msra.mxu0 0.0
    %310 = vmatprep.subr.mxu0 0.0
    %311 = vmatpush1.xpose.msra.mxu0 0.0
    %312 = vmatprep.mubr.f32.mxu0 0.0
    %313 = vmatmul.mubr.f32.gmra.mrb[0].mxu0 %v244
    %v314 = vpop.f32.mrb[0].mxu0
    %v315 = vadd.f32 0.0, %v314
    %v316 = vpop.f32.mrb[0].mxu0
    %317 = vdwg.mxu0
    %318 = vrot.lane.b32.xlu0 %v206, 64
    %v319 = vpop.permute.xlu0 %318
    %v320 = vsel %vm243, %v206, 0
    %v322 = vsel %vm243, %v319, 0
    %324 = vmatprep.subr.mxu0 0.0
    %325 = vmatpush1.xpose.msra.mxu0 %v322
    %326 = vmatprep.subr.mxu0 0.0
    %327 = vmatpush1.xpose.msra.mxu0 0.0
    %328 = vmatprep.subr.mxu0 0.0
    %329 = vmatpush1.xpose.msra.mxu0 0.0
    %330 = vmatprep.subr.mxu0 0.0
    %331 = vmatpush1.xpose.msra.mxu0 0.0
    %332 = vmatprep.subr.mxu0 0.0
    %333 = vmatpush1.xpose.msra.mxu0 0.0
    %334 = vmatprep.subr.mxu0 0.0
    %335 = vmatpush1.xpose.msra.mxu0 0.0
    %336 = vmatprep.subr.mxu0 0.0
    %337 = vmatpush1.xpose.msra.mxu0 0.0
    %338 = vmatprep.subr.mxu0 0.0
    %339 = vmatpush1.xpose.msra.mxu0 0.0
    %340 = vmatprep.subr.mxu0 0.0
    %341 = vmatpush1.xpose.msra.mxu0 0.0
    %342 = vmatprep.subr.mxu0 0.0
    %343 = vmatpush1.xpose.msra.mxu0 0.0
    %344 = vmatprep.subr.mxu0 0.0
    %345 = vmatpush1.xpose.msra.mxu0 0.0
    %346 = vmatprep.subr.mxu0 0.0
    %347 = vmatpush1.xpose.msra.mxu0 0.0
    %348 = vmatprep.subr.mxu0 0.0
    %349 = vmatpush1.xpose.msra.mxu0 0.0
    %350 = vmatprep.subr.mxu0 0.0
    %351 = vmatpush1.xpose.msra.mxu0 0.0
    %352 = vmatprep.subr.mxu0 0.0
    %353 = vmatpush1.xpose.msra.mxu0 0.0
    %354 = vmatprep.subr.mxu0 0.0
    %355 = vmatpush1.xpose.msra.mxu0 0.0
    %356 = vmatprep.subr.mxu0 0.0
    %357 = vmatpush1.xpose.msra.mxu0 0.0
    %358 = vmatprep.subr.mxu0 0.0
    %359 = vmatpush1.xpose.msra.mxu0 0.0
    %360 = vmatprep.subr.mxu0 0.0
    %361 = vmatpush1.xpose.msra.mxu0 0.0
    %362 = vmatprep.subr.mxu0 0.0
    %363 = vmatpush1.xpose.msra.mxu0 0.0
    %364 = vmatprep.subr.mxu0 0.0
    %365 = vmatpush1.xpose.msra.mxu0 0.0
    %366 = vmatprep.subr.mxu0 0.0
    %367 = vmatpush1.xpose.msra.mxu0 0.0
    %368 = vmatprep.subr.mxu0 0.0
    %369 = vmatpush1.xpose.msra.mxu0 0.0
    %370 = vmatprep.subr.mxu0 0.0
    %371 = vmatpush1.xpose.msra.mxu0 0.0
    %372 = vmatprep.subr.mxu0 0.0
    %373 = vmatpush1.xpose.msra.mxu0 0.0
    %374 = vmatprep.subr.mxu0 0.0
    %375 = vmatpush1.xpose.msra.mxu0 0.0
    %376 = vmatprep.subr.mxu0 0.0
    %377 = vmatpush1.xpose.msra.mxu0 0.0
    %378 = vmatprep.subr.mxu0 0.0
    %379 = vmatpush1.xpose.msra.mxu0 0.0
    %380 = vmatprep.subr.mxu0 0.0
    %381 = vmatpush1.xpose.msra.mxu0 0.0
    %382 = vmatprep.subr.mxu0 0.0
    %383 = vmatpush1.xpose.msra.mxu0 0.0
    %384 = vmatprep.subr.mxu0 0.0
    %385 = vmatpush1.xpose.msra.mxu0 0.0
    %386 = vmatprep.subr.mxu0 0.0
    %387 = vmatpush1.xpose.msra.mxu0 0.0
    %388 = vmatprep.mubr.f32.mxu0 0.0
    %389 = vmatmul.mubr.f32.gmra.mrb[0].mxu0 %v320
    %v390 = vpop.f32.mrb[0].mxu0
    %v391 = vadd.f32 0.0, %v390
    %v392 = vpop.f32.mrb[0].mxu0
    %393 = vdwg.mxu0
    %394 = vrot.lane.b32.xlu0 %v208, 64
    %v395 = vpop.permute.xlu0 %394
    %v396 = vsel %vm243, %v208, 0
    %v398 = vsel %vm243, %v395, 0
    %400 = vmatprep.subr.mxu0 0.0
    %401 = vmatpush1.xpose.msra.mxu0 %v398
    %402 = vmatprep.subr.mxu0 0.0
    %403 = vmatpush1.xpose.msra.mxu0 0.0
    %404 = vmatprep.subr.mxu0 0.0
    %405 = vmatpush1.xpose.msra.mxu0 0.0
    %406 = vmatprep.subr.mxu0 0.0
    %407 = vmatpush1.xpose.msra.mxu0 0.0
    %408 = vmatprep.subr.mxu0 0.0
    %409 = vmatpush1.xpose.msra.mxu0 0.0
    %410 = vmatprep.subr.mxu0 0.0
    %411 = vmatpush1.xpose.msra.mxu0 0.0
    %412 = vmatprep.subr.mxu0 0.0
    %413 = vmatpush1.xpose.msra.mxu0 0.0
    %414 = vmatprep.subr.mxu0 0.0
    %415 = vmatpush1.xpose.msra.mxu0 0.0
    %416 = vmatprep.subr.mxu0 0.0
    %417 = vmatpush1.xpose.msra.mxu0 0.0
    %418 = vmatprep.subr.mxu0 0.0
    %419 = vmatpush1.xpose.msra.mxu0 0.0
    %420 = vmatprep.subr.mxu0 0.0
    %421 = vmatpush1.xpose.msra.mxu0 0.0
    %422 = vmatprep.subr.mxu0 0.0
    %423 = vmatpush1.xpose.msra.mxu0 0.0
    %424 = vmatprep.subr.mxu0 0.0
    %425 = vmatpush1.xpose.msra.mxu0 0.0
    %426 = vmatprep.subr.mxu0 0.0
    %427 = vmatpush1.xpose.msra.mxu0 0.0
    %428 = vmatprep.subr.mxu0 0.0
    %429 = vmatpush1.xpose.msra.mxu0 0.0
    %430 = vmatprep.subr.mxu0 0.0
    %431 = vmatpush1.xpose.msra.mxu0 0.0
    %432 = vmatprep.subr.mxu0 0.0
    %433 = vmatpush1.xpose.msra.mxu0 0.0
    %434 = vmatprep.subr.mxu0 0.0
    %435 = vmatpush1.xpose.msra.mxu0 0.0
    %436 = vmatprep.subr.mxu0 0.0
    %437 = vmatpush1.xpose.msra.mxu0 0.0
    %438 = vmatprep.subr.mxu0 0.0
    %439 = vmatpush1.xpose.msra.mxu0 0.0
    %440 = vmatprep.subr.mxu0 0.0
    %441 = vmatpush1.xpose.msra.mxu0 0.0
    %442 = vmatprep.subr.mxu0 0.0
    %443 = vmatpush1.xpose.msra.mxu0 0.0
    %444 = vmatprep.subr.mxu0 0.0
    %445 = vmatpush1.xpose.msra.mxu0 0.0
    %446 = vmatprep.subr.mxu0 0.0
    %447 = vmatpush1.xpose.msra.mxu0 0.0
    %448 = vmatprep.subr.mxu0 0.0
    %449 = vmatpush1.xpose.msra.mxu0 0.0
    %450 = vmatprep.subr.mxu0 0.0
    %451 = vmatpush1.xpose.msra.mxu0 0.0
    %452 = vmatprep.subr.mxu0 0.0
    %453 = vmatpush1.xpose.msra.mxu0 0.0
    %454 = vmatprep.subr.mxu0 0.0
    %455 = vmatpush1.xpose.msra.mxu0 0.0
    %456 = vmatprep.subr.mxu0 0.0
    %457 = vmatpush1.xpose.msra.mxu0 0.0
    %458 = vmatprep.subr.mxu0 0.0
    %459 = vmatpush1.xpose.msra.mxu0 0.0
    %460 = vmatprep.subr.mxu0 0.0
    %461 = vmatpush1.xpose.msra.mxu0 0.0
    %462 = vmatprep.subr.mxu0 0.0
    %463 = vmatpush1.xpose.msra.mxu0 0.0
    %464 = vmatprep.mubr.f32.mxu0 0.0
    %465 = vmatmul.mubr.f32.gmra.mrb[0].mxu0 %v396
    %v466 = vpop.f32.mrb[0].mxu0
    %v467 = vadd.f32 0.0, %v466
    %v468 = vpop.f32.mrb[0].mxu0
    %469 = vdwg.mxu0
    %470 = vrot.lane.b32.xlu0 %v210, 64
    %v471 = vpop.permute.xlu0 %470
    %v472 = vsel %vm243, %v210, 0
    %v474 = vsel %vm243, %v471, 0
    %476 = vmatprep.subr.mxu0 0.0
    %477 = vmatpush1.xpose.msra.mxu0 %v474
    %478 = vmatprep.subr.mxu0 0.0
    %479 = vmatpush1.xpose.msra.mxu0 0.0
    %480 = vmatprep.subr.mxu0 0.0
    %481 = vmatpush1.xpose.msra.mxu0 0.0
    %482 = vmatprep.subr.mxu0 0.0
    %483 = vmatpush1.xpose.msra.mxu0 0.0
    %484 = vmatprep.subr.mxu0 0.0
    %485 = vmatpush1.xpose.msra.mxu0 0.0
    %486 = vmatprep.subr.mxu0 0.0
    %487 = vmatpush1.xpose.msra.mxu0 0.0
    %488 = vmatprep.subr.mxu0 0.0
    %489 = vmatpush1.xpose.msra.mxu0 0.0
    %490 = vmatprep.subr.mxu0 0.0
    %491 = vmatpush1.xpose.msra.mxu0 0.0
    %492 = vmatprep.subr.mxu0 0.0
    %493 = vmatpush1.xpose.msra.mxu0 0.0
    %494 = vmatprep.subr.mxu0 0.0
    %495 = vmatpush1.xpose.msra.mxu0 0.0
    %496 = vmatprep.subr.mxu0 0.0
    %497 = vmatpush1.xpose.msra.mxu0 0.0
    %498 = vmatprep.subr.mxu0 0.0
    %499 = vmatpush1.xpose.msra.mxu0 0.0
    %500 = vmatprep.subr.mxu0 0.0
    %501 = vmatpush1.xpose.msra.mxu0 0.0
    %502 = vmatprep.subr.mxu0 0.0
    %503 = vmatpush1.xpose.msra.mxu0 0.0
    %504 = vmatprep.subr.mxu0 0.0
    %505 = vmatpush1.xpose.msra.mxu0 0.0
    %506 = vmatprep.subr.mxu0 0.0
    %507 = vmatpush1.xpose.msra.mxu0 0.0
    %508 = vmatprep.subr.mxu0 0.0
    %509 = vmatpush1.xpose.msra.mxu0 0.0
    %510 = vmatprep.subr.mxu0 0.0
    %511 = vmatpush1.xpose.msra.mxu0 0.0
    %512 = vmatprep.subr.mxu0 0.0
    %513 = vmatpush1.xpose.msra.mxu0 0.0
    %514 = vmatprep.subr.mxu0 0.0
    %515 = vmatpush1.xpose.msra.mxu0 0.0
    %516 = vmatprep.subr.mxu0 0.0
    %517 = vmatpush1.xpose.msra.mxu0 0.0
    %518 = vmatprep.subr.mxu0 0.0
    %519 = vmatpush1.xpose.msra.mxu0 0.0
    %520 = vmatprep.subr.mxu0 0.0
    %521 = vmatpush1.xpose.msra.mxu0 0.0
    %522 = vmatprep.subr.mxu0 0.0
    %523 = vmatpush1.xpose.msra.mxu0 0.0
    %524 = vmatprep.subr.mxu0 0.0
    %525 = vmatpush1.xpose.msra.mxu0 0.0
    %526 = vmatprep.subr.mxu0 0.0
    %527 = vmatpush1.xpose.msra.mxu0 0.0
    %528 = vmatprep.subr.mxu0 0.0
    %529 = vmatpush1.xpose.msra.mxu0 0.0
    %530 = vmatprep.subr.mxu0 0.0
    %531 = vmatpush1.xpose.msra.mxu0 0.0
    %532 = vmatprep.subr.mxu0 0.0
    %533 = vmatpush1.xpose.msra.mxu0 0.0
    %534 = vmatprep.subr.mxu0 0.0
    %535 = vmatpush1.xpose.msra.mxu0 0.0
    %536 = vmatprep.subr.mxu0 0.0
    %537 = vmatpush1.xpose.msra.mxu0 0.0
    %538 = vmatprep.subr.mxu0 0.0
    %539 = vmatpush1.xpose.msra.mxu0 0.0
    %540 = vmatprep.mubr.f32.mxu0 0.0
    %541 = vmatmul.mubr.f32.gmra.mrb[0].mxu0 %v472
    %v542 = vpop.f32.mrb[0].mxu0
    %v543 = vadd.f32 0.0, %v542
    %v544 = vpop.f32.mrb[0].mxu0
    %545 = vdwg.mxu0
    %546 = vrot.lane.b32.xlu0 %v212, 64
    %v547 = vpop.permute.xlu0 %546
    %v548 = vsel %vm243, %v212, 0
    %v550 = vsel %vm243, %v547, 0
    %552 = vmatprep.subr.mxu0 0.0
    %553 = vmatpush1.xpose.msra.mxu0 %v550
    %554 = vmatprep.subr.mxu0 0.0
    %555 = vmatpush1.xpose.msra.mxu0 0.0
    %556 = vmatprep.subr.mxu0 0.0
    %557 = vmatpush1.xpose.msra.mxu0 0.0
    %558 = vmatprep.subr.mxu0 0.0
    %559 = vmatpush1.xpose.msra.mxu0 0.0
    %560 = vmatprep.subr.mxu0 0.0
    %561 = vmatpush1.xpose.msra.mxu0 0.0
    %562 = vmatprep.subr.mxu0 0.0
    %563 = vmatpush1.xpose.msra.mxu0 0.0
    %564 = vmatprep.subr.mxu0 0.0
    %565 = vmatpush1.xpose.msra.mxu0 0.0
    %566 = vmatprep.subr.mxu0 0.0
    %567 = vmatpush1.xpose.msra.mxu0 0.0
    %568 = vmatprep.subr.mxu0 0.0
    %569 = vmatpush1.xpose.msra.mxu0 0.0
    %570 = vmatprep.subr.mxu0 0.0
    %571 = vmatpush1.xpose.msra.mxu0 0.0
    %572 = vmatprep.subr.mxu0 0.0
    %573 = vmatpush1.xpose.msra.mxu0 0.0
    %574 = vmatprep.subr.mxu0 0.0
    %575 = vmatpush1.xpose.msra.mxu0 0.0
    %576 = vmatprep.subr.mxu0 0.0
    %577 = vmatpush1.xpose.msra.mxu0 0.0
    %578 = vmatprep.subr.mxu0 0.0
    %579 = vmatpush1.xpose.msra.mxu0 0.0
    %580 = vmatprep.subr.mxu0 0.0
    %581 = vmatpush1.xpose.msra.mxu0 0.0
    %582 = vmatprep.subr.mxu0 0.0
    %583 = vmatpush1.xpose.msra.mxu0 0.0
    %584 = vmatprep.subr.mxu0 0.0
    %585 = vmatpush1.xpose.msra.mxu0 0.0
    %586 = vmatprep.subr.mxu0 0.0
    %587 = vmatpush1.xpose.msra.mxu0 0.0
    %588 = vmatprep.subr.mxu0 0.0
    %589 = vmatpush1.xpose.msra.mxu0 0.0
    %590 = vmatprep.subr.mxu0 0.0
    %591 = vmatpush1.xpose.msra.mxu0 0.0
    %592 = vmatprep.subr.mxu0 0.0
    %593 = vmatpush1.xpose.msra.mxu0 0.0
    %594 = vmatprep.subr.mxu0 0.0
    %595 = vmatpush1.xpose.msra.mxu0 0.0
    %596 = vmatprep.subr.mxu0 0.0
    %597 = vmatpush1.xpose.msra.mxu0 0.0
    %598 = vmatprep.subr.mxu0 0.0
    %599 = vmatpush1.xpose.msra.mxu0 0.0
    %600 = vmatprep.subr.mxu0 0.0
    %601 = vmatpush1.xpose.msra.mxu0 0.0
    %602 = vmatprep.subr.mxu0 0.0
    %603 = vmatpush1.xpose.msra.mxu0 0.0
    %604 = vmatprep.subr.mxu0 0.0
    %605 = vmatpush1.xpose.msra.mxu0 0.0
    %606 = vmatprep.subr.mxu0 0.0
    %607 = vmatpush1.xpose.msra.mxu0 0.0
    %608 = vmatprep.subr.mxu0 0.0
    %609 = vmatpush1.xpose.msra.mxu0 0.0
    %610 = vmatprep.subr.mxu0 0.0
    %611 = vmatpush1.xpose.msra.mxu0 0.0
    %612 = vmatprep.subr.mxu0 0.0
    %613 = vmatpush1.xpose.msra.mxu0 0.0
    %614 = vmatprep.subr.mxu0 0.0
    %615 = vmatpush1.xpose.msra.mxu0 0.0
    %616 = vmatprep.mubr.f32.mxu0 0.0
    %617 = vmatmul.mubr.f32.gmra.mrb[0].mxu0 %v548
    %v618 = vpop.f32.mrb[0].mxu0
    %v619 = vadd.f32 0.0, %v618
    %v620 = vpop.f32.mrb[0].mxu0
    %621 = vdwg.mxu0
    %622 = vrot.lane.b32.xlu0 %v214, 64
    %v623 = vpop.permute.xlu0 %622
    %v624 = vsel %vm243, %v214, 0
    %v626 = vsel %vm243, %v623, 0
    %628 = vmatprep.subr.mxu0 0.0
    %629 = vmatpush1.xpose.msra.mxu0 %v626
    %630 = vmatprep.subr.mxu0 0.0
    %631 = vmatpush1.xpose.msra.mxu0 0.0
    %632 = vmatprep.subr.mxu0 0.0
    %633 = vmatpush1.xpose.msra.mxu0 0.0
    %634 = vmatprep.subr.mxu0 0.0
    %635 = vmatpush1.xpose.msra.mxu0 0.0
    %636 = vmatprep.subr.mxu0 0.0
    %637 = vmatpush1.xpose.msra.mxu0 0.0
    %638 = vmatprep.subr.mxu0 0.0
    %639 = vmatpush1.xpose.msra.mxu0 0.0
    %640 = vmatprep.subr.mxu0 0.0
    %641 = vmatpush1.xpose.msra.mxu0 0.0
    %642 = vmatprep.subr.mxu0 0.0
    %643 = vmatpush1.xpose.msra.mxu0 0.0
    %644 = vmatprep.subr.mxu0 0.0
    %645 = vmatpush1.xpose.msra.mxu0 0.0
    %646 = vmatprep.subr.mxu0 0.0
    %647 = vmatpush1.xpose.msra.mxu0 0.0
    %648 = vmatprep.subr.mxu0 0.0
    %649 = vmatpush1.xpose.msra.mxu0 0.0
    %650 = vmatprep.subr.mxu0 0.0
    %651 = vmatpush1.xpose.msra.mxu0 0.0
    %652 = vmatprep.subr.mxu0 0.0
    %653 = vmatpush1.xpose.msra.mxu0 0.0
    %654 = vmatprep.subr.mxu0 0.0
    %655 = vmatpush1.xpose.msra.mxu0 0.0
    %656 = vmatprep.subr.mxu0 0.0
    %657 = vmatpush1.xpose.msra.mxu0 0.0
    %658 = vmatprep.subr.mxu0 0.0
    %659 = vmatpush1.xpose.msra.mxu0 0.0
    %660 = vmatprep.subr.mxu0 0.0
    %661 = vmatpush1.xpose.msra.mxu0 0.0
    %662 = vmatprep.subr.mxu0 0.0
    %663 = vmatpush1.xpose.msra.mxu0 0.0
    %664 = vmatprep.subr.mxu0 0.0
    %665 = vmatpush1.xpose.msra.mxu0 0.0
    %666 = vmatprep.subr.mxu0 0.0
    %667 = vmatpush1.xpose.msra.mxu0 0.0
    %668 = vmatprep.subr.mxu0 0.0
    %669 = vmatpush1.xpose.msra.mxu0 0.0
    %670 = vmatprep.subr.mxu0 0.0
    %671 = vmatpush1.xpose.msra.mxu0 0.0
    %672 = vmatprep.subr.mxu0 0.0
    %673 = vmatpush1.xpose.msra.mxu0 0.0
    %674 = vmatprep.subr.mxu0 0.0
    %675 = vmatpush1.xpose.msra.mxu0 0.0
    %676 = vmatprep.subr.mxu0 0.0
    %677 = vmatpush1.xpose.msra.mxu0 0.0
    %678 = vmatprep.subr.mxu0 0.0
    %679 = vmatpush1.xpose.msra.mxu0 0.0
    %680 = vmatprep.subr.mxu0 0.0
    %681 = vmatpush1.xpose.msra.mxu0 0.0
    %682 = vmatprep.subr.mxu0 0.0
    %683 = vmatpush1.xpose.msra.mxu0 0.0
    %684 = vmatprep.subr.mxu0 0.0
    %685 = vmatpush1.xpose.msra.mxu0 0.0
    %686 = vmatprep.subr.mxu0 0.0
    %687 = vmatpush1.xpose.msra.mxu0 0.0
    %688 = vmatprep.subr.mxu0 0.0
    %689 = vmatpush1.xpose.msra.mxu0 0.0
    %690 = vmatprep.subr.mxu0 0.0
    %691 = vmatpush1.xpose.msra.mxu0 0.0
    %692 = vmatprep.mubr.f32.mxu0 0.0
    %693 = vmatmul.mubr.f32.gmra.mrb[0].mxu0 %v624
    %v694 = vpop.f32.mrb[0].mxu0
    %v695 = vadd.f32 0.0, %v694
    %v696 = vpop.f32.mrb[0].mxu0
    %697 = vdwg.mxu0
    %698 = vrot.lane.b32.xlu0 %v216, 64
    %v699 = vpop.permute.xlu0 %698
    %v700 = vsel %vm243, %v216, 0
    %v702 = vsel %vm243, %v699, 0
    %704 = vmatprep.subr.mxu0 0.0
    %705 = vmatpush1.xpose.msra.mxu0 %v702
    %706 = vmatprep.subr.mxu0 0.0
    %707 = vmatpush1.xpose.msra.mxu0 0.0
    %708 = vmatprep.subr.mxu0 0.0
    %709 = vmatpush1.xpose.msra.mxu0 0.0
    %710 = vmatprep.subr.mxu0 0.0
    %711 = vmatpush1.xpose.msra.mxu0 0.0
    %712 = vmatprep.subr.mxu0 0.0
    %713 = vmatpush1.xpose.msra.mxu0 0.0
    %714 = vmatprep.subr.mxu0 0.0
    %715 = vmatpush1.xpose.msra.mxu0 0.0
    %716 = vmatprep.subr.mxu0 0.0
    %717 = vmatpush1.xpose.msra.mxu0 0.0
    %718 = vmatprep.subr.mxu0 0.0
    %719 = vmatpush1.xpose.msra.mxu0 0.0
    %720 = vmatprep.subr.mxu0 0.0
    %721 = vmatpush1.xpose.msra.mxu0 0.0
    %722 = vmatprep.subr.mxu0 0.0
    %723 = vmatpush1.xpose.msra.mxu0 0.0
    %724 = vmatprep.subr.mxu0 0.0
    %725 = vmatpush1.xpose.msra.mxu0 0.0
    %726 = vmatprep.subr.mxu0 0.0
    %727 = vmatpush1.xpose.msra.mxu0 0.0
    %728 = vmatprep.subr.mxu0 0.0
    %729 = vmatpush1.xpose.msra.mxu0 0.0
    %730 = vmatprep.subr.mxu0 0.0
    %731 = vmatpush1.xpose.msra.mxu0 0.0
    %732 = vmatprep.subr.mxu0 0.0
    %733 = vmatpush1.xpose.msra.mxu0 0.0
    %734 = vmatprep.subr.mxu0 0.0
    %735 = vmatpush1.xpose.msra.mxu0 0.0
    %736 = vmatprep.subr.mxu0 0.0
    %737 = vmatpush1.xpose.msra.mxu0 0.0
    %738 = vmatprep.subr.mxu0 0.0
    %739 = vmatpush1.xpose.msra.mxu0 0.0
    %740 = vmatprep.subr.mxu0 0.0
    %741 = vmatpush1.xpose.msra.mxu0 0.0
    %742 = vmatprep.subr.mxu0 0.0
    %743 = vmatpush1.xpose.msra.mxu0 0.0
    %744 = vmatprep.subr.mxu0 0.0
    %745 = vmatpush1.xpose.msra.mxu0 0.0
    %746 = vmatprep.subr.mxu0 0.0
    %747 = vmatpush1.xpose.msra.mxu0 0.0
    %748 = vmatprep.subr.mxu0 0.0
    %749 = vmatpush1.xpose.msra.mxu0 0.0
    %750 = vmatprep.subr.mxu0 0.0
    %751 = vmatpush1.xpose.msra.mxu0 0.0
    %752 = vmatprep.subr.mxu0 0.0
    %753 = vmatpush1.xpose.msra.mxu0 0.0
    %754 = vmatprep.subr.mxu0 0.0
    %755 = vmatpush1.xpose.msra.mxu0 0.0
    %756 = vmatprep.subr.mxu0 0.0
    %757 = vmatpush1.xpose.msra.mxu0 0.0
    %758 = vmatprep.subr.mxu0 0.0
    %759 = vmatpush1.xpose.msra.mxu0 0.0
    %760 = vmatprep.subr.mxu0 0.0
    %761 = vmatpush1.xpose.msra.mxu0 0.0
    %762 = vmatprep.subr.mxu0 0.0
    %763 = vmatpush1.xpose.msra.mxu0 0.0
    %764 = vmatprep.subr.mxu0 0.0
    %765 = vmatpush1.xpose.msra.mxu0 0.0
    %766 = vmatprep.subr.mxu0 0.0
    %767 = vmatpush1.xpose.msra.mxu0 0.0
    %768 = vmatprep.mubr.f32.mxu0 0.0
    %769 = vmatmul.mubr.f32.gmra.mrb[0].mxu0 %v700
    %v770 = vpop.f32.mrb[0].mxu0
    %v771 = vadd.f32 0.0, %v770
    %v772 = vpop.f32.mrb[0].mxu0
    %773 = vdwg.mxu0
    %774 = vrot.lane.b32.xlu0 %v218, 64
    %v775 = vpop.permute.xlu0 %774
    %v776 = vsel %vm243, %v218, 0
    %v778 = vsel %vm243, %v775, 0
    %780 = vmatprep.subr.mxu0 0.0
    %781 = vmatpush1.xpose.msra.mxu0 %v778
    %782 = vmatprep.subr.mxu0 0.0
    %783 = vmatpush1.xpose.msra.mxu0 0.0
    %784 = vmatprep.subr.mxu0 0.0
    %785 = vmatpush1.xpose.msra.mxu0 0.0
    %786 = vmatprep.subr.mxu0 0.0
    %787 = vmatpush1.xpose.msra.mxu0 0.0
    %788 = vmatprep.subr.mxu0 0.0
    %789 = vmatpush1.xpose.msra.mxu0 0.0
    %790 = vmatprep.subr.mxu0 0.0
    %791 = vmatpush1.xpose.msra.mxu0 0.0
    %792 = vmatprep.subr.mxu0 0.0
    %793 = vmatpush1.xpose.msra.mxu0 0.0
    %794 = vmatprep.subr.mxu0 0.0
    %795 = vmatpush1.xpose.msra.mxu0 0.0
    %796 = vmatprep.subr.mxu0 0.0
    %797 = vmatpush1.xpose.msra.mxu0 0.0
    %798 = vmatprep.subr.mxu0 0.0
    %799 = vmatpush1.xpose.msra.mxu0 0.0
    %800 = vmatprep.subr.mxu0 0.0
    %801 = vmatpush1.xpose.msra.mxu0 0.0
    %802 = vmatprep.subr.mxu0 0.0
    %803 = vmatpush1.xpose.msra.mxu0 0.0
    %804 = vmatprep.subr.mxu0 0.0
    %805 = vmatpush1.xpose.msra.mxu0 0.0
    %806 = vmatprep.subr.mxu0 0.0
    %807 = vmatpush1.xpose.msra.mxu0 0.0
    %808 = vmatprep.subr.mxu0 0.0
    %809 = vmatpush1.xpose.msra.mxu0 0.0
    %810 = vmatprep.subr.mxu0 0.0
    %811 = vmatpush1.xpose.msra.mxu0 0.0
    %812 = vmatprep.subr.mxu0 0.0
    %813 = vmatpush1.xpose.msra.mxu0 0.0
    %814 = vmatprep.subr.mxu0 0.0
    %815 = vmatpush1.xpose.msra.mxu0 0.0
    %816 = vmatprep.subr.mxu0 0.0
    %817 = vmatpush1.xpose.msra.mxu0 0.0
    %818 = vmatprep.subr.mxu0 0.0
    %819 = vmatpush1.xpose.msra.mxu0 0.0
    %820 = vmatprep.subr.mxu0 0.0
    %821 = vmatpush1.xpose.msra.mxu0 0.0
    %822 = vmatprep.subr.mxu0 0.0
    %823 = vmatpush1.xpose.msra.mxu0 0.0
    %824 = vmatprep.subr.mxu0 0.0
    %825 = vmatpush1.xpose.msra.mxu0 0.0
    %826 = vmatprep.subr.mxu0 0.0
    %827 = vmatpush1.xpose.msra.mxu0 0.0
    %828 = vmatprep.subr.mxu0 0.0
    %829 = vmatpush1.xpose.msra.mxu0 0.0
    %830 = vmatprep.subr.mxu0 0.0
    %831 = vmatpush1.xpose.msra.mxu0 0.0
    %832 = vmatprep.subr.mxu0 0.0
    %833 = vmatpush1.xpose.msra.mxu0 0.0
    %834 = vmatprep.subr.mxu0 0.0
    %835 = vmatpush1.xpose.msra.mxu0 0.0
    %836 = vmatprep.subr.mxu0 0.0
    %837 = vmatpush1.xpose.msra.mxu0 0.0
    %838 = vmatprep.subr.mxu0 0.0
    %839 = vmatpush1.xpose.msra.mxu0 0.0
    %840 = vmatprep.subr.mxu0 0.0
    %841 = vmatpush1.xpose.msra.mxu0 0.0
    %842 = vmatprep.subr.mxu0 0.0
    %843 = vmatpush1.xpose.msra.mxu0 0.0
    %844 = vmatprep.mubr.f32.mxu0 0.0
    %845 = vmatmul.mubr.f32.gmra.mrb[0].mxu0 %v776
    %v846 = vpop.f32.mrb[0].mxu0
    %v847 = vadd.f32 0.0, %v846
    %v848 = vpop.f32.mrb[0].mxu0
    %849 = vdwg.mxu0
    %v850 = vmul.f32 %v315, 0.35355338
    %v851 = vmul.f32 %v391, 0.35355338
    %v852 = vmul.f32 %v467, 0.35355338
    %v853 = vmul.f32 %v543, 0.35355338
    %v854 = vmul.f32 %v619, 0.35355338
    %v855 = vmul.f32 %v695, 0.35355338
    %v856 = vmul.f32 %v771, 0.35355338
    %v857 = vmul.f32 %v847, 0.35355338
    %v858 = vsel %vm243, %v850, -inf
    %859 = vmax.xlane.f32.xlu0 %v858
    %v860 = vpop.xlane.xlu0 %859
    %v861 = vsel %vm243, %v851, -inf
    %862 = vmax.xlane.f32.xlu0 %v861
    %v863 = vpop.xlane.xlu0 %862
    %v864 = vsel %vm243, %v852, -inf
    %865 = vmax.xlane.f32.xlu0 %v864
    %v866 = vpop.xlane.xlu0 %865
    %v867 = vsel %vm243, %v853, -inf
    %868 = vmax.xlane.f32.xlu0 %v867
    %v869 = vpop.xlane.xlu0 %868
    %v870 = vsel %vm243, %v854, -inf
    %871 = vmax.xlane.f32.xlu0 %v870
    %v872 = vpop.xlane.xlu0 %871
    %v873 = vsel %vm243, %v855, -inf
    %874 = vmax.xlane.f32.xlu0 %v873
    %v875 = vpop.xlane.xlu0 %874
    %v876 = vsel %vm243, %v856, -inf
    %877 = vmax.xlane.f32.xlu0 %v876
    %v878 = vpop.xlane.xlu0 %877
    %v879 = vsel %vm243, %v857, -inf
    %880 = vmax.xlane.f32.xlu0 %v879
    %v881 = vpop.xlane.xlu0 %880
    %v882 = vsub.f32 %v850, %v860
    %v883 = vsub.f32 %v851, %v863
    %v884 = vsub.f32 %v852, %v866
    %v885 = vsub.f32 %v853, %v869
    %v886 = vsub.f32 %v854, %v872
    %v887 = vsub.f32 %v855, %v875
    %v888 = vsub.f32 %v856, %v878
    %v889 = vsub.f32 %v857, %v881
    %v890 = vmul.f32 %v882, 1.442695
    %v891 = vpow.pop %v890
    %v892 = vmul.f32 %v883, 1.442695
    %v893 = vpow.pop %v892
    %v894 = vmul.f32 %v884, 1.442695
    %v895 = vpow.pop %v894
    %v896 = vmul.f32 %v885, 1.442695
    %v897 = vpow.pop %v896
    %v898 = vmul.f32 %v886, 1.442695
    %v899 = vpow.pop %v898
    %v900 = vmul.f32 %v887, 1.442695
    %v901 = vpow.pop %v900
    %v902 = vmul.f32 %v888, 1.442695
    %v903 = vpow.pop %v902
    %v904 = vmul.f32 %v889, 1.442695
    %v905 = vpow.pop %v904
    %v906 = vsel %vm243, %v891, 0.0
    %907 = vadd.xlane.f32.xlu0 %v906
    %v908 = vpop.xlane.xlu0 %907
    %v909 = vsel %vm243, %v893, 0.0
    %910 = vadd.xlane.f32.xlu0 %v909
    %v911 = vpop.xlane.xlu0 %910
    %v912 = vsel %vm243, %v895, 0.0
    %913 = vadd.xlane.f32.xlu0 %v912
    %v914 = vpop.xlane.xlu0 %913
    %v915 = vsel %vm243, %v897, 0.0
    %916 = vadd.xlane.f32.xlu0 %v915
    %v917 = vpop.xlane.xlu0 %916
    %v918 = vsel %vm243, %v899, 0.0
    %919 = vadd.xlane.f32.xlu0 %v918
    %v920 = vpop.xlane.xlu0 %919
    %v921 = vsel %vm243, %v901, 0.0
    %922 = vadd.xlane.f32.xlu0 %v921
    %v923 = vpop.xlane.xlu0 %922
    %v924 = vsel %vm243, %v903, 0.0
    %925 = vadd.xlane.f32.xlu0 %v924
    %v926 = vpop.xlane.xlu0 %925
    %v927 = vsel %vm243, %v905, 0.0
    %928 = vadd.xlane.f32.xlu0 %v927
    %v929 = vpop.xlane.xlu0 %928
    %v930 = vrcp.pop %v908
    %v931 = vmul.f32 %v891, %v930
    %v932 = vrcp.pop %v911
    %v933 = vmul.f32 %v893, %v932
    %v934 = vrcp.pop %v914
    %v935 = vmul.f32 %v895, %v934
    %v936 = vrcp.pop %v917
    %v937 = vmul.f32 %v897, %v936
    %v938 = vrcp.pop %v920
    %v939 = vmul.f32 %v899, %v938
    %v940 = vrcp.pop %v923
    %v941 = vmul.f32 %v901, %v940
    %v942 = vrcp.pop %v926
    %v943 = vmul.f32 %v903, %v942
    %v944 = vrcp.pop %v929
    %v945 = vmul.f32 %v905, %v944
    %v947 = vsel %vm243, %v931, 0
    %949 = vmatprep.subr.mxu0 0.0
    %950 = vmatpush1.msra.mxu0 %v196
    %951 = vmatprep.subr.mxu0 0.0
    %952 = vmatpush1.msra.mxu0 0.0
    %953 = vmatprep.subr.mxu0 0.0
    %954 = vmatpush1.msra.mxu0 0.0
    %955 = vmatprep.subr.mxu0 0.0
    %956 = vmatpush1.msra.mxu0 0.0
    %957 = vmatprep.subr.mxu0 0.0
    %958 = vmatpush1.msra.mxu0 0.0
    %959 = vmatprep.subr.mxu0 0.0
    %960 = vmatpush1.msra.mxu0 0.0
    %961 = vmatprep.subr.mxu0 0.0
    %962 = vmatpush1.msra.mxu0 0.0
    %963 = vmatprep.subr.mxu0 0.0
    %964 = vmatpush1.msra.mxu0 0.0
    %965 = vmatprep.subr.mxu0 0.0
    %966 = vmatpush1.msra.mxu0 0.0
    %967 = vmatprep.subr.mxu0 0.0
    %968 = vmatpush1.msra.mxu0 0.0
    %969 = vmatprep.subr.mxu0 0.0
    %970 = vmatpush1.msra.mxu0 0.0
    %971 = vmatprep.subr.mxu0 0.0
    %972 = vmatpush1.msra.mxu0 0.0
    %973 = vmatprep.subr.mxu0 0.0
    %974 = vmatpush1.msra.mxu0 0.0
    %975 = vmatprep.subr.mxu0 0.0
    %976 = vmatpush1.msra.mxu0 0.0
    %977 = vmatprep.subr.mxu0 0.0
    %978 = vmatpush1.msra.mxu0 0.0
    %979 = vmatprep.subr.mxu0 0.0
    %980 = vmatpush1.msra.mxu0 0.0
    %981 = vmatprep.subr.mxu0 0.0
    %982 = vmatpush1.msra.mxu0 0.0
    %983 = vmatprep.subr.mxu0 0.0
    %984 = vmatpush1.msra.mxu0 0.0
    %985 = vmatprep.subr.mxu0 0.0
    %986 = vmatpush1.msra.mxu0 0.0
    %987 = vmatprep.subr.mxu0 0.0
    %988 = vmatpush1.msra.mxu0 0.0
    %989 = vmatprep.subr.mxu0 0.0
    %990 = vmatpush1.msra.mxu0 0.0
    %991 = vmatprep.subr.mxu0 0.0
    %992 = vmatpush1.msra.mxu0 0.0
    %993 = vmatprep.subr.mxu0 0.0
    %994 = vmatpush1.msra.mxu0 0.0
    %995 = vmatprep.subr.mxu0 0.0
    %996 = vmatpush1.msra.mxu0 0.0
    %997 = vmatprep.subr.mxu0 0.0
    %998 = vmatpush1.msra.mxu0 0.0
    %999 = vmatprep.subr.mxu0 0.0
    %1000 = vmatpush1.msra.mxu0 0.0
    %1001 = vmatprep.subr.mxu0 0.0
    %1002 = vmatpush1.msra.mxu0 0.0
    %1003 = vmatprep.subr.mxu0 0.0
    %1004 = vmatpush1.msra.mxu0 0.0
    %1005 = vmatprep.subr.mxu0 0.0
    %1006 = vmatpush1.msra.mxu0 0.0
    %1007 = vmatprep.subr.mxu0 0.0
    %1008 = vmatpush1.msra.mxu0 0.0
    %1009 = vmatprep.subr.mxu0 0.0
    %1010 = vmatpush1.msra.mxu0 0.0
    %1011 = vmatprep.subr.mxu0 0.0
    %1012 = vmatpush1.msra.mxu0 0.0
    %1013 = vmatprep.mubr.f32.mxu0 0.0
    %1014 = vmatmul.mubr.f32.gmra.mrb[0].mxu0 %v947
    %v1015 = vpop.f32.mrb[0].mxu0
    %v1016 = vadd.f32 0.0, %v1015
    %v1017 = vpop.f32.mrb[0].mxu0
    %1018 = vdwg.mxu0
    %v1020 = vsel %vm243, %v933, 0
    %1022 = vmatprep.subr.mxu0 0.0
    %1023 = vmatpush1.msra.mxu0 %v221
    %1024 = vmatprep.subr.mxu0 0.0
    %1025 = vmatpush1.msra.mxu0 0.0
    %1026 = vmatprep.subr.mxu0 0.0
    %1027 = vmatpush1.msra.mxu0 0.0
    %1028 = vmatprep.subr.mxu0 0.0
    %1029 = vmatpush1.msra.mxu0 0.0
    %1030 = vmatprep.subr.mxu0 0.0
    %1031 = vmatpush1.msra.mxu0 0.0
    %1032 = vmatprep.subr.mxu0 0.0
    %1033 = vmatpush1.msra.mxu0 0.0
    %1034 = vmatprep.subr.mxu0 0.0
    %1035 = vmatpush1.msra.mxu0 0.0
    %1036 = vmatprep.subr.mxu0 0.0
    %1037 = vmatpush1.msra.mxu0 0.0
    %1038 = vmatprep.subr.mxu0 0.0
    %1039 = vmatpush1.msra.mxu0 0.0
    %1040 = vmatprep.subr.mxu0 0.0
    %1041 = vmatpush1.msra.mxu0 0.0
    %1042 = vmatprep.subr.mxu0 0.0
    %1043 = vmatpush1.msra.mxu0 0.0
    %1044 = vmatprep.subr.mxu0 0.0
    %1045 = vmatpush1.msra.mxu0 0.0
    %1046 = vmatprep.subr.mxu0 0.0
    %1047 = vmatpush1.msra.mxu0 0.0
    %1048 = vmatprep.subr.mxu0 0.0
    %1049 = vmatpush1.msra.mxu0 0.0
    %1050 = vmatprep.subr.mxu0 0.0
    %1051 = vmatpush1.msra.mxu0 0.0
    %1052 = vmatprep.subr.mxu0 0.0
    %1053 = vmatpush1.msra.mxu0 0.0
    %1054 = vmatprep.subr.mxu0 0.0
    %1055 = vmatpush1.msra.mxu0 0.0
    %1056 = vmatprep.subr.mxu0 0.0
    %1057 = vmatpush1.msra.mxu0 0.0
    %1058 = vmatprep.subr.mxu0 0.0
    %1059 = vmatpush1.msra.mxu0 0.0
    %1060 = vmatprep.subr.mxu0 0.0
    %1061 = vmatpush1.msra.mxu0 0.0
    %1062 = vmatprep.subr.mxu0 0.0
    %1063 = vmatpush1.msra.mxu0 0.0
    %1064 = vmatprep.subr.mxu0 0.0
    %1065 = vmatpush1.msra.mxu0 0.0
    %1066 = vmatprep.subr.mxu0 0.0
    %1067 = vmatpush1.msra.mxu0 0.0
    %1068 = vmatprep.subr.mxu0 0.0
    %1069 = vmatpush1.msra.mxu0 0.0
    %1070 = vmatprep.subr.mxu0 0.0
    %1071 = vmatpush1.msra.mxu0 0.0
    %1072 = vmatprep.subr.mxu0 0.0
    %1073 = vmatpush1.msra.mxu0 0.0
    %1074 = vmatprep.subr.mxu0 0.0
    %1075 = vmatpush1.msra.mxu0 0.0
    %1076 = vmatprep.subr.mxu0 0.0
    %1077 = vmatpush1.msra.mxu0 0.0
    %1078 = vmatprep.subr.mxu0 0.0
    %1079 = vmatpush1.msra.mxu0 0.0
    %1080 = vmatprep.subr.mxu0 0.0
    %1081 = vmatpush1.msra.mxu0 0.0
    %1082 = vmatprep.subr.mxu0 0.0
    %1083 = vmatpush1.msra.mxu0 0.0
    %1084 = vmatprep.subr.mxu0 0.0
    %1085 = vmatpush1.msra.mxu0 0.0
    %1086 = vmatprep.mubr.f32.mxu0 0.0
    %1087 = vmatmul.mubr.f32.gmra.mrb[0].mxu0 %v1020
    %v1088 = vpop.f32.mrb[0].mxu0
    %v1089 = vadd.f32 0.0, %v1088
    %v1090 = vpop.f32.mrb[0].mxu0
    %1091 = vdwg.mxu0
    %v1093 = vsel %vm243, %v935, 0
    %1095 = vmatprep.subr.mxu0 0.0
    %1096 = vmatpush1.msra.mxu0 %v224
    %1097 = vmatprep.subr.mxu0 0.0
    %1098 = vmatpush1.msra.mxu0 0.0
    %1099 = vmatprep.subr.mxu0 0.0
    %1100 = vmatpush1.msra.mxu0 0.0
    %1101 = vmatprep.subr.mxu0 0.0
    %1102 = vmatpush1.msra.mxu0 0.0
    %1103 = vmatprep.subr.mxu0 0.0
    %1104 = vmatpush1.msra.mxu0 0.0
    %1105 = vmatprep.subr.mxu0 0.0
    %1106 = vmatpush1.msra.mxu0 0.0
    %1107 = vmatprep.subr.mxu0 0.0
    %1108 = vmatpush1.msra.mxu0 0.0
    %1109 = vmatprep.subr.mxu0 0.0
    %1110 = vmatpush1.msra.mxu0 0.0
    %1111 = vmatprep.subr.mxu0 0.0
    %1112 = vmatpush1.msra.mxu0 0.0
    %1113 = vmatprep.subr.mxu0 0.0
    %1114 = vmatpush1.msra.mxu0 0.0
    %1115 = vmatprep.subr.mxu0 0.0
    %1116 = vmatpush1.msra.mxu0 0.0
    %1117 = vmatprep.subr.mxu0 0.0
    %1118 = vmatpush1.msra.mxu0 0.0
    %1119 = vmatprep.subr.mxu0 0.0
    %1120 = vmatpush1.msra.mxu0 0.0
    %1121 = vmatprep.subr.mxu0 0.0
    %1122 = vmatpush1.msra.mxu0 0.0
    %1123 = vmatprep.subr.mxu0 0.0
    %1124 = vmatpush1.msra.mxu0 0.0
    %1125 = vmatprep.subr.mxu0 0.0
    %1126 = vmatpush1.msra.mxu0 0.0
    %1127 = vmatprep.subr.mxu0 0.0
    %1128 = vmatpush1.msra.mxu0 0.0
    %1129 = vmatprep.subr.mxu0 0.0
    %1130 = vmatpush1.msra.mxu0 0.0
    %1131 = vmatprep.subr.mxu0 0.0
    %1132 = vmatpush1.msra.mxu0 0.0
    %1133 = vmatprep.subr.mxu0 0.0
    %1134 = vmatpush1.msra.mxu0 0.0
    %1135 = vmatprep.subr.mxu0 0.0
    %1136 = vmatpush1.msra.mxu0 0.0
    %1137 = vmatprep.subr.mxu0 0.0
    %1138 = vmatpush1.msra.mxu0 0.0
    %1139 = vmatprep.subr.mxu0 0.0
    %1140 = vmatpush1.msra.mxu0 0.0
    %1141 = vmatprep.subr.mxu0 0.0
    %1142 = vmatpush1.msra.mxu0 0.0
    %1143 = vmatprep.subr.mxu0 0.0
    %1144 = vmatpush1.msra.mxu0 0.0
    %1145 = vmatprep.subr.mxu0 0.0
    %1146 = vmatpush1.msra.mxu0 0.0
    %1147 = vmatprep.subr.mxu0 0.0
    %1148 = vmatpush1.msra.mxu0 0.0
    %1149 = vmatprep.subr.mxu0 0.0
    %1150 = vmatpush1.msra.mxu0 0.0
    %1151 = vmatprep.subr.mxu0 0.0
    %1152 = vmatpush1.msra.mxu0 0.0
    %1153 = vmatprep.subr.mxu0 0.0
    %1154 = vmatpush1.msra.mxu0 0.0
    %1155 = vmatprep.subr.mxu0 0.0
    %1156 = vmatpush1.msra.mxu0 0.0
    %1157 = vmatprep.subr.mxu0 0.0
    %1158 = vmatpush1.msra.mxu0 0.0
    %1159 = vmatprep.mubr.f32.mxu0 0.0
    %1160 = vmatmul.mubr.f32.gmra.mrb[0].mxu0 %v1093
    %v1161 = vpop.f32.mrb[0].mxu0
    %v1162 = vadd.f32 0.0, %v1161
    %v1163 = vpop.f32.mrb[0].mxu0
    %1164 = vdwg.mxu0
    %v1166 = vsel %vm243, %v937, 0
    %1168 = vmatprep.subr.mxu0 0.0
    %1169 = vmatpush1.msra.mxu0 %v227
    %1170 = vmatprep.subr.mxu0 0.0
    %1171 = vmatpush1.msra.mxu0 0.0
    %1172 = vmatprep.subr.mxu0 0.0
    %1173 = vmatpush1.msra.mxu0 0.0
    %1174 = vmatprep.subr.mxu0 0.0
    %1175 = vmatpush1.msra.mxu0 0.0
    %1176 = vmatprep.subr.mxu0 0.0
    %1177 = vmatpush1.msra.mxu0 0.0
    %1178 = vmatprep.subr.mxu0 0.0
    %1179 = vmatpush1.msra.mxu0 0.0
    %1180 = vmatprep.subr.mxu0 0.0
    %1181 = vmatpush1.msra.mxu0 0.0
    %1182 = vmatprep.subr.mxu0 0.0
    %1183 = vmatpush1.msra.mxu0 0.0
    %1184 = vmatprep.subr.mxu0 0.0
    %1185 = vmatpush1.msra.mxu0 0.0
    %1186 = vmatprep.subr.mxu0 0.0
    %1187 = vmatpush1.msra.mxu0 0.0
    %1188 = vmatprep.subr.mxu0 0.0
    %1189 = vmatpush1.msra.mxu0 0.0
    %1190 = vmatprep.subr.mxu0 0.0
    %1191 = vmatpush1.msra.mxu0 0.0
    %1192 = vmatprep.subr.mxu0 0.0
    %1193 = vmatpush1.msra.mxu0 0.0
    %1194 = vmatprep.subr.mxu0 0.0
    %1195 = vmatpush1.msra.mxu0 0.0
    %1196 = vmatprep.subr.mxu0 0.0
    %1197 = vmatpush1.msra.mxu0 0.0
    %1198 = vmatprep.subr.mxu0 0.0
    %1199 = vmatpush1.msra.mxu0 0.0
    %1200 = vmatprep.subr.mxu0 0.0
    %1201 = vmatpush1.msra.mxu0 0.0
    %1202 = vmatprep.subr.mxu0 0.0
    %1203 = vmatpush1.msra.mxu0 0.0
    %1204 = vmatprep.subr.mxu0 0.0
    %1205 = vmatpush1.msra.mxu0 0.0
    %1206 = vmatprep.subr.mxu0 0.0
    %1207 = vmatpush1.msra.mxu0 0.0
    %1208 = vmatprep.subr.mxu0 0.0
    %1209 = vmatpush1.msra.mxu0 0.0
    %1210 = vmatprep.subr.mxu0 0.0
    %1211 = vmatpush1.msra.mxu0 0.0
    %1212 = vmatprep.subr.mxu0 0.0
    %1213 = vmatpush1.msra.mxu0 0.0
    %1214 = vmatprep.subr.mxu0 0.0
    %1215 = vmatpush1.msra.mxu0 0.0
    %1216 = vmatprep.subr.mxu0 0.0
    %1217 = vmatpush1.msra.mxu0 0.0
    %1218 = vmatprep.subr.mxu0 0.0
    %1219 = vmatpush1.msra.mxu0 0.0
    %1220 = vmatprep.subr.mxu0 0.0
    %1221 = vmatpush1.msra.mxu0 0.0
    %1222 = vmatprep.subr.mxu0 0.0
    %1223 = vmatpush1.msra.mxu0 0.0
    %1224 = vmatprep.subr.mxu0 0.0
    %1225 = vmatpush1.msra.mxu0 0.0
    %1226 = vmatprep.subr.mxu0 0.0
    %1227 = vmatpush1.msra.mxu0 0.0
    %1228 = vmatprep.subr.mxu0 0.0
    %1229 = vmatpush1.msra.mxu0 0.0
    %1230 = vmatprep.subr.mxu0 0.0
    %1231 = vmatpush1.msra.mxu0 0.0
    %1232 = vmatprep.mubr.f32.mxu0 0.0
    %1233 = vmatmul.mubr.f32.gmra.mrb[0].mxu0 %v1166
    %v1234 = vpop.f32.mrb[0].mxu0
    %v1235 = vadd.f32 0.0, %v1234
    %v1236 = vpop.f32.mrb[0].mxu0
    %1237 = vdwg.mxu0
    %v1239 = vsel %vm243, %v939, 0
    %1241 = vmatprep.subr.mxu0 0.0
    %1242 = vmatpush1.msra.mxu0 %v230
    %1243 = vmatprep.subr.mxu0 0.0
    %1244 = vmatpush1.msra.mxu0 0.0
    %1245 = vmatprep.subr.mxu0 0.0
    %1246 = vmatpush1.msra.mxu0 0.0
    %1247 = vmatprep.subr.mxu0 0.0
    %1248 = vmatpush1.msra.mxu0 0.0
    %1249 = vmatprep.subr.mxu0 0.0
    %1250 = vmatpush1.msra.mxu0 0.0
    %1251 = vmatprep.subr.mxu0 0.0
    %1252 = vmatpush1.msra.mxu0 0.0
    %1253 = vmatprep.subr.mxu0 0.0
    %1254 = vmatpush1.msra.mxu0 0.0
    %1255 = vmatprep.subr.mxu0 0.0
    %1256 = vmatpush1.msra.mxu0 0.0
    %1257 = vmatprep.subr.mxu0 0.0
    %1258 = vmatpush1.msra.mxu0 0.0
    %1259 = vmatprep.subr.mxu0 0.0
    %1260 = vmatpush1.msra.mxu0 0.0
    %1261 = vmatprep.subr.mxu0 0.0
    %1262 = vmatpush1.msra.mxu0 0.0
    %1263 = vmatprep.subr.mxu0 0.0
    %1264 = vmatpush1.msra.mxu0 0.0
    %1265 = vmatprep.subr.mxu0 0.0
    %1266 = vmatpush1.msra.mxu0 0.0
    %1267 = vmatprep.subr.mxu0 0.0
    %1268 = vmatpush1.msra.mxu0 0.0
    %1269 = vmatprep.subr.mxu0 0.0
    %1270 = vmatpush1.msra.mxu0 0.0
    %1271 = vmatprep.subr.mxu0 0.0
    %1272 = vmatpush1.msra.mxu0 0.0
    %1273 = vmatprep.subr.mxu0 0.0
    %1274 = vmatpush1.msra.mxu0 0.0
    %1275 = vmatprep.subr.mxu0 0.0
    %1276 = vmatpush1.msra.mxu0 0.0
    %1277 = vmatprep.subr.mxu0 0.0
    %1278 = vmatpush1.msra.mxu0 0.0
    %1279 = vmatprep.subr.mxu0 0.0
    %1280 = vmatpush1.msra.mxu0 0.0
    %1281 = vmatprep.subr.mxu0 0.0
    %1282 = vmatpush1.msra.mxu0 0.0
    %1283 = vmatprep.subr.mxu0 0.0
    %1284 = vmatpush1.msra.mxu0 0.0
    %1285 = vmatprep.subr.mxu0 0.0
    %1286 = vmatpush1.msra.mxu0 0.0
    %1287 = vmatprep.subr.mxu0 0.0
    %1288 = vmatpush1.msra.mxu0 0.0
    %1289 = vmatprep.subr.mxu0 0.0
    %1290 = vmatpush1.msra.mxu0 0.0
    %1291 = vmatprep.subr.mxu0 0.0
    %1292 = vmatpush1.msra.mxu0 0.0
    %1293 = vmatprep.subr.mxu0 0.0
    %1294 = vmatpush1.msra.mxu0 0.0
    %1295 = vmatprep.subr.mxu0 0.0
    %1296 = vmatpush1.msra.mxu0 0.0
    %1297 = vmatprep.subr.mxu0 0.0
    %1298 = vmatpush1.msra.mxu0 0.0
    %1299 = vmatprep.subr.mxu0 0.0
    %1300 = vmatpush1.msra.mxu0 0.0
    %1301 = vmatprep.subr.mxu0 0.0
    %1302 = vmatpush1.msra.mxu0 0.0
    %1303 = vmatprep.subr.mxu0 0.0
    %1304 = vmatpush1.msra.mxu0 0.0
    %1305 = vmatprep.mubr.f32.mxu0 0.0
    %1306 = vmatmul.mubr.f32.gmra.mrb[0].mxu0 %v1239
    %v1307 = vpop.f32.mrb[0].mxu0
    %v1308 = vadd.f32 0.0, %v1307
    %v1309 = vpop.f32.mrb[0].mxu0
    %1310 = vdwg.mxu0
    %v1312 = vsel %vm243, %v941, 0
    %1314 = vmatprep.subr.mxu0 0.0
    %1315 = vmatpush1.msra.mxu0 %v233
    %1316 = vmatprep.subr.mxu0 0.0
    %1317 = vmatpush1.msra.mxu0 0.0
    %1318 = vmatprep.subr.mxu0 0.0
    %1319 = vmatpush1.msra.mxu0 0.0
    %1320 = vmatprep.subr.mxu0 0.0
    %1321 = vmatpush1.msra.mxu0 0.0
    %1322 = vmatprep.subr.mxu0 0.0
    %1323 = vmatpush1.msra.mxu0 0.0
    %1324 = vmatprep.subr.mxu0 0.0
    %1325 = vmatpush1.msra.mxu0 0.0
    %1326 = vmatprep.subr.mxu0 0.0
    %1327 = vmatpush1.msra.mxu0 0.0
    %1328 = vmatprep.subr.mxu0 0.0
    %1329 = vmatpush1.msra.mxu0 0.0
    %1330 = vmatprep.subr.mxu0 0.0
    %1331 = vmatpush1.msra.mxu0 0.0
    %1332 = vmatprep.subr.mxu0 0.0
    %1333 = vmatpush1.msra.mxu0 0.0
    %1334 = vmatprep.subr.mxu0 0.0
    %1335 = vmatpush1.msra.mxu0 0.0
    %1336 = vmatprep.subr.mxu0 0.0
    %1337 = vmatpush1.msra.mxu0 0.0
    %1338 = vmatprep.subr.mxu0 0.0
    %1339 = vmatpush1.msra.mxu0 0.0
    %1340 = vmatprep.subr.mxu0 0.0
    %1341 = vmatpush1.msra.mxu0 0.0
    %1342 = vmatprep.subr.mxu0 0.0
    %1343 = vmatpush1.msra.mxu0 0.0
    %1344 = vmatprep.subr.mxu0 0.0
    %1345 = vmatpush1.msra.mxu0 0.0
    %1346 = vmatprep.subr.mxu0 0.0
    %1347 = vmatpush1.msra.mxu0 0.0
    %1348 = vmatprep.subr.mxu0 0.0
    %1349 = vmatpush1.msra.mxu0 0.0
    %1350 = vmatprep.subr.mxu0 0.0
    %1351 = vmatpush1.msra.mxu0 0.0
    %1352 = vmatprep.subr.mxu0 0.0
    %1353 = vmatpush1.msra.mxu0 0.0
    %1354 = vmatprep.subr.mxu0 0.0
    %1355 = vmatpush1.msra.mxu0 0.0
    %1356 = vmatprep.subr.mxu0 0.0
    %1357 = vmatpush1.msra.mxu0 0.0
    %1358 = vmatprep.subr.mxu0 0.0
    %1359 = vmatpush1.msra.mxu0 0.0
    %1360 = vmatprep.subr.mxu0 0.0
    %1361 = vmatpush1.msra.mxu0 0.0
    %1362 = vmatprep.subr.mxu0 0.0
    %1363 = vmatpush1.msra.mxu0 0.0
    %1364 = vmatprep.subr.mxu0 0.0
    %1365 = vmatpush1.msra.mxu0 0.0
    %1366 = vmatprep.subr.mxu0 0.0
    %1367 = vmatpush1.msra.mxu0 0.0
    %1368 = vmatprep.subr.mxu0 0.0
    %1369 = vmatpush1.msra.mxu0 0.0
    %1370 = vmatprep.subr.mxu0 0.0
    %1371 = vmatpush1.msra.mxu0 0.0
    %1372 = vmatprep.subr.mxu0 0.0
    %1373 = vmatpush1.msra.mxu0 0.0
    %1374 = vmatprep.subr.mxu0 0.0
    %1375 = vmatpush1.msra.mxu0 0.0
    %1376 = vmatprep.subr.mxu0 0.0
    %1377 = vmatpush1.msra.mxu0 0.0
    %1378 = vmatprep.mubr.f32.mxu0 0.0
    %1379 = vmatmul.mubr.f32.gmra.mrb[0].mxu0 %v1312
    %v1380 = vpop.f32.mrb[0].mxu0
    %v1381 = vadd.f32 0.0, %v1380
    %v1382 = vpop.f32.mrb[0].mxu0
    %1383 = vdwg.mxu0
    %v1385 = vsel %vm243, %v943, 0
    %1387 = vmatprep.subr.mxu0 0.0
    %1388 = vmatpush1.msra.mxu0 %v236
    %1389 = vmatprep.subr.mxu0 0.0
    %1390 = vmatpush1.msra.mxu0 0.0
    %1391 = vmatprep.subr.mxu0 0.0
    %1392 = vmatpush1.msra.mxu0 0.0
    %1393 = vmatprep.subr.mxu0 0.0
    %1394 = vmatpush1.msra.mxu0 0.0
    %1395 = vmatprep.subr.mxu0 0.0
    %1396 = vmatpush1.msra.mxu0 0.0
    %1397 = vmatprep.subr.mxu0 0.0
    %1398 = vmatpush1.msra.mxu0 0.0
    %1399 = vmatprep.subr.mxu0 0.0
    %1400 = vmatpush1.msra.mxu0 0.0
    %1401 = vmatprep.subr.mxu0 0.0
    %1402 = vmatpush1.msra.mxu0 0.0
    %1403 = vmatprep.subr.mxu0 0.0
    %1404 = vmatpush1.msra.mxu0 0.0
    %1405 = vmatprep.subr.mxu0 0.0
    %1406 = vmatpush1.msra.mxu0 0.0
    %1407 = vmatprep.subr.mxu0 0.0
    %1408 = vmatpush1.msra.mxu0 0.0
    %1409 = vmatprep.subr.mxu0 0.0
    %1410 = vmatpush1.msra.mxu0 0.0
    %1411 = vmatprep.subr.mxu0 0.0
    %1412 = vmatpush1.msra.mxu0 0.0
    %1413 = vmatprep.subr.mxu0 0.0
    %1414 = vmatpush1.msra.mxu0 0.0
    %1415 = vmatprep.subr.mxu0 0.0
    %1416 = vmatpush1.msra.mxu0 0.0
    %1417 = vmatprep.subr.mxu0 0.0
    %1418 = vmatpush1.msra.mxu0 0.0
    %1419 = vmatprep.subr.mxu0 0.0
    %1420 = vmatpush1.msra.mxu0 0.0
    %1421 = vmatprep.subr.mxu0 0.0
    %1422 = vmatpush1.msra.mxu0 0.0
    %1423 = vmatprep.subr.mxu0 0.0
    %1424 = vmatpush1.msra.mxu0 0.0
    %1425 = vmatprep.subr.mxu0 0.0
    %1426 = vmatpush1.msra.mxu0 0.0
    %1427 = vmatprep.subr.mxu0 0.0
    %1428 = vmatpush1.msra.mxu0 0.0
    %1429 = vmatprep.subr.mxu0 0.0
    %1430 = vmatpush1.msra.mxu0 0.0
    %1431 = vmatprep.subr.mxu0 0.0
    %1432 = vmatpush1.msra.mxu0 0.0
    %1433 = vmatprep.subr.mxu0 0.0
    %1434 = vmatpush1.msra.mxu0 0.0
    %1435 = vmatprep.subr.mxu0 0.0
    %1436 = vmatpush1.msra.mxu0 0.0
    %1437 = vmatprep.subr.mxu0 0.0
    %1438 = vmatpush1.msra.mxu0 0.0
    %1439 = vmatprep.subr.mxu0 0.0
    %1440 = vmatpush1.msra.mxu0 0.0
    %1441 = vmatprep.subr.mxu0 0.0
    %1442 = vmatpush1.msra.mxu0 0.0
    %1443 = vmatprep.subr.mxu0 0.0
    %1444 = vmatpush1.msra.mxu0 0.0
    %1445 = vmatprep.subr.mxu0 0.0
    %1446 = vmatpush1.msra.mxu0 0.0
    %1447 = vmatprep.subr.mxu0 0.0
    %1448 = vmatpush1.msra.mxu0 0.0
    %1449 = vmatprep.subr.mxu0 0.0
    %1450 = vmatpush1.msra.mxu0 0.0
    %1451 = vmatprep.mubr.f32.mxu0 0.0
    %1452 = vmatmul.mubr.f32.gmra.mrb[0].mxu0 %v1385
    %v1453 = vpop.f32.mrb[0].mxu0
    %v1454 = vadd.f32 0.0, %v1453
    %v1455 = vpop.f32.mrb[0].mxu0
    %1456 = vdwg.mxu0
    %v1458 = vsel %vm243, %v945, 0
    %1460 = vmatprep.subr.mxu0 0.0
    %1461 = vmatpush1.msra.mxu0 %v239
    %1462 = vmatprep.subr.mxu0 0.0
    %1463 = vmatpush1.msra.mxu0 0.0
    %1464 = vmatprep.subr.mxu0 0.0
    %1465 = vmatpush1.msra.mxu0 0.0
    %1466 = vmatprep.subr.mxu0 0.0
    %1467 = vmatpush1.msra.mxu0 0.0
    %1468 = vmatprep.subr.mxu0 0.0
    %1469 = vmatpush1.msra.mxu0 0.0
    %1470 = vmatprep.subr.mxu0 0.0
    %1471 = vmatpush1.msra.mxu0 0.0
    %1472 = vmatprep.subr.mxu0 0.0
    %1473 = vmatpush1.msra.mxu0 0.0
    %1474 = vmatprep.subr.mxu0 0.0
    %1475 = vmatpush1.msra.mxu0 0.0
    %1476 = vmatprep.subr.mxu0 0.0
    %1477 = vmatpush1.msra.mxu0 0.0
    %1478 = vmatprep.subr.mxu0 0.0
    %1479 = vmatpush1.msra.mxu0 0.0
    %1480 = vmatprep.subr.mxu0 0.0
    %1481 = vmatpush1.msra.mxu0 0.0
    %1482 = vmatprep.subr.mxu0 0.0
    %1483 = vmatpush1.msra.mxu0 0.0
    %1484 = vmatprep.subr.mxu0 0.0
    %1485 = vmatpush1.msra.mxu0 0.0
    %1486 = vmatprep.subr.mxu0 0.0
    %1487 = vmatpush1.msra.mxu0 0.0
    %1488 = vmatprep.subr.mxu0 0.0
    %1489 = vmatpush1.msra.mxu0 0.0
    %1490 = vmatprep.subr.mxu0 0.0
    %1491 = vmatpush1.msra.mxu0 0.0
    %1492 = vmatprep.subr.mxu0 0.0
    %1493 = vmatpush1.msra.mxu0 0.0
    %1494 = vmatprep.subr.mxu0 0.0
    %1495 = vmatpush1.msra.mxu0 0.0
    %1496 = vmatprep.subr.mxu0 0.0
    %1497 = vmatpush1.msra.mxu0 0.0
    %1498 = vmatprep.subr.mxu0 0.0
    %1499 = vmatpush1.msra.mxu0 0.0
    %1500 = vmatprep.subr.mxu0 0.0
    %1501 = vmatpush1.msra.mxu0 0.0
    %1502 = vmatprep.subr.mxu0 0.0
    %1503 = vmatpush1.msra.mxu0 0.0
    %1504 = vmatprep.subr.mxu0 0.0
    %1505 = vmatpush1.msra.mxu0 0.0
    %1506 = vmatprep.subr.mxu0 0.0
    %1507 = vmatpush1.msra.mxu0 0.0
    %1508 = vmatprep.subr.mxu0 0.0
    %1509 = vmatpush1.msra.mxu0 0.0
    %1510 = vmatprep.subr.mxu0 0.0
    %1511 = vmatpush1.msra.mxu0 0.0
    %1512 = vmatprep.subr.mxu0 0.0
    %1513 = vmatpush1.msra.mxu0 0.0
    %1514 = vmatprep.subr.mxu0 0.0
    %1515 = vmatpush1.msra.mxu0 0.0
    %1516 = vmatprep.subr.mxu0 0.0
    %1517 = vmatpush1.msra.mxu0 0.0
    %1518 = vmatprep.subr.mxu0 0.0
    %1519 = vmatpush1.msra.mxu0 0.0
    %1520 = vmatprep.subr.mxu0 0.0
    %1521 = vmatpush1.msra.mxu0 0.0
    %1522 = vmatprep.subr.mxu0 0.0
    %1523 = vmatpush1.msra.mxu0 0.0
    %1524 = vmatprep.mubr.f32.mxu0 0.0
    %1525 = vmatmul.mubr.f32.gmra.mrb[0].mxu0 %v1458
    %v1526 = vpop.f32.mrb[0].mxu0
    %v1527 = vadd.f32 0.0, %v1526
    %v1528 = vpop.f32.mrb[0].mxu0
    %1529 = vdwg.mxu0
    %1531 = vrot.lane.b32.xlu0 %v1089, 8
    %v1532 = vpop.permute.xlu0 %1531
    %1535 = vrot.lane.b32.xlu0 %v1162, 16
    %v1536 = vpop.permute.xlu0 %1535
    %1539 = vrot.lane.b32.xlu0 %v1235, 24
    %v1540 = vpop.permute.xlu0 %1539
    %1543 = vrot.lane.b32.xlu0 %v1308, 32
    %v1544 = vpop.permute.xlu0 %1543
    %1547 = vrot.lane.b32.xlu0 %v1381, 40
    %v1548 = vpop.permute.xlu0 %1547
    %1551 = vrot.lane.b32.xlu0 %v1454, 48
    %v1552 = vpop.permute.xlu0 %1551
    %1555 = vrot.lane.b32.xlu0 %v1527, 56
    %v1556 = vpop.permute.xlu0 %1555
    %v1558 = vsel %vm243, %v1016, %v1532
    %vm1559 = vcmask 130048
    %v1560 = vsel %vm1559, %v1558, %v1536
    %vm1561 = vcmask 195584
    %v1562 = vsel %vm1561, %v1560, %v1540
    %vm1563 = vcmask 261120
    %v1564 = vsel %vm1563, %v1562, %v1544
    %vm1565 = vcmask 326656
    %v1566 = vsel %vm1565, %v1564, %v1548
    %vm1567 = vcmask 392192
    %v1568 = vsel %vm1567, %v1566, %v1552
    %vm1569 = vcmask 457728
    %v1570 = vsel %vm1569, %v1568, %v1556
    %1572 = vrot.lane.b32.xlu0 %v200, 120
    %v1573 = vpop.permute.xlu0 %1572
    %1574 = vrot.lane.b32.xlu0 %v200, 112
    %v1575 = vpop.permute.xlu0 %1574
    %1576 = vrot.lane.b32.xlu0 %v200, 104
    %v1577 = vpop.permute.xlu0 %1576
    %1578 = vrot.lane.b32.xlu0 %v200, 96
    %v1579 = vpop.permute.xlu0 %1578
    %1580 = vrot.lane.b32.xlu0 %v200, 88
    %v1581 = vpop.permute.xlu0 %1580
    %1582 = vrot.lane.b32.xlu0 %v200, 80
    %v1583 = vpop.permute.xlu0 %1582
    %1584 = vrot.lane.b32.xlu0 %v200, 72
    %v1585 = vpop.permute.xlu0 %1584
    %1587 = vrot.lane.b32.xlu0 %v202, 120
    %v1588 = vpop.permute.xlu0 %1587
    %1590 = vrot.lane.b32.xlu0 %v202, 112
    %v1591 = vpop.permute.xlu0 %1590
    %1593 = vrot.lane.b32.xlu0 %v202, 104
    %v1594 = vpop.permute.xlu0 %1593
    %1596 = vrot.lane.b32.xlu0 %v202, 96
    %v1597 = vpop.permute.xlu0 %1596
    %1599 = vrot.lane.b32.xlu0 %v202, 88
    %v1600 = vpop.permute.xlu0 %1599
    %1602 = vrot.lane.b32.xlu0 %v202, 80
    %v1603 = vpop.permute.xlu0 %1602
    %1605 = vrot.lane.b32.xlu0 %v202, 72
    %v1606 = vpop.permute.xlu0 %1605
    %1608 = vrot.lane.b32.xlu0 %v200, 64
    %v1609 = vpop.permute.xlu0 %1608
    %v1610 = vsel %vm243, %v200, 0
    %v1612 = vsel %vm243, %v1609, 0
    %1614 = vmatprep.subr.mxu0 0.0
    %1615 = vmatpush1.xpose.msra.mxu0 %v1612
    %1616 = vmatprep.subr.mxu0 0.0
    %1617 = vmatpush1.xpose.msra.mxu0 0.0
    %1618 = vmatprep.subr.mxu0 0.0
    %1619 = vmatpush1.xpose.msra.mxu0 0.0
    %1620 = vmatprep.subr.mxu0 0.0
    %1621 = vmatpush1.xpose.msra.mxu0 0.0
    %1622 = vmatprep.subr.mxu0 0.0
    %1623 = vmatpush1.xpose.msra.mxu0 0.0
    %1624 = vmatprep.subr.mxu0 0.0
    %1625 = vmatpush1.xpose.msra.mxu0 0.0
    %1626 = vmatprep.subr.mxu0 0.0
    %1627 = vmatpush1.xpose.msra.mxu0 0.0
    %1628 = vmatprep.subr.mxu0 0.0
    %1629 = vmatpush1.xpose.msra.mxu0 0.0
    %1630 = vmatprep.subr.mxu0 0.0
    %1631 = vmatpush1.xpose.msra.mxu0 0.0
    %1632 = vmatprep.subr.mxu0 0.0
    %1633 = vmatpush1.xpose.msra.mxu0 0.0
    %1634 = vmatprep.subr.mxu0 0.0
    %1635 = vmatpush1.xpose.msra.mxu0 0.0
    %1636 = vmatprep.subr.mxu0 0.0
    %1637 = vmatpush1.xpose.msra.mxu0 0.0
    %1638 = vmatprep.subr.mxu0 0.0
    %1639 = vmatpush1.xpose.msra.mxu0 0.0
    %1640 = vmatprep.subr.mxu0 0.0
    %1641 = vmatpush1.xpose.msra.mxu0 0.0
    %1642 = vmatprep.subr.mxu0 0.0
    %1643 = vmatpush1.xpose.msra.mxu0 0.0
    %1644 = vmatprep.subr.mxu0 0.0
    %1645 = vmatpush1.xpose.msra.mxu0 0.0
    %1646 = vmatprep.subr.mxu0 0.0
    %1647 = vmatpush1.xpose.msra.mxu0 0.0
    %1648 = vmatprep.subr.mxu0 0.0
    %1649 = vmatpush1.xpose.msra.mxu0 0.0
    %1650 = vmatprep.subr.mxu0 0.0
    %1651 = vmatpush1.xpose.msra.mxu0 0.0
    %1652 = vmatprep.subr.mxu0 0.0
    %1653 = vmatpush1.xpose.msra.mxu0 0.0
    %1654 = vmatprep.subr.mxu0 0.0
    %1655 = vmatpush1.xpose.msra.mxu0 0.0
    %1656 = vmatprep.subr.mxu0 0.0
    %1657 = vmatpush1.xpose.msra.mxu0 0.0
    %1658 = vmatprep.subr.mxu0 0.0
    %1659 = vmatpush1.xpose.msra.mxu0 0.0
    %1660 = vmatprep.subr.mxu0 0.0
    %1661 = vmatpush1.xpose.msra.mxu0 0.0
    %1662 = vmatprep.subr.mxu0 0.0
    %1663 = vmatpush1.xpose.msra.mxu0 0.0
    %1664 = vmatprep.subr.mxu0 0.0
    %1665 = vmatpush1.xpose.msra.mxu0 0.0
    %1666 = vmatprep.subr.mxu0 0.0
    %1667 = vmatpush1.xpose.msra.mxu0 0.0
    %1668 = vmatprep.subr.mxu0 0.0
    %1669 = vmatpush1.xpose.msra.mxu0 0.0
    %1670 = vmatprep.subr.mxu0 0.0
    %1671 = vmatpush1.xpose.msra.mxu0 0.0
    %1672 = vmatprep.subr.mxu0 0.0
    %1673 = vmatpush1.xpose.msra.mxu0 0.0
    %1674 = vmatprep.subr.mxu0 0.0
    %1675 = vmatpush1.xpose.msra.mxu0 0.0
    %1676 = vmatprep.subr.mxu0 0.0
    %1677 = vmatpush1.xpose.msra.mxu0 0.0
    %1678 = vmatprep.mubr.f32.mxu0 0.0
    %1679 = vmatmul.mubr.f32.gmra.mrb[0].mxu0 %v1610
    %v1680 = vpop.f32.mrb[0].mxu0
    %v1681 = vadd.f32 0.0, %v1680
    %v1682 = vpop.f32.mrb[0].mxu0
    %1683 = vdwg.mxu0
    %1684 = vrot.lane.b32.xlu0 %v1573, 64
    %v1685 = vpop.permute.xlu0 %1684
    %v1686 = vsel %vm243, %v1573, 0
    %v1688 = vsel %vm243, %v1685, 0
    %1690 = vmatprep.subr.mxu0 0.0
    %1691 = vmatpush1.xpose.msra.mxu0 %v1688
    %1692 = vmatprep.subr.mxu0 0.0
    %1693 = vmatpush1.xpose.msra.mxu0 0.0
    %1694 = vmatprep.subr.mxu0 0.0
    %1695 = vmatpush1.xpose.msra.mxu0 0.0
    %1696 = vmatprep.subr.mxu0 0.0
    %1697 = vmatpush1.xpose.msra.mxu0 0.0
    %1698 = vmatprep.subr.mxu0 0.0
    %1699 = vmatpush1.xpose.msra.mxu0 0.0
    %1700 = vmatprep.subr.mxu0 0.0
    %1701 = vmatpush1.xpose.msra.mxu0 0.0
    %1702 = vmatprep.subr.mxu0 0.0
    %1703 = vmatpush1.xpose.msra.mxu0 0.0
    %1704 = vmatprep.subr.mxu0 0.0
    %1705 = vmatpush1.xpose.msra.mxu0 0.0
    %1706 = vmatprep.subr.mxu0 0.0
    %1707 = vmatpush1.xpose.msra.mxu0 0.0
    %1708 = vmatprep.subr.mxu0 0.0
    %1709 = vmatpush1.xpose.msra.mxu0 0.0
    %1710 = vmatprep.subr.mxu0 0.0
    %1711 = vmatpush1.xpose.msra.mxu0 0.0
    %1712 = vmatprep.subr.mxu0 0.0
    %1713 = vmatpush1.xpose.msra.mxu0 0.0
    %1714 = vmatprep.subr.mxu0 0.0
    %1715 = vmatpush1.xpose.msra.mxu0 0.0
    %1716 = vmatprep.subr.mxu0 0.0
    %1717 = vmatpush1.xpose.msra.mxu0 0.0
    %1718 = vmatprep.subr.mxu0 0.0
    %1719 = vmatpush1.xpose.msra.mxu0 0.0
    %1720 = vmatprep.subr.mxu0 0.0
    %1721 = vmatpush1.xpose.msra.mxu0 0.0
    %1722 = vmatprep.subr.mxu0 0.0
    %1723 = vmatpush1.xpose.msra.mxu0 0.0
    %1724 = vmatprep.subr.mxu0 0.0
    %1725 = vmatpush1.xpose.msra.mxu0 0.0
    %1726 = vmatprep.subr.mxu0 0.0
    %1727 = vmatpush1.xpose.msra.mxu0 0.0
    %1728 = vmatprep.subr.mxu0 0.0
    %1729 = vmatpush1.xpose.msra.mxu0 0.0
    %1730 = vmatprep.subr.mxu0 0.0
    %1731 = vmatpush1.xpose.msra.mxu0 0.0
    %1732 = vmatprep.subr.mxu0 0.0
    %1733 = vmatpush1.xpose.msra.mxu0 0.0
    %1734 = vmatprep.subr.mxu0 0.0
    %1735 = vmatpush1.xpose.msra.mxu0 0.0
    %1736 = vmatprep.subr.mxu0 0.0
    %1737 = vmatpush1.xpose.msra.mxu0 0.0
    %1738 = vmatprep.subr.mxu0 0.0
    %1739 = vmatpush1.xpose.msra.mxu0 0.0
    %1740 = vmatprep.subr.mxu0 0.0
    %1741 = vmatpush1.xpose.msra.mxu0 0.0
    %1742 = vmatprep.subr.mxu0 0.0
    %1743 = vmatpush1.xpose.msra.mxu0 0.0
    %1744 = vmatprep.subr.mxu0 0.0
    %1745 = vmatpush1.xpose.msra.mxu0 0.0
    %1746 = vmatprep.subr.mxu0 0.0
    %1747 = vmatpush1.xpose.msra.mxu0 0.0
    %1748 = vmatprep.subr.mxu0 0.0
    %1749 = vmatpush1.xpose.msra.mxu0 0.0
    %1750 = vmatprep.subr.mxu0 0.0
    %1751 = vmatpush1.xpose.msra.mxu0 0.0
    %1752 = vmatprep.subr.mxu0 0.0
    %1753 = vmatpush1.xpose.msra.mxu0 0.0
    %1754 = vmatprep.mubr.f32.mxu0 0.0
    %1755 = vmatmul.mubr.f32.gmra.mrb[0].mxu0 %v1686
    %v1756 = vpop.f32.mrb[0].mxu0
    %v1757 = vadd.f32 0.0, %v1756
    %v1758 = vpop.f32.mrb[0].mxu0
    %1759 = vdwg.mxu0
    %1760 = vrot.lane.b32.xlu0 %v1575, 64
    %v1761 = vpop.permute.xlu0 %1760
    %v1762 = vsel %vm243, %v1575, 0
    %v1764 = vsel %vm243, %v1761, 0
    %1766 = vmatprep.subr.mxu0 0.0
    %1767 = vmatpush1.xpose.msra.mxu0 %v1764
    %1768 = vmatprep.subr.mxu0 0.0
    %1769 = vmatpush1.xpose.msra.mxu0 0.0
    %1770 = vmatprep.subr.mxu0 0.0
    %1771 = vmatpush1.xpose.msra.mxu0 0.0
    %1772 = vmatprep.subr.mxu0 0.0
    %1773 = vmatpush1.xpose.msra.mxu0 0.0
    %1774 = vmatprep.subr.mxu0 0.0
    %1775 = vmatpush1.xpose.msra.mxu0 0.0
    %1776 = vmatprep.subr.mxu0 0.0
    %1777 = vmatpush1.xpose.msra.mxu0 0.0
    %1778 = vmatprep.subr.mxu0 0.0
    %1779 = vmatpush1.xpose.msra.mxu0 0.0
    %1780 = vmatprep.subr.mxu0 0.0
    %1781 = vmatpush1.xpose.msra.mxu0 0.0
    %1782 = vmatprep.subr.mxu0 0.0
    %1783 = vmatpush1.xpose.msra.mxu0 0.0
    %1784 = vmatprep.subr.mxu0 0.0
    %1785 = vmatpush1.xpose.msra.mxu0 0.0
    %1786 = vmatprep.subr.mxu0 0.0
    %1787 = vmatpush1.xpose.msra.mxu0 0.0
    %1788 = vmatprep.subr.mxu0 0.0
    %1789 = vmatpush1.xpose.msra.mxu0 0.0
    %1790 = vmatprep.subr.mxu0 0.0
    %1791 = vmatpush1.xpose.msra.mxu0 0.0
    %1792 = vmatprep.subr.mxu0 0.0
    %1793 = vmatpush1.xpose.msra.mxu0 0.0
    %1794 = vmatprep.subr.mxu0 0.0
    %1795 = vmatpush1.xpose.msra.mxu0 0.0
    %1796 = vmatprep.subr.mxu0 0.0
    %1797 = vmatpush1.xpose.msra.mxu0 0.0
    %1798 = vmatprep.subr.mxu0 0.0
    %1799 = vmatpush1.xpose.msra.mxu0 0.0
    %1800 = vmatprep.subr.mxu0 0.0
    %1801 = vmatpush1.xpose.msra.mxu0 0.0
    %1802 = vmatprep.subr.mxu0 0.0
    %1803 = vmatpush1.xpose.msra.mxu0 0.0
    %1804 = vmatprep.subr.mxu0 0.0
    %1805 = vmatpush1.xpose.msra.mxu0 0.0
    %1806 = vmatprep.subr.mxu0 0.0
    %1807 = vmatpush1.xpose.msra.mxu0 0.0
    %1808 = vmatprep.subr.mxu0 0.0
    %1809 = vmatpush1.xpose.msra.mxu0 0.0
    %1810 = vmatprep.subr.mxu0 0.0
    %1811 = vmatpush1.xpose.msra.mxu0 0.0
    %1812 = vmatprep.subr.mxu0 0.0
    %1813 = vmatpush1.xpose.msra.mxu0 0.0
    %1814 = vmatprep.subr.mxu0 0.0
    %1815 = vmatpush1.xpose.msra.mxu0 0.0
    %1816 = vmatprep.subr.mxu0 0.0
    %1817 = vmatpush1.xpose.msra.mxu0 0.0
    %1818 = vmatprep.subr.mxu0 0.0
    %1819 = vmatpush1.xpose.msra.mxu0 0.0
    %1820 = vmatprep.subr.mxu0 0.0
    %1821 = vmatpush1.xpose.msra.mxu0 0.0
    %1822 = vmatprep.subr.mxu0 0.0
    %1823 = vmatpush1.xpose.msra.mxu0 0.0
    %1824 = vmatprep.subr.mxu0 0.0
    %1825 = vmatpush1.xpose.msra.mxu0 0.0
    %1826 = vmatprep.subr.mxu0 0.0
    %1827 = vmatpush1.xpose.msra.mxu0 0.0
    %1828 = vmatprep.subr.mxu0 0.0
    %1829 = vmatpush1.xpose.msra.mxu0 0.0
    %1830 = vmatprep.mubr.f32.mxu0 0.0
    %1831 = vmatmul.mubr.f32.gmra.mrb[0].mxu0 %v1762
    %v1832 = vpop.f32.mrb[0].mxu0
    %v1833 = vadd.f32 0.0, %v1832
    %v1834 = vpop.f32.mrb[0].mxu0
    %1835 = vdwg.mxu0
    %1836 = vrot.lane.b32.xlu0 %v1577, 64
    %v1837 = vpop.permute.xlu0 %1836
    %v1838 = vsel %vm243, %v1577, 0
    %v1840 = vsel %vm243, %v1837, 0
    %1842 = vmatprep.subr.mxu0 0.0
    %1843 = vmatpush1.xpose.msra.mxu0 %v1840
    %1844 = vmatprep.subr.mxu0 0.0
    %1845 = vmatpush1.xpose.msra.mxu0 0.0
    %1846 = vmatprep.subr.mxu0 0.0
    %1847 = vmatpush1.xpose.msra.mxu0 0.0
    %1848 = vmatprep.subr.mxu0 0.0
    %1849 = vmatpush1.xpose.msra.mxu0 0.0
    %1850 = vmatprep.subr.mxu0 0.0
    %1851 = vmatpush1.xpose.msra.mxu0 0.0
    %1852 = vmatprep.subr.mxu0 0.0
    %1853 = vmatpush1.xpose.msra.mxu0 0.0
    %1854 = vmatprep.subr.mxu0 0.0
    %1855 = vmatpush1.xpose.msra.mxu0 0.0
    %1856 = vmatprep.subr.mxu0 0.0
    %1857 = vmatpush1.xpose.msra.mxu0 0.0
    %1858 = vmatprep.subr.mxu0 0.0
    %1859 = vmatpush1.xpose.msra.mxu0 0.0
    %1860 = vmatprep.subr.mxu0 0.0
    %1861 = vmatpush1.xpose.msra.mxu0 0.0
    %1862 = vmatprep.subr.mxu0 0.0
    %1863 = vmatpush1.xpose.msra.mxu0 0.0
    %1864 = vmatprep.subr.mxu0 0.0
    %1865 = vmatpush1.xpose.msra.mxu0 0.0
    %1866 = vmatprep.subr.mxu0 0.0
    %1867 = vmatpush1.xpose.msra.mxu0 0.0
    %1868 = vmatprep.subr.mxu0 0.0
    %1869 = vmatpush1.xpose.msra.mxu0 0.0
    %1870 = vmatprep.subr.mxu0 0.0
    %1871 = vmatpush1.xpose.msra.mxu0 0.0
    %1872 = vmatprep.subr.mxu0 0.0
    %1873 = vmatpush1.xpose.msra.mxu0 0.0
    %1874 = vmatprep.subr.mxu0 0.0
    %1875 = vmatpush1.xpose.msra.mxu0 0.0
    %1876 = vmatprep.subr.mxu0 0.0
    %1877 = vmatpush1.xpose.msra.mxu0 0.0
    %1878 = vmatprep.subr.mxu0 0.0
    %1879 = vmatpush1.xpose.msra.mxu0 0.0
    %1880 = vmatprep.subr.mxu0 0.0
    %1881 = vmatpush1.xpose.msra.mxu0 0.0
    %1882 = vmatprep.subr.mxu0 0.0
    %1883 = vmatpush1.xpose.msra.mxu0 0.0
    %1884 = vmatprep.subr.mxu0 0.0
    %1885 = vmatpush1.xpose.msra.mxu0 0.0
    %1886 = vmatprep.subr.mxu0 0.0
    %1887 = vmatpush1.xpose.msra.mxu0 0.0
    %1888 = vmatprep.subr.mxu0 0.0
    %1889 = vmatpush1.xpose.msra.mxu0 0.0
    %1890 = vmatprep.subr.mxu0 0.0
    %1891 = vmatpush1.xpose.msra.mxu0 0.0
    %1892 = vmatprep.subr.mxu0 0.0
    %1893 = vmatpush1.xpose.msra.mxu0 0.0
    %1894 = vmatprep.subr.mxu0 0.0
    %1895 = vmatpush1.xpose.msra.mxu0 0.0
    %1896 = vmatprep.subr.mxu0 0.0
    %1897 = vmatpush1.xpose.msra.mxu0 0.0
    %1898 = vmatprep.subr.mxu0 0.0
    %1899 = vmatpush1.xpose.msra.mxu0 0.0
    %1900 = vmatprep.subr.mxu0 0.0
    %1901 = vmatpush1.xpose.msra.mxu0 0.0
    %1902 = vmatprep.subr.mxu0 0.0
    %1903 = vmatpush1.xpose.msra.mxu0 0.0
    %1904 = vmatprep.subr.mxu0 0.0
    %1905 = vmatpush1.xpose.msra.mxu0 0.0
    %1906 = vmatprep.mubr.f32.mxu0 0.0
    %1907 = vmatmul.mubr.f32.gmra.mrb[0].mxu0 %v1838
    %v1908 = vpop.f32.mrb[0].mxu0
    %v1909 = vadd.f32 0.0, %v1908
    %v1910 = vpop.f32.mrb[0].mxu0
    %1911 = vdwg.mxu0
    %1912 = vrot.lane.b32.xlu0 %v1579, 64
    %v1913 = vpop.permute.xlu0 %1912
    %v1914 = vsel %vm243, %v1579, 0
    %v1916 = vsel %vm243, %v1913, 0
    %1918 = vmatprep.subr.mxu0 0.0
    %1919 = vmatpush1.xpose.msra.mxu0 %v1916
    %1920 = vmatprep.subr.mxu0 0.0
    %1921 = vmatpush1.xpose.msra.mxu0 0.0
    %1922 = vmatprep.subr.mxu0 0.0
    %1923 = vmatpush1.xpose.msra.mxu0 0.0
    %1924 = vmatprep.subr.mxu0 0.0
    %1925 = vmatpush1.xpose.msra.mxu0 0.0
    %1926 = vmatprep.subr.mxu0 0.0
    %1927 = vmatpush1.xpose.msra.mxu0 0.0
    %1928 = vmatprep.subr.mxu0 0.0
    %1929 = vmatpush1.xpose.msra.mxu0 0.0
    %1930 = vmatprep.subr.mxu0 0.0
    %1931 = vmatpush1.xpose.msra.mxu0 0.0
    %1932 = vmatprep.subr.mxu0 0.0
    %1933 = vmatpush1.xpose.msra.mxu0 0.0
    %1934 = vmatprep.subr.mxu0 0.0
    %1935 = vmatpush1.xpose.msra.mxu0 0.0
    %1936 = vmatprep.subr.mxu0 0.0
    %1937 = vmatpush1.xpose.msra.mxu0 0.0
    %1938 = vmatprep.subr.mxu0 0.0
    %1939 = vmatpush1.xpose.msra.mxu0 0.0
    %1940 = vmatprep.subr.mxu0 0.0
    %1941 = vmatpush1.xpose.msra.mxu0 0.0
    %1942 = vmatprep.subr.mxu0 0.0
    %1943 = vmatpush1.xpose.msra.mxu0 0.0
    %1944 = vmatprep.subr.mxu0 0.0
    %1945 = vmatpush1.xpose.msra.mxu0 0.0
    %1946 = vmatprep.subr.mxu0 0.0
    %1947 = vmatpush1.xpose.msra.mxu0 0.0
    %1948 = vmatprep.subr.mxu0 0.0
    %1949 = vmatpush1.xpose.msra.mxu0 0.0
    %1950 = vmatprep.subr.mxu0 0.0
    %1951 = vmatpush1.xpose.msra.mxu0 0.0
    %1952 = vmatprep.subr.mxu0 0.0
    %1953 = vmatpush1.xpose.msra.mxu0 0.0
    %1954 = vmatprep.subr.mxu0 0.0
    %1955 = vmatpush1.xpose.msra.mxu0 0.0
    %1956 = vmatprep.subr.mxu0 0.0
    %1957 = vmatpush1.xpose.msra.mxu0 0.0
    %1958 = vmatprep.subr.mxu0 0.0
    %1959 = vmatpush1.xpose.msra.mxu0 0.0
    %1960 = vmatprep.subr.mxu0 0.0
    %1961 = vmatpush1.xpose.msra.mxu0 0.0
    %1962 = vmatprep.subr.mxu0 0.0
    %1963 = vmatpush1.xpose.msra.mxu0 0.0
    %1964 = vmatprep.subr.mxu0 0.0
    %1965 = vmatpush1.xpose.msra.mxu0 0.0
    %1966 = vmatprep.subr.mxu0 0.0
    %1967 = vmatpush1.xpose.msra.mxu0 0.0
    %1968 = vmatprep.subr.mxu0 0.0
    %1969 = vmatpush1.xpose.msra.mxu0 0.0
    %1970 = vmatprep.subr.mxu0 0.0
    %1971 = vmatpush1.xpose.msra.mxu0 0.0
    %1972 = vmatprep.subr.mxu0 0.0
    %1973 = vmatpush1.xpose.msra.mxu0 0.0
    %1974 = vmatprep.subr.mxu0 0.0
    %1975 = vmatpush1.xpose.msra.mxu0 0.0
    %1976 = vmatprep.subr.mxu0 0.0
    %1977 = vmatpush1.xpose.msra.mxu0 0.0
    %1978 = vmatprep.subr.mxu0 0.0
    %1979 = vmatpush1.xpose.msra.mxu0 0.0
    %1980 = vmatprep.subr.mxu0 0.0
    %1981 = vmatpush1.xpose.msra.mxu0 0.0
    %1982 = vmatprep.mubr.f32.mxu0 0.0
    %1983 = vmatmul.mubr.f32.gmra.mrb[0].mxu0 %v1914
    %v1984 = vpop.f32.mrb[0].mxu0
    %v1985 = vadd.f32 0.0, %v1984
    %v1986 = vpop.f32.mrb[0].mxu0
    %1987 = vdwg.mxu0
    %1988 = vrot.lane.b32.xlu0 %v1581, 64
    %v1989 = vpop.permute.xlu0 %1988
    %v1990 = vsel %vm243, %v1581, 0
    %v1992 = vsel %vm243, %v1989, 0
    %1994 = vmatprep.subr.mxu0 0.0
    %1995 = vmatpush1.xpose.msra.mxu0 %v1992
    %1996 = vmatprep.subr.mxu0 0.0
    %1997 = vmatpush1.xpose.msra.mxu0 0.0
    %1998 = vmatprep.subr.mxu0 0.0
    %1999 = vmatpush1.xpose.msra.mxu0 0.0
    %2000 = vmatprep.subr.mxu0 0.0
    %2001 = vmatpush1.xpose.msra.mxu0 0.0
    %2002 = vmatprep.subr.mxu0 0.0
    %2003 = vmatpush1.xpose.msra.mxu0 0.0
    %2004 = vmatprep.subr.mxu0 0.0
    %2005 = vmatpush1.xpose.msra.mxu0 0.0
    %2006 = vmatprep.subr.mxu0 0.0
    %2007 = vmatpush1.xpose.msra.mxu0 0.0
    %2008 = vmatprep.subr.mxu0 0.0
    %2009 = vmatpush1.xpose.msra.mxu0 0.0
    %2010 = vmatprep.subr.mxu0 0.0
    %2011 = vmatpush1.xpose.msra.mxu0 0.0
    %2012 = vmatprep.subr.mxu0 0.0
    %2013 = vmatpush1.xpose.msra.mxu0 0.0
    %2014 = vmatprep.subr.mxu0 0.0
    %2015 = vmatpush1.xpose.msra.mxu0 0.0
    %2016 = vmatprep.subr.mxu0 0.0
    %2017 = vmatpush1.xpose.msra.mxu0 0.0
    %2018 = vmatprep.subr.mxu0 0.0
    %2019 = vmatpush1.xpose.msra.mxu0 0.0
    %2020 = vmatprep.subr.mxu0 0.0
    %2021 = vmatpush1.xpose.msra.mxu0 0.0
    %2022 = vmatprep.subr.mxu0 0.0
    %2023 = vmatpush1.xpose.msra.mxu0 0.0
    %2024 = vmatprep.subr.mxu0 0.0
    %2025 = vmatpush1.xpose.msra.mxu0 0.0
    %2026 = vmatprep.subr.mxu0 0.0
    %2027 = vmatpush1.xpose.msra.mxu0 0.0
    %2028 = vmatprep.subr.mxu0 0.0
    %2029 = vmatpush1.xpose.msra.mxu0 0.0
    %2030 = vmatprep.subr.mxu0 0.0
    %2031 = vmatpush1.xpose.msra.mxu0 0.0
    %2032 = vmatprep.subr.mxu0 0.0
    %2033 = vmatpush1.xpose.msra.mxu0 0.0
    %2034 = vmatprep.subr.mxu0 0.0
    %2035 = vmatpush1.xpose.msra.mxu0 0.0
    %2036 = vmatprep.subr.mxu0 0.0
    %2037 = vmatpush1.xpose.msra.mxu0 0.0
    %2038 = vmatprep.subr.mxu0 0.0
    %2039 = vmatpush1.xpose.msra.mxu0 0.0
    %2040 = vmatprep.subr.mxu0 0.0
    %2041 = vmatpush1.xpose.msra.mxu0 0.0
    %2042 = vmatprep.subr.mxu0 0.0
    %2043 = vmatpush1.xpose.msra.mxu0 0.0
    %2044 = vmatprep.subr.mxu0 0.0
    %2045 = vmatpush1.xpose.msra.mxu0 0.0
    %2046 = vmatprep.subr.mxu0 0.0
    %2047 = vmatpush1.xpose.msra.mxu0 0.0
    %2048 = vmatprep.subr.mxu0 0.0
    %2049 = vmatpush1.xpose.msra.mxu0 0.0
    %2050 = vmatprep.subr.mxu0 0.0
    %2051 = vmatpush1.xpose.msra.mxu0 0.0
    %2052 = vmatprep.subr.mxu0 0.0
    %2053 = vmatpush1.xpose.msra.mxu0 0.0
    %2054 = vmatprep.subr.mxu0 0.0
    %2055 = vmatpush1.xpose.msra.mxu0 0.0
    %2056 = vmatprep.subr.mxu0 0.0
    %2057 = vmatpush1.xpose.msra.mxu0 0.0
    %2058 = vmatprep.mubr.f32.mxu0 0.0
    %2059 = vmatmul.mubr.f32.gmra.mrb[0].mxu0 %v1990
    %v2060 = vpop.f32.mrb[0].mxu0
    %v2061 = vadd.f32 0.0, %v2060
    %v2062 = vpop.f32.mrb[0].mxu0
    %2063 = vdwg.mxu0
    %2064 = vrot.lane.b32.xlu0 %v1583, 64
    %v2065 = vpop.permute.xlu0 %2064
    %v2066 = vsel %vm243, %v1583, 0
    %v2068 = vsel %vm243, %v2065, 0
    %2070 = vmatprep.subr.mxu0 0.0
    %2071 = vmatpush1.xpose.msra.mxu0 %v2068
    %2072 = vmatprep.subr.mxu0 0.0
    %2073 = vmatpush1.xpose.msra.mxu0 0.0
    %2074 = vmatprep.subr.mxu0 0.0
    %2075 = vmatpush1.xpose.msra.mxu0 0.0
    %2076 = vmatprep.subr.mxu0 0.0
    %2077 = vmatpush1.xpose.msra.mxu0 0.0
    %2078 = vmatprep.subr.mxu0 0.0
    %2079 = vmatpush1.xpose.msra.mxu0 0.0
    %2080 = vmatprep.subr.mxu0 0.0
    %2081 = vmatpush1.xpose.msra.mxu0 0.0
    %2082 = vmatprep.subr.mxu0 0.0
    %2083 = vmatpush1.xpose.msra.mxu0 0.0
    %2084 = vmatprep.subr.mxu0 0.0
    %2085 = vmatpush1.xpose.msra.mxu0 0.0
    %2086 = vmatprep.subr.mxu0 0.0
    %2087 = vmatpush1.xpose.msra.mxu0 0.0
    %2088 = vmatprep.subr.mxu0 0.0
    %2089 = vmatpush1.xpose.msra.mxu0 0.0
    %2090 = vmatprep.subr.mxu0 0.0
    %2091 = vmatpush1.xpose.msra.mxu0 0.0
    %2092 = vmatprep.subr.mxu0 0.0
    %2093 = vmatpush1.xpose.msra.mxu0 0.0
    %2094 = vmatprep.subr.mxu0 0.0
    %2095 = vmatpush1.xpose.msra.mxu0 0.0
    %2096 = vmatprep.subr.mxu0 0.0
    %2097 = vmatpush1.xpose.msra.mxu0 0.0
    %2098 = vmatprep.subr.mxu0 0.0
    %2099 = vmatpush1.xpose.msra.mxu0 0.0
    %2100 = vmatprep.subr.mxu0 0.0
    %2101 = vmatpush1.xpose.msra.mxu0 0.0
    %2102 = vmatprep.subr.mxu0 0.0
    %2103 = vmatpush1.xpose.msra.mxu0 0.0
    %2104 = vmatprep.subr.mxu0 0.0
    %2105 = vmatpush1.xpose.msra.mxu0 0.0
    %2106 = vmatprep.subr.mxu0 0.0
    %2107 = vmatpush1.xpose.msra.mxu0 0.0
    %2108 = vmatprep.subr.mxu0 0.0
    %2109 = vmatpush1.xpose.msra.mxu0 0.0
    %2110 = vmatprep.subr.mxu0 0.0
    %2111 = vmatpush1.xpose.msra.mxu0 0.0
    %2112 = vmatprep.subr.mxu0 0.0
    %2113 = vmatpush1.xpose.msra.mxu0 0.0
    %2114 = vmatprep.subr.mxu0 0.0
    %2115 = vmatpush1.xpose.msra.mxu0 0.0
    %2116 = vmatprep.subr.mxu0 0.0
    %2117 = vmatpush1.xpose.msra.mxu0 0.0
    %2118 = vmatprep.subr.mxu0 0.0
    %2119 = vmatpush1.xpose.msra.mxu0 0.0
    %2120 = vmatprep.subr.mxu0 0.0
    %2121 = vmatpush1.xpose.msra.mxu0 0.0
    %2122 = vmatprep.subr.mxu0 0.0
    %2123 = vmatpush1.xpose.msra.mxu0 0.0
    %2124 = vmatprep.subr.mxu0 0.0
    %2125 = vmatpush1.xpose.msra.mxu0 0.0
    %2126 = vmatprep.subr.mxu0 0.0
    %2127 = vmatpush1.xpose.msra.mxu0 0.0
    %2128 = vmatprep.subr.mxu0 0.0
    %2129 = vmatpush1.xpose.msra.mxu0 0.0
    %2130 = vmatprep.subr.mxu0 0.0
    %2131 = vmatpush1.xpose.msra.mxu0 0.0
    %2132 = vmatprep.subr.mxu0 0.0
    %2133 = vmatpush1.xpose.msra.mxu0 0.0
    %2134 = vmatprep.mubr.f32.mxu0 0.0
    %2135 = vmatmul.mubr.f32.gmra.mrb[0].mxu0 %v2066
    %v2136 = vpop.f32.mrb[0].mxu0
    %v2137 = vadd.f32 0.0, %v2136
    %v2138 = vpop.f32.mrb[0].mxu0
    %2139 = vdwg.mxu0
    %2140 = vrot.lane.b32.xlu0 %v1585, 64
    %v2141 = vpop.permute.xlu0 %2140
    %v2142 = vsel %vm243, %v1585, 0
    %v2144 = vsel %vm243, %v2141, 0
    %2146 = vmatprep.subr.mxu0 0.0
    %2147 = vmatpush1.xpose.msra.mxu0 %v2144
    %2148 = vmatprep.subr.mxu0 0.0
    %2149 = vmatpush1.xpose.msra.mxu0 0.0
    %2150 = vmatprep.subr.mxu0 0.0
    %2151 = vmatpush1.xpose.msra.mxu0 0.0
    %2152 = vmatprep.subr.mxu0 0.0
    %2153 = vmatpush1.xpose.msra.mxu0 0.0
    %2154 = vmatprep.subr.mxu0 0.0
    %2155 = vmatpush1.xpose.msra.mxu0 0.0
    %2156 = vmatprep.subr.mxu0 0.0
    %2157 = vmatpush1.xpose.msra.mxu0 0.0
    %2158 = vmatprep.subr.mxu0 0.0
    %2159 = vmatpush1.xpose.msra.mxu0 0.0
    %2160 = vmatprep.subr.mxu0 0.0
    %2161 = vmatpush1.xpose.msra.mxu0 0.0
    %2162 = vmatprep.subr.mxu0 0.0
    %2163 = vmatpush1.xpose.msra.mxu0 0.0
    %2164 = vmatprep.subr.mxu0 0.0
    %2165 = vmatpush1.xpose.msra.mxu0 0.0
    %2166 = vmatprep.subr.mxu0 0.0
    %2167 = vmatpush1.xpose.msra.mxu0 0.0
    %2168 = vmatprep.subr.mxu0 0.0
    %2169 = vmatpush1.xpose.msra.mxu0 0.0
    %2170 = vmatprep.subr.mxu0 0.0
    %2171 = vmatpush1.xpose.msra.mxu0 0.0
    %2172 = vmatprep.subr.mxu0 0.0
    %2173 = vmatpush1.xpose.msra.mxu0 0.0
    %2174 = vmatprep.subr.mxu0 0.0
    %2175 = vmatpush1.xpose.msra.mxu0 0.0
    %2176 = vmatprep.subr.mxu0 0.0
    %2177 = vmatpush1.xpose.msra.mxu0 0.0
    %2178 = vmatprep.subr.mxu0 0.0
    %2179 = vmatpush1.xpose.msra.mxu0 0.0
    %2180 = vmatprep.subr.mxu0 0.0
    %2181 = vmatpush1.xpose.msra.mxu0 0.0
    %2182 = vmatprep.subr.mxu0 0.0
    %2183 = vmatpush1.xpose.msra.mxu0 0.0
    %2184 = vmatprep.subr.mxu0 0.0
    %2185 = vmatpush1.xpose.msra.mxu0 0.0
    %2186 = vmatprep.subr.mxu0 0.0
    %2187 = vmatpush1.xpose.msra.mxu0 0.0
    %2188 = vmatprep.subr.mxu0 0.0
    %2189 = vmatpush1.xpose.msra.mxu0 0.0
    %2190 = vmatprep.subr.mxu0 0.0
    %2191 = vmatpush1.xpose.msra.mxu0 0.0
    %2192 = vmatprep.subr.mxu0 0.0
    %2193 = vmatpush1.xpose.msra.mxu0 0.0
    %2194 = vmatprep.subr.mxu0 0.0
    %2195 = vmatpush1.xpose.msra.mxu0 0.0
    %2196 = vmatprep.subr.mxu0 0.0
    %2197 = vmatpush1.xpose.msra.mxu0 0.0
    %2198 = vmatprep.subr.mxu0 0.0
    %2199 = vmatpush1.xpose.msra.mxu0 0.0
    %2200 = vmatprep.subr.mxu0 0.0
    %2201 = vmatpush1.xpose.msra.mxu0 0.0
    %2202 = vmatprep.subr.mxu0 0.0
    %2203 = vmatpush1.xpose.msra.mxu0 0.0
    %2204 = vmatprep.subr.mxu0 0.0
    %2205 = vmatpush1.xpose.msra.mxu0 0.0
    %2206 = vmatprep.subr.mxu0 0.0
    %2207 = vmatpush1.xpose.msra.mxu0 0.0
    %2208 = vmatprep.subr.mxu0 0.0
    %2209 = vmatpush1.xpose.msra.mxu0 0.0
    %2210 = vmatprep.mubr.f32.mxu0 0.0
    %2211 = vmatmul.mubr.f32.gmra.mrb[0].mxu0 %v2142
    %v2212 = vpop.f32.mrb[0].mxu0
    %v2213 = vadd.f32 0.0, %v2212
    %v2214 = vpop.f32.mrb[0].mxu0
    %2215 = vdwg.mxu0
    %v2216 = vmul.f32 %v1681, 0.35355338
    %v2217 = vmul.f32 %v1757, 0.35355338
    %v2218 = vmul.f32 %v1833, 0.35355338
    %v2219 = vmul.f32 %v1909, 0.35355338
    %v2220 = vmul.f32 %v1985, 0.35355338
    %v2221 = vmul.f32 %v2061, 0.35355338
    %v2222 = vmul.f32 %v2137, 0.35355338
    %v2223 = vmul.f32 %v2213, 0.35355338
    %v2224 = vsel %vm243, %v2216, -inf
    %2225 = vmax.xlane.f32.xlu0 %v2224
    %v2226 = vpop.xlane.xlu0 %2225
    %v2227 = vsel %vm243, %v2217, -inf
    %2228 = vmax.xlane.f32.xlu0 %v2227
    %v2229 = vpop.xlane.xlu0 %2228
    %v2230 = vsel %vm243, %v2218, -inf
    %2231 = vmax.xlane.f32.xlu0 %v2230
    %v2232 = vpop.xlane.xlu0 %2231
    %v2233 = vsel %vm243, %v2219, -inf
    %2234 = vmax.xlane.f32.xlu0 %v2233
    %v2235 = vpop.xlane.xlu0 %2234
    %v2236 = vsel %vm243, %v2220, -inf
    %2237 = vmax.xlane.f32.xlu0 %v2236
    %v2238 = vpop.xlane.xlu0 %2237
    %v2239 = vsel %vm243, %v2221, -inf
    %2240 = vmax.xlane.f32.xlu0 %v2239
    %v2241 = vpop.xlane.xlu0 %2240
    %v2242 = vsel %vm243, %v2222, -inf
    %2243 = vmax.xlane.f32.xlu0 %v2242
    %v2244 = vpop.xlane.xlu0 %2243
    %v2245 = vsel %vm243, %v2223, -inf
    %2246 = vmax.xlane.f32.xlu0 %v2245
    %v2247 = vpop.xlane.xlu0 %2246
    %v2248 = vsub.f32 %v2216, %v2226
    %v2249 = vsub.f32 %v2217, %v2229
    %v2250 = vsub.f32 %v2218, %v2232
    %v2251 = vsub.f32 %v2219, %v2235
    %v2252 = vsub.f32 %v2220, %v2238
    %v2253 = vsub.f32 %v2221, %v2241
    %v2254 = vsub.f32 %v2222, %v2244
    %v2255 = vsub.f32 %v2223, %v2247
    %v2256 = vmul.f32 %v2248, 1.442695
    %v2257 = vpow.pop %v2256
    %v2258 = vmul.f32 %v2249, 1.442695
    %v2259 = vpow.pop %v2258
    %v2260 = vmul.f32 %v2250, 1.442695
    %v2261 = vpow.pop %v2260
    %v2262 = vmul.f32 %v2251, 1.442695
    %v2263 = vpow.pop %v2262
    %v2264 = vmul.f32 %v2252, 1.442695
    %v2265 = vpow.pop %v2264
    %v2266 = vmul.f32 %v2253, 1.442695
    %v2267 = vpow.pop %v2266
    %v2268 = vmul.f32 %v2254, 1.442695
    %v2269 = vpow.pop %v2268
    %v2270 = vmul.f32 %v2255, 1.442695
    %v2271 = vpow.pop %v2270
    %v2272 = vsel %vm243, %v2257, 0.0
    %2273 = vadd.xlane.f32.xlu0 %v2272
    %v2274 = vpop.xlane.xlu0 %2273
    %v2275 = vsel %vm243, %v2259, 0.0
    %2276 = vadd.xlane.f32.xlu0 %v2275
    %v2277 = vpop.xlane.xlu0 %2276
    %v2278 = vsel %vm243, %v2261, 0.0
    %2279 = vadd.xlane.f32.xlu0 %v2278
    %v2280 = vpop.xlane.xlu0 %2279
    %v2281 = vsel %vm243, %v2263, 0.0
    %2282 = vadd.xlane.f32.xlu0 %v2281
    %v2283 = vpop.xlane.xlu0 %2282
    %v2284 = vsel %vm243, %v2265, 0.0
    %2285 = vadd.xlane.f32.xlu0 %v2284
    %v2286 = vpop.xlane.xlu0 %2285
    %v2287 = vsel %vm243, %v2267, 0.0
    %2288 = vadd.xlane.f32.xlu0 %v2287
    %v2289 = vpop.xlane.xlu0 %2288
    %v2290 = vsel %vm243, %v2269, 0.0
    %2291 = vadd.xlane.f32.xlu0 %v2290
    %v2292 = vpop.xlane.xlu0 %2291
    %v2293 = vsel %vm243, %v2271, 0.0
    %2294 = vadd.xlane.f32.xlu0 %v2293
    %v2295 = vpop.xlane.xlu0 %2294
    %v2296 = vrcp.pop %v2274
    %v2297 = vmul.f32 %v2257, %v2296
    %v2298 = vrcp.pop %v2277
    %v2299 = vmul.f32 %v2259, %v2298
    %v2300 = vrcp.pop %v2280
    %v2301 = vmul.f32 %v2261, %v2300
    %v2302 = vrcp.pop %v2283
    %v2303 = vmul.f32 %v2263, %v2302
    %v2304 = vrcp.pop %v2286
    %v2305 = vmul.f32 %v2265, %v2304
    %v2306 = vrcp.pop %v2289
    %v2307 = vmul.f32 %v2267, %v2306
    %v2308 = vrcp.pop %v2292
    %v2309 = vmul.f32 %v2269, %v2308
    %v2310 = vrcp.pop %v2295
    %v2311 = vmul.f32 %v2271, %v2310
    %v2313 = vsel %vm243, %v2297, 0
    %2315 = vmatprep.subr.mxu0 0.0
    %2316 = vmatpush1.msra.mxu0 %v202
    %2317 = vmatprep.subr.mxu0 0.0
    %2318 = vmatpush1.msra.mxu0 0.0
    %2319 = vmatprep.subr.mxu0 0.0
    %2320 = vmatpush1.msra.mxu0 0.0
    %2321 = vmatprep.subr.mxu0 0.0
    %2322 = vmatpush1.msra.mxu0 0.0
    %2323 = vmatprep.subr.mxu0 0.0
    %2324 = vmatpush1.msra.mxu0 0.0
    %2325 = vmatprep.subr.mxu0 0.0
    %2326 = vmatpush1.msra.mxu0 0.0
    %2327 = vmatprep.subr.mxu0 0.0
    %2328 = vmatpush1.msra.mxu0 0.0
    %2329 = vmatprep.subr.mxu0 0.0
    %2330 = vmatpush1.msra.mxu0 0.0
    %2331 = vmatprep.subr.mxu0 0.0
    %2332 = vmatpush1.msra.mxu0 0.0
    %2333 = vmatprep.subr.mxu0 0.0
    %2334 = vmatpush1.msra.mxu0 0.0
    %2335 = vmatprep.subr.mxu0 0.0
    %2336 = vmatpush1.msra.mxu0 0.0
    %2337 = vmatprep.subr.mxu0 0.0
    %2338 = vmatpush1.msra.mxu0 0.0
    %2339 = vmatprep.subr.mxu0 0.0
    %2340 = vmatpush1.msra.mxu0 0.0
    %2341 = vmatprep.subr.mxu0 0.0
    %2342 = vmatpush1.msra.mxu0 0.0
    %2343 = vmatprep.subr.mxu0 0.0
    %2344 = vmatpush1.msra.mxu0 0.0
    %2345 = vmatprep.subr.mxu0 0.0
    %2346 = vmatpush1.msra.mxu0 0.0
    %2347 = vmatprep.subr.mxu0 0.0
    %2348 = vmatpush1.msra.mxu0 0.0
    %2349 = vmatprep.subr.mxu0 0.0
    %2350 = vmatpush1.msra.mxu0 0.0
    %2351 = vmatprep.subr.mxu0 0.0
    %2352 = vmatpush1.msra.mxu0 0.0
    %2353 = vmatprep.subr.mxu0 0.0
    %2354 = vmatpush1.msra.mxu0 0.0
    %2355 = vmatprep.subr.mxu0 0.0
    %2356 = vmatpush1.msra.mxu0 0.0
    %2357 = vmatprep.subr.mxu0 0.0
    %2358 = vmatpush1.msra.mxu0 0.0
    %2359 = vmatprep.subr.mxu0 0.0
    %2360 = vmatpush1.msra.mxu0 0.0
    %2361 = vmatprep.subr.mxu0 0.0
    %2362 = vmatpush1.msra.mxu0 0.0
    %2363 = vmatprep.subr.mxu0 0.0
    %2364 = vmatpush1.msra.mxu0 0.0
    %2365 = vmatprep.subr.mxu0 0.0
    %2366 = vmatpush1.msra.mxu0 0.0
    %2367 = vmatprep.subr.mxu0 0.0
    %2368 = vmatpush1.msra.mxu0 0.0
    %2369 = vmatprep.subr.mxu0 0.0
    %2370 = vmatpush1.msra.mxu0 0.0
    %2371 = vmatprep.subr.mxu0 0.0
    %2372 = vmatpush1.msra.mxu0 0.0
    %2373 = vmatprep.subr.mxu0 0.0
    %2374 = vmatpush1.msra.mxu0 0.0
    %2375 = vmatprep.subr.mxu0 0.0
    %2376 = vmatpush1.msra.mxu0 0.0
    %2377 = vmatprep.subr.mxu0 0.0
    %2378 = vmatpush1.msra.mxu0 0.0
    %2379 = vmatprep.mubr.f32.mxu0 0.0
    %2380 = vmatmul.mubr.f32.gmra.mrb[0].mxu0 %v2313
    %v2381 = vpop.f32.mrb[0].mxu0
    %v2382 = vadd.f32 0.0, %v2381
    %v2383 = vpop.f32.mrb[0].mxu0
    %2384 = vdwg.mxu0
    %v2386 = vsel %vm243, %v2299, 0
    %2388 = vmatprep.subr.mxu0 0.0
    %2389 = vmatpush1.msra.mxu0 %v1588
    %2390 = vmatprep.subr.mxu0 0.0
    %2391 = vmatpush1.msra.mxu0 0.0
    %2392 = vmatprep.subr.mxu0 0.0
    %2393 = vmatpush1.msra.mxu0 0.0
    %2394 = vmatprep.subr.mxu0 0.0
    %2395 = vmatpush1.msra.mxu0 0.0
    %2396 = vmatprep.subr.mxu0 0.0
    %2397 = vmatpush1.msra.mxu0 0.0
    %2398 = vmatprep.subr.mxu0 0.0
    %2399 = vmatpush1.msra.mxu0 0.0
    %2400 = vmatprep.subr.mxu0 0.0
    %2401 = vmatpush1.msra.mxu0 0.0
    %2402 = vmatprep.subr.mxu0 0.0
    %2403 = vmatpush1.msra.mxu0 0.0
    %2404 = vmatprep.subr.mxu0 0.0
    %2405 = vmatpush1.msra.mxu0 0.0
    %2406 = vmatprep.subr.mxu0 0.0
    %2407 = vmatpush1.msra.mxu0 0.0
    %2408 = vmatprep.subr.mxu0 0.0
    %2409 = vmatpush1.msra.mxu0 0.0
    %2410 = vmatprep.subr.mxu0 0.0
    %2411 = vmatpush1.msra.mxu0 0.0
    %2412 = vmatprep.subr.mxu0 0.0
    %2413 = vmatpush1.msra.mxu0 0.0
    %2414 = vmatprep.subr.mxu0 0.0
    %2415 = vmatpush1.msra.mxu0 0.0
    %2416 = vmatprep.subr.mxu0 0.0
    %2417 = vmatpush1.msra.mxu0 0.0
    %2418 = vmatprep.subr.mxu0 0.0
    %2419 = vmatpush1.msra.mxu0 0.0
    %2420 = vmatprep.subr.mxu0 0.0
    %2421 = vmatpush1.msra.mxu0 0.0
    %2422 = vmatprep.subr.mxu0 0.0
    %2423 = vmatpush1.msra.mxu0 0.0
    %2424 = vmatprep.subr.mxu0 0.0
    %2425 = vmatpush1.msra.mxu0 0.0
    %2426 = vmatprep.subr.mxu0 0.0
    %2427 = vmatpush1.msra.mxu0 0.0
    %2428 = vmatprep.subr.mxu0 0.0
    %2429 = vmatpush1.msra.mxu0 0.0
    %2430 = vmatprep.subr.mxu0 0.0
    %2431 = vmatpush1.msra.mxu0 0.0
    %2432 = vmatprep.subr.mxu0 0.0
    %2433 = vmatpush1.msra.mxu0 0.0
    %2434 = vmatprep.subr.mxu0 0.0
    %2435 = vmatpush1.msra.mxu0 0.0
    %2436 = vmatprep.subr.mxu0 0.0
    %2437 = vmatpush1.msra.mxu0 0.0
    %2438 = vmatprep.subr.mxu0 0.0
    %2439 = vmatpush1.msra.mxu0 0.0
    %2440 = vmatprep.subr.mxu0 0.0
    %2441 = vmatpush1.msra.mxu0 0.0
    %2442 = vmatprep.subr.mxu0 0.0
    %2443 = vmatpush1.msra.mxu0 0.0
    %2444 = vmatprep.subr.mxu0 0.0
    %2445 = vmatpush1.msra.mxu0 0.0
    %2446 = vmatprep.subr.mxu0 0.0
    %2447 = vmatpush1.msra.mxu0 0.0
    %2448 = vmatprep.subr.mxu0 0.0
    %2449 = vmatpush1.msra.mxu0 0.0
    %2450 = vmatprep.subr.mxu0 0.0
    %2451 = vmatpush1.msra.mxu0 0.0
    %2452 = vmatprep.mubr.f32.mxu0 0.0
    %2453 = vmatmul.mubr.f32.gmra.mrb[0].mxu0 %v2386
    %v2454 = vpop.f32.mrb[0].mxu0
    %v2455 = vadd.f32 0.0, %v2454
    %v2456 = vpop.f32.mrb[0].mxu0
    %2457 = vdwg.mxu0
    %v2459 = vsel %vm243, %v2301, 0
    %2461 = vmatprep.subr.mxu0 0.0
    %2462 = vmatpush1.msra.mxu0 %v1591
    %2463 = vmatprep.subr.mxu0 0.0
    %2464 = vmatpush1.msra.mxu0 0.0
    %2465 = vmatprep.subr.mxu0 0.0
    %2466 = vmatpush1.msra.mxu0 0.0
    %2467 = vmatprep.subr.mxu0 0.0
    %2468 = vmatpush1.msra.mxu0 0.0
    %2469 = vmatprep.subr.mxu0 0.0
    %2470 = vmatpush1.msra.mxu0 0.0
    %2471 = vmatprep.subr.mxu0 0.0
    %2472 = vmatpush1.msra.mxu0 0.0
    %2473 = vmatprep.subr.mxu0 0.0
    %2474 = vmatpush1.msra.mxu0 0.0
    %2475 = vmatprep.subr.mxu0 0.0
    %2476 = vmatpush1.msra.mxu0 0.0
    %2477 = vmatprep.subr.mxu0 0.0
    %2478 = vmatpush1.msra.mxu0 0.0
    %2479 = vmatprep.subr.mxu0 0.0
    %2480 = vmatpush1.msra.mxu0 0.0
    %2481 = vmatprep.subr.mxu0 0.0
    %2482 = vmatpush1.msra.mxu0 0.0
    %2483 = vmatprep.subr.mxu0 0.0
    %2484 = vmatpush1.msra.mxu0 0.0
    %2485 = vmatprep.subr.mxu0 0.0
    %2486 = vmatpush1.msra.mxu0 0.0
    %2487 = vmatprep.subr.mxu0 0.0
    %2488 = vmatpush1.msra.mxu0 0.0
    %2489 = vmatprep.subr.mxu0 0.0
    %2490 = vmatpush1.msra.mxu0 0.0
    %2491 = vmatprep.subr.mxu0 0.0
    %2492 = vmatpush1.msra.mxu0 0.0
    %2493 = vmatprep.subr.mxu0 0.0
    %2494 = vmatpush1.msra.mxu0 0.0
    %2495 = vmatprep.subr.mxu0 0.0
    %2496 = vmatpush1.msra.mxu0 0.0
    %2497 = vmatprep.subr.mxu0 0.0
    %2498 = vmatpush1.msra.mxu0 0.0
    %2499 = vmatprep.subr.mxu0 0.0
    %2500 = vmatpush1.msra.mxu0 0.0
    %2501 = vmatprep.subr.mxu0 0.0
    %2502 = vmatpush1.msra.mxu0 0.0
    %2503 = vmatprep.subr.mxu0 0.0
    %2504 = vmatpush1.msra.mxu0 0.0
    %2505 = vmatprep.subr.mxu0 0.0
    %2506 = vmatpush1.msra.mxu0 0.0
    %2507 = vmatprep.subr.mxu0 0.0
    %2508 = vmatpush1.msra.mxu0 0.0
    %2509 = vmatprep.subr.mxu0 0.0
    %2510 = vmatpush1.msra.mxu0 0.0
    %2511 = vmatprep.subr.mxu0 0.0
    %2512 = vmatpush1.msra.mxu0 0.0
    %2513 = vmatprep.subr.mxu0 0.0
    %2514 = vmatpush1.msra.mxu0 0.0
    %2515 = vmatprep.subr.mxu0 0.0
    %2516 = vmatpush1.msra.mxu0 0.0
    %2517 = vmatprep.subr.mxu0 0.0
    %2518 = vmatpush1.msra.mxu0 0.0
    %2519 = vmatprep.subr.mxu0 0.0
    %2520 = vmatpush1.msra.mxu0 0.0
    %2521 = vmatprep.subr.mxu0 0.0
    %2522 = vmatpush1.msra.mxu0 0.0
    %2523 = vmatprep.subr.mxu0 0.0
    %2524 = vmatpush1.msra.mxu0 0.0
    %2525 = vmatprep.mubr.f32.mxu0 0.0
    %2526 = vmatmul.mubr.f32.gmra.mrb[0].mxu0 %v2459
    %v2527 = vpop.f32.mrb[0].mxu0
    %v2528 = vadd.f32 0.0, %v2527
    %v2529 = vpop.f32.mrb[0].mxu0
    %2530 = vdwg.mxu0
    %v2532 = vsel %vm243, %v2303, 0
    %2534 = vmatprep.subr.mxu0 0.0
    %2535 = vmatpush1.msra.mxu0 %v1594
    %2536 = vmatprep.subr.mxu0 0.0
    %2537 = vmatpush1.msra.mxu0 0.0
    %2538 = vmatprep.subr.mxu0 0.0
    %2539 = vmatpush1.msra.mxu0 0.0
    %2540 = vmatprep.subr.mxu0 0.0
    %2541 = vmatpush1.msra.mxu0 0.0
    %2542 = vmatprep.subr.mxu0 0.0
    %2543 = vmatpush1.msra.mxu0 0.0
    %2544 = vmatprep.subr.mxu0 0.0
    %2545 = vmatpush1.msra.mxu0 0.0
    %2546 = vmatprep.subr.mxu0 0.0
    %2547 = vmatpush1.msra.mxu0 0.0
    %2548 = vmatprep.subr.mxu0 0.0
    %2549 = vmatpush1.msra.mxu0 0.0
    %2550 = vmatprep.subr.mxu0 0.0
    %2551 = vmatpush1.msra.mxu0 0.0
    %2552 = vmatprep.subr.mxu0 0.0
    %2553 = vmatpush1.msra.mxu0 0.0
    %2554 = vmatprep.subr.mxu0 0.0
    %2555 = vmatpush1.msra.mxu0 0.0
    %2556 = vmatprep.subr.mxu0 0.0
    %2557 = vmatpush1.msra.mxu0 0.0
    %2558 = vmatprep.subr.mxu0 0.0
    %2559 = vmatpush1.msra.mxu0 0.0
    %2560 = vmatprep.subr.mxu0 0.0
    %2561 = vmatpush1.msra.mxu0 0.0
    %2562 = vmatprep.subr.mxu0 0.0
    %2563 = vmatpush1.msra.mxu0 0.0
    %2564 = vmatprep.subr.mxu0 0.0
    %2565 = vmatpush1.msra.mxu0 0.0
    %2566 = vmatprep.subr.mxu0 0.0
    %2567 = vmatpush1.msra.mxu0 0.0
    %2568 = vmatprep.subr.mxu0 0.0
    %2569 = vmatpush1.msra.mxu0 0.0
    %2570 = vmatprep.subr.mxu0 0.0
    %2571 = vmatpush1.msra.mxu0 0.0
    %2572 = vmatprep.subr.mxu0 0.0
    %2573 = vmatpush1.msra.mxu0 0.0
    %2574 = vmatprep.subr.mxu0 0.0
    %2575 = vmatpush1.msra.mxu0 0.0
    %2576 = vmatprep.subr.mxu0 0.0
    %2577 = vmatpush1.msra.mxu0 0.0
    %2578 = vmatprep.subr.mxu0 0.0
    %2579 = vmatpush1.msra.mxu0 0.0
    %2580 = vmatprep.subr.mxu0 0.0
    %2581 = vmatpush1.msra.mxu0 0.0
    %2582 = vmatprep.subr.mxu0 0.0
    %2583 = vmatpush1.msra.mxu0 0.0
    %2584 = vmatprep.subr.mxu0 0.0
    %2585 = vmatpush1.msra.mxu0 0.0
    %2586 = vmatprep.subr.mxu0 0.0
    %2587 = vmatpush1.msra.mxu0 0.0
    %2588 = vmatprep.subr.mxu0 0.0
    %2589 = vmatpush1.msra.mxu0 0.0
    %2590 = vmatprep.subr.mxu0 0.0
    %2591 = vmatpush1.msra.mxu0 0.0
    %2592 = vmatprep.subr.mxu0 0.0
    %2593 = vmatpush1.msra.mxu0 0.0
    %2594 = vmatprep.subr.mxu0 0.0
    %2595 = vmatpush1.msra.mxu0 0.0
    %2596 = vmatprep.subr.mxu0 0.0
    %2597 = vmatpush1.msra.mxu0 0.0
    %2598 = vmatprep.mubr.f32.mxu0 0.0
    %2599 = vmatmul.mubr.f32.gmra.mrb[0].mxu0 %v2532
    %v2600 = vpop.f32.mrb[0].mxu0
    %v2601 = vadd.f32 0.0, %v2600
    %v2602 = vpop.f32.mrb[0].mxu0
    %2603 = vdwg.mxu0
    %v2605 = vsel %vm243, %v2305, 0
    %2607 = vmatprep.subr.mxu0 0.0
    %2608 = vmatpush1.msra.mxu0 %v1597
    %2609 = vmatprep.subr.mxu0 0.0
    %2610 = vmatpush1.msra.mxu0 0.0
    %2611 = vmatprep.subr.mxu0 0.0
    %2612 = vmatpush1.msra.mxu0 0.0
    %2613 = vmatprep.subr.mxu0 0.0
    %2614 = vmatpush1.msra.mxu0 0.0
    %2615 = vmatprep.subr.mxu0 0.0
    %2616 = vmatpush1.msra.mxu0 0.0
    %2617 = vmatprep.subr.mxu0 0.0
    %2618 = vmatpush1.msra.mxu0 0.0
    %2619 = vmatprep.subr.mxu0 0.0
    %2620 = vmatpush1.msra.mxu0 0.0
    %2621 = vmatprep.subr.mxu0 0.0
    %2622 = vmatpush1.msra.mxu0 0.0
    %2623 = vmatprep.subr.mxu0 0.0
    %2624 = vmatpush1.msra.mxu0 0.0
    %2625 = vmatprep.subr.mxu0 0.0
    %2626 = vmatpush1.msra.mxu0 0.0
    %2627 = vmatprep.subr.mxu0 0.0
    %2628 = vmatpush1.msra.mxu0 0.0
    %2629 = vmatprep.subr.mxu0 0.0
    %2630 = vmatpush1.msra.mxu0 0.0
    %2631 = vmatprep.subr.mxu0 0.0
    %2632 = vmatpush1.msra.mxu0 0.0
    %2633 = vmatprep.subr.mxu0 0.0
    %2634 = vmatpush1.msra.mxu0 0.0
    %2635 = vmatprep.subr.mxu0 0.0
    %2636 = vmatpush1.msra.mxu0 0.0
    %2637 = vmatprep.subr.mxu0 0.0
    %2638 = vmatpush1.msra.mxu0 0.0
    %2639 = vmatprep.subr.mxu0 0.0
    %2640 = vmatpush1.msra.mxu0 0.0
    %2641 = vmatprep.subr.mxu0 0.0
    %2642 = vmatpush1.msra.mxu0 0.0
    %2643 = vmatprep.subr.mxu0 0.0
    %2644 = vmatpush1.msra.mxu0 0.0
    %2645 = vmatprep.subr.mxu0 0.0
    %2646 = vmatpush1.msra.mxu0 0.0
    %2647 = vmatprep.subr.mxu0 0.0
    %2648 = vmatpush1.msra.mxu0 0.0
    %2649 = vmatprep.subr.mxu0 0.0
    %2650 = vmatpush1.msra.mxu0 0.0
    %2651 = vmatprep.subr.mxu0 0.0
    %2652 = vmatpush1.msra.mxu0 0.0
    %2653 = vmatprep.subr.mxu0 0.0
    %2654 = vmatpush1.msra.mxu0 0.0
    %2655 = vmatprep.subr.mxu0 0.0
    %2656 = vmatpush1.msra.mxu0 0.0
    %2657 = vmatprep.subr.mxu0 0.0
    %2658 = vmatpush1.msra.mxu0 0.0
    %2659 = vmatprep.subr.mxu0 0.0
    %2660 = vmatpush1.msra.mxu0 0.0
    %2661 = vmatprep.subr.mxu0 0.0
    %2662 = vmatpush1.msra.mxu0 0.0
    %2663 = vmatprep.subr.mxu0 0.0
    %2664 = vmatpush1.msra.mxu0 0.0
    %2665 = vmatprep.subr.mxu0 0.0
    %2666 = vmatpush1.msra.mxu0 0.0
    %2667 = vmatprep.subr.mxu0 0.0
    %2668 = vmatpush1.msra.mxu0 0.0
    %2669 = vmatprep.subr.mxu0 0.0
    %2670 = vmatpush1.msra.mxu0 0.0
    %2671 = vmatprep.mubr.f32.mxu0 0.0
    %2672 = vmatmul.mubr.f32.gmra.mrb[0].mxu0 %v2605
    %v2673 = vpop.f32.mrb[0].mxu0
    %v2674 = vadd.f32 0.0, %v2673
    %v2675 = vpop.f32.mrb[0].mxu0
    %2676 = vdwg.mxu0
    %v2678 = vsel %vm243, %v2307, 0
    %2680 = vmatprep.subr.mxu0 0.0
    %2681 = vmatpush1.msra.mxu0 %v1600
    %2682 = vmatprep.subr.mxu0 0.0
    %2683 = vmatpush1.msra.mxu0 0.0
    %2684 = vmatprep.subr.mxu0 0.0
    %2685 = vmatpush1.msra.mxu0 0.0
    %2686 = vmatprep.subr.mxu0 0.0
    %2687 = vmatpush1.msra.mxu0 0.0
    %2688 = vmatprep.subr.mxu0 0.0
    %2689 = vmatpush1.msra.mxu0 0.0
    %2690 = vmatprep.subr.mxu0 0.0
    %2691 = vmatpush1.msra.mxu0 0.0
    %2692 = vmatprep.subr.mxu0 0.0
    %2693 = vmatpush1.msra.mxu0 0.0
    %2694 = vmatprep.subr.mxu0 0.0
    %2695 = vmatpush1.msra.mxu0 0.0
    %2696 = vmatprep.subr.mxu0 0.0
    %2697 = vmatpush1.msra.mxu0 0.0
    %2698 = vmatprep.subr.mxu0 0.0
    %2699 = vmatpush1.msra.mxu0 0.0
    %2700 = vmatprep.subr.mxu0 0.0
    %2701 = vmatpush1.msra.mxu0 0.0
    %2702 = vmatprep.subr.mxu0 0.0
    %2703 = vmatpush1.msra.mxu0 0.0
    %2704 = vmatprep.subr.mxu0 0.0
    %2705 = vmatpush1.msra.mxu0 0.0
    %2706 = vmatprep.subr.mxu0 0.0
    %2707 = vmatpush1.msra.mxu0 0.0
    %2708 = vmatprep.subr.mxu0 0.0
    %2709 = vmatpush1.msra.mxu0 0.0
    %2710 = vmatprep.subr.mxu0 0.0
    %2711 = vmatpush1.msra.mxu0 0.0
    %2712 = vmatprep.subr.mxu0 0.0
    %2713 = vmatpush1.msra.mxu0 0.0
    %2714 = vmatprep.subr.mxu0 0.0
    %2715 = vmatpush1.msra.mxu0 0.0
    %2716 = vmatprep.subr.mxu0 0.0
    %2717 = vmatpush1.msra.mxu0 0.0
    %2718 = vmatprep.subr.mxu0 0.0
    %2719 = vmatpush1.msra.mxu0 0.0
    %2720 = vmatprep.subr.mxu0 0.0
    %2721 = vmatpush1.msra.mxu0 0.0
    %2722 = vmatprep.subr.mxu0 0.0
    %2723 = vmatpush1.msra.mxu0 0.0
    %2724 = vmatprep.subr.mxu0 0.0
    %2725 = vmatpush1.msra.mxu0 0.0
    %2726 = vmatprep.subr.mxu0 0.0
    %2727 = vmatpush1.msra.mxu0 0.0
    %2728 = vmatprep.subr.mxu0 0.0
    %2729 = vmatpush1.msra.mxu0 0.0
    %2730 = vmatprep.subr.mxu0 0.0
    %2731 = vmatpush1.msra.mxu0 0.0
    %2732 = vmatprep.subr.mxu0 0.0
    %2733 = vmatpush1.msra.mxu0 0.0
    %2734 = vmatprep.subr.mxu0 0.0
    %2735 = vmatpush1.msra.mxu0 0.0
    %2736 = vmatprep.subr.mxu0 0.0
    %2737 = vmatpush1.msra.mxu0 0.0
    %2738 = vmatprep.subr.mxu0 0.0
    %2739 = vmatpush1.msra.mxu0 0.0
    %2740 = vmatprep.subr.mxu0 0.0
    %2741 = vmatpush1.msra.mxu0 0.0
    %2742 = vmatprep.subr.mxu0 0.0
    %2743 = vmatpush1.msra.mxu0 0.0
    %2744 = vmatprep.mubr.f32.mxu0 0.0
    %2745 = vmatmul.mubr.f32.gmra.mrb[0].mxu0 %v2678
    %v2746 = vpop.f32.mrb[0].mxu0
    %v2747 = vadd.f32 0.0, %v2746
    %v2748 = vpop.f32.mrb[0].mxu0
    %2749 = vdwg.mxu0
    %v2751 = vsel %vm243, %v2309, 0
    %2753 = vmatprep.subr.mxu0 0.0
    %2754 = vmatpush1.msra.mxu0 %v1603
    %2755 = vmatprep.subr.mxu0 0.0
    %2756 = vmatpush1.msra.mxu0 0.0
    %2757 = vmatprep.subr.mxu0 0.0
    %2758 = vmatpush1.msra.mxu0 0.0
    %2759 = vmatprep.subr.mxu0 0.0
    %2760 = vmatpush1.msra.mxu0 0.0
    %2761 = vmatprep.subr.mxu0 0.0
    %2762 = vmatpush1.msra.mxu0 0.0
    %2763 = vmatprep.subr.mxu0 0.0
    %2764 = vmatpush1.msra.mxu0 0.0
    %2765 = vmatprep.subr.mxu0 0.0
    %2766 = vmatpush1.msra.mxu0 0.0
    %2767 = vmatprep.subr.mxu0 0.0
    %2768 = vmatpush1.msra.mxu0 0.0
    %2769 = vmatprep.subr.mxu0 0.0
    %2770 = vmatpush1.msra.mxu0 0.0
    %2771 = vmatprep.subr.mxu0 0.0
    %2772 = vmatpush1.msra.mxu0 0.0
    %2773 = vmatprep.subr.mxu0 0.0
    %2774 = vmatpush1.msra.mxu0 0.0
    %2775 = vmatprep.subr.mxu0 0.0
    %2776 = vmatpush1.msra.mxu0 0.0
    %2777 = vmatprep.subr.mxu0 0.0
    %2778 = vmatpush1.msra.mxu0 0.0
    %2779 = vmatprep.subr.mxu0 0.0
    %2780 = vmatpush1.msra.mxu0 0.0
    %2781 = vmatprep.subr.mxu0 0.0
    %2782 = vmatpush1.msra.mxu0 0.0
    %2783 = vmatprep.subr.mxu0 0.0
    %2784 = vmatpush1.msra.mxu0 0.0
    %2785 = vmatprep.subr.mxu0 0.0
    %2786 = vmatpush1.msra.mxu0 0.0
    %2787 = vmatprep.subr.mxu0 0.0
    %2788 = vmatpush1.msra.mxu0 0.0
    %2789 = vmatprep.subr.mxu0 0.0
    %2790 = vmatpush1.msra.mxu0 0.0
    %2791 = vmatprep.subr.mxu0 0.0
    %2792 = vmatpush1.msra.mxu0 0.0
    %2793 = vmatprep.subr.mxu0 0.0
    %2794 = vmatpush1.msra.mxu0 0.0
    %2795 = vmatprep.subr.mxu0 0.0
    %2796 = vmatpush1.msra.mxu0 0.0
    %2797 = vmatprep.subr.mxu0 0.0
    %2798 = vmatpush1.msra.mxu0 0.0
    %2799 = vmatprep.subr.mxu0 0.0
    %2800 = vmatpush1.msra.mxu0 0.0
    %2801 = vmatprep.subr.mxu0 0.0
    %2802 = vmatpush1.msra.mxu0 0.0
    %2803 = vmatprep.subr.mxu0 0.0
    %2804 = vmatpush1.msra.mxu0 0.0
    %2805 = vmatprep.subr.mxu0 0.0
    %2806 = vmatpush1.msra.mxu0 0.0
    %2807 = vmatprep.subr.mxu0 0.0
    %2808 = vmatpush1.msra.mxu0 0.0
    %2809 = vmatprep.subr.mxu0 0.0
    %2810 = vmatpush1.msra.mxu0 0.0
    %2811 = vmatprep.subr.mxu0 0.0
    %2812 = vmatpush1.msra.mxu0 0.0
    %2813 = vmatprep.subr.mxu0 0.0
    %2814 = vmatpush1.msra.mxu0 0.0
    %2815 = vmatprep.subr.mxu0 0.0
    %2816 = vmatpush1.msra.mxu0 0.0
    %2817 = vmatprep.mubr.f32.mxu0 0.0
    %2818 = vmatmul.mubr.f32.gmra.mrb[0].mxu0 %v2751
    %v2819 = vpop.f32.mrb[0].mxu0
    %v2820 = vadd.f32 0.0, %v2819
    %v2821 = vpop.f32.mrb[0].mxu0
    %2822 = vdwg.mxu0
    %v2824 = vsel %vm243, %v2311, 0
    %2826 = vmatprep.subr.mxu0 0.0
    %2827 = vmatpush1.msra.mxu0 %v1606
    %2828 = vmatprep.subr.mxu0 0.0
    %2829 = vmatpush1.msra.mxu0 0.0
    %2830 = vmatprep.subr.mxu0 0.0
    %2831 = vmatpush1.msra.mxu0 0.0
    %2832 = vmatprep.subr.mxu0 0.0
    %2833 = vmatpush1.msra.mxu0 0.0
    %2834 = vmatprep.subr.mxu0 0.0
    %2835 = vmatpush1.msra.mxu0 0.0
    %2836 = vmatprep.subr.mxu0 0.0
    %2837 = vmatpush1.msra.mxu0 0.0
    %2838 = vmatprep.subr.mxu0 0.0
    %2839 = vmatpush1.msra.mxu0 0.0
    %2840 = vmatprep.subr.mxu0 0.0
    %2841 = vmatpush1.msra.mxu0 0.0
    %2842 = vmatprep.subr.mxu0 0.0
    %2843 = vmatpush1.msra.mxu0 0.0
    %2844 = vmatprep.subr.mxu0 0.0
    %2845 = vmatpush1.msra.mxu0 0.0
    %2846 = vmatprep.subr.mxu0 0.0
    %2847 = vmatpush1.msra.mxu0 0.0
    %2848 = vmatprep.subr.mxu0 0.0
    %2849 = vmatpush1.msra.mxu0 0.0
    %2850 = vmatprep.subr.mxu0 0.0
    %2851 = vmatpush1.msra.mxu0 0.0
    %2852 = vmatprep.subr.mxu0 0.0
    %2853 = vmatpush1.msra.mxu0 0.0
    %2854 = vmatprep.subr.mxu0 0.0
    %2855 = vmatpush1.msra.mxu0 0.0
    %2856 = vmatprep.subr.mxu0 0.0
    %2857 = vmatpush1.msra.mxu0 0.0
    %2858 = vmatprep.subr.mxu0 0.0
    %2859 = vmatpush1.msra.mxu0 0.0
    %2860 = vmatprep.subr.mxu0 0.0
    %2861 = vmatpush1.msra.mxu0 0.0
    %2862 = vmatprep.subr.mxu0 0.0
    %2863 = vmatpush1.msra.mxu0 0.0
    %2864 = vmatprep.subr.mxu0 0.0
    %2865 = vmatpush1.msra.mxu0 0.0
    %2866 = vmatprep.subr.mxu0 0.0
    %2867 = vmatpush1.msra.mxu0 0.0
    %2868 = vmatprep.subr.mxu0 0.0
    %2869 = vmatpush1.msra.mxu0 0.0
    %2870 = vmatprep.subr.mxu0 0.0
    %2871 = vmatpush1.msra.mxu0 0.0
    %2872 = vmatprep.subr.mxu0 0.0
    %2873 = vmatpush1.msra.mxu0 0.0
    %2874 = vmatprep.subr.mxu0 0.0
    %2875 = vmatpush1.msra.mxu0 0.0
    %2876 = vmatprep.subr.mxu0 0.0
    %2877 = vmatpush1.msra.mxu0 0.0
    %2878 = vmatprep.subr.mxu0 0.0
    %2879 = vmatpush1.msra.mxu0 0.0
    %2880 = vmatprep.subr.mxu0 0.0
    %2881 = vmatpush1.msra.mxu0 0.0
    %2882 = vmatprep.subr.mxu0 0.0
    %2883 = vmatpush1.msra.mxu0 0.0
    %2884 = vmatprep.subr.mxu0 0.0
    %2885 = vmatpush1.msra.mxu0 0.0
    %2886 = vmatprep.subr.mxu0 0.0
    %2887 = vmatpush1.msra.mxu0 0.0
    %2888 = vmatprep.subr.mxu0 0.0
    %2889 = vmatpush1.msra.mxu0 0.0
    %2890 = vmatprep.mubr.f32.mxu0 0.0
    %2891 = vmatmul.mubr.f32.gmra.mrb[0].mxu0 %v2824
    %v2892 = vpop.f32.mrb[0].mxu0
    %v2893 = vadd.f32 0.0, %v2892
    %v2894 = vpop.f32.mrb[0].mxu0
    %2895 = vdwg.mxu0
    %2897 = vrot.lane.b32.xlu0 %v2455, 8
    %v2898 = vpop.permute.xlu0 %2897
    %2901 = vrot.lane.b32.xlu0 %v2528, 16
    %v2902 = vpop.permute.xlu0 %2901
    %2905 = vrot.lane.b32.xlu0 %v2601, 24
    %v2906 = vpop.permute.xlu0 %2905
    %2909 = vrot.lane.b32.xlu0 %v2674, 32
    %v2910 = vpop.permute.xlu0 %2909
    %2913 = vrot.lane.b32.xlu0 %v2747, 40
    %v2914 = vpop.permute.xlu0 %2913
    %2917 = vrot.lane.b32.xlu0 %v2820, 48
    %v2918 = vpop.permute.xlu0 %2917
    %2921 = vrot.lane.b32.xlu0 %v2893, 56
    %v2922 = vpop.permute.xlu0 %2921
    %v2924 = vsel %vm243, %v2382, %v2898
    %v2925 = vsel %vm1559, %v2924, %v2902
    %v2926 = vsel %vm1561, %v2925, %v2906
    %v2927 = vsel %vm1563, %v2926, %v2910
    %v2928 = vsel %vm1565, %v2927, %v2914
    %v2929 = vsel %vm1567, %v2928, %v2918
    %v2930 = vsel %vm1569, %v2929, %v2922
    %v2931 = vld [vmem:[#allocation5 + $0x8] ss:$0 sm:$0xff]
    %2940 = vrot.lane.b32.xlu0 %v93, 64
    %v2941 = vpop.permute.xlu0 %2940
    %2942 = vrot.lane.b32.xlu0 %v95, 64
    %v2943 = vpop.permute.xlu0 %2942
    %2944 = vrot.lane.b32.xlu0 %v97, 64
    %v2945 = vpop.permute.xlu0 %2944
    %2946 = vrot.lane.b32.xlu0 %v99, 64
    %v2947 = vpop.permute.xlu0 %2946
    %2948 = vrot.lane.b32.xlu0 %v101, 64
    %v2949 = vpop.permute.xlu0 %2948
    %2950 = vrot.lane.b32.xlu0 %v103, 64
    %v2951 = vpop.permute.xlu0 %2950
    %2952 = vrot.lane.b32.xlu0 %v105, 64
    %v2953 = vpop.permute.xlu0 %2952
    %2954 = vrot.lane.b32.xlu0 %v107, 64
    %v2955 = vpop.permute.xlu0 %2954
    %2965 = vrot.lane.b32.xlu0 %v2931, 64
    %v2966 = vpop.permute.xlu0 %2965
    %v2969 = vsel %vm120, %v1570, 0
    %v2972 = vsel %vm120, %v2930, 0
    %2974 = vmatprep.subr.mxu0 0.0
    %2975 = vmatpush1.msra.mxu0 %v2941
    %2976 = vmatprep.subr.mxu0 0.0
    %2977 = vmatpush1.msra.mxu0 %v2943
    %2978 = vmatprep.subr.mxu0 0.0
    %2979 = vmatpush1.msra.mxu0 %v2945
    %2980 = vmatprep.subr.mxu0 0.0
    %2981 = vmatpush1.msra.mxu0 %v2947
    %2982 = vmatprep.subr.mxu0 0.0
    %2983 = vmatpush1.msra.mxu0 %v2949
    %2984 = vmatprep.subr.mxu0 0.0
    %2985 = vmatpush1.msra.mxu0 %v2951
    %2986 = vmatprep.subr.mxu0 0.0
    %2987 = vmatpush1.msra.mxu0 %v2953
    %2988 = vmatprep.subr.mxu0 0.0
    %2989 = vmatpush1.msra.mxu0 %v2955
    %2990 = vmatprep.subr.mxu0 0.0
    %2991 = vmatpush1.msra.mxu0 0.0
    %2992 = vmatprep.subr.mxu0 0.0
    %2993 = vmatpush1.msra.mxu0 0.0
    %2994 = vmatprep.subr.mxu0 0.0
    %2995 = vmatpush1.msra.mxu0 0.0
    %2996 = vmatprep.subr.mxu0 0.0
    %2997 = vmatpush1.msra.mxu0 0.0
    %2998 = vmatprep.subr.mxu0 0.0
    %2999 = vmatpush1.msra.mxu0 0.0
    %3000 = vmatprep.subr.mxu0 0.0
    %3001 = vmatpush1.msra.mxu0 0.0
    %3002 = vmatprep.subr.mxu0 0.0
    %3003 = vmatpush1.msra.mxu0 0.0
    %3004 = vmatprep.subr.mxu0 0.0
    %3005 = vmatpush1.msra.mxu0 0.0
    %3006 = vmatprep.subr.mxu0 0.0
    %3007 = vmatpush1.msra.mxu0 0.0
    %3008 = vmatprep.subr.mxu0 0.0
    %3009 = vmatpush1.msra.mxu0 0.0
    %3010 = vmatprep.subr.mxu0 0.0
    %3011 = vmatpush1.msra.mxu0 0.0
    %3012 = vmatprep.subr.mxu0 0.0
    %3013 = vmatpush1.msra.mxu0 0.0
    %3014 = vmatprep.subr.mxu0 0.0
    %3015 = vmatpush1.msra.mxu0 0.0
    %3016 = vmatprep.subr.mxu0 0.0
    %3017 = vmatpush1.msra.mxu0 0.0
    %3018 = vmatprep.subr.mxu0 0.0
    %3019 = vmatpush1.msra.mxu0 0.0
    %3020 = vmatprep.subr.mxu0 0.0
    %3021 = vmatpush1.msra.mxu0 0.0
    %3022 = vmatprep.subr.mxu0 0.0
    %3023 = vmatpush1.msra.mxu0 0.0
    %3024 = vmatprep.subr.mxu0 0.0
    %3025 = vmatpush1.msra.mxu0 0.0
    %3026 = vmatprep.subr.mxu0 0.0
    %3027 = vmatpush1.msra.mxu0 0.0
    %3028 = vmatprep.subr.mxu0 0.0
    %3029 = vmatpush1.msra.mxu0 0.0
    %3030 = vmatprep.subr.mxu0 0.0
    %3031 = vmatpush1.msra.mxu0 0.0
    %3032 = vmatprep.subr.mxu0 0.0
    %3033 = vmatpush1.msra.mxu0 0.0
    %3034 = vmatprep.subr.mxu0 0.0
    %3035 = vmatpush1.msra.mxu0 0.0
    %3036 = vmatprep.subr.mxu0 0.0
    %3037 = vmatpush1.msra.mxu0 0.0
    %3038 = vmatprep.mubr.f32.mxu0 0.0
    %3039 = vmatmul.mubr.f32.gmra.mrb[0].mxu0 %v2969
    %v3040 = vpop.f32.mrb[0].mxu0
    %v3041 = vadd.f32 %v2966, %v3040
    %v3042 = vpop.f32.mrb[0].mxu0
    %3043 = vmatprep.mubr.f32.mxu0 0.0
    %3044 = vmatmul.mubr.f32.gmra.mrb[0].mxu0 %v2972
    %v3045 = vpop.f32.mrb[0].mxu0
    %v3046 = vadd.f32 %v2966, %v3045
    %v3047 = vpop.f32.mrb[0].mxu0
    %3048 = vdwg.mxu0
    %v3049 = vld [vmem:[#allocation7 + $0x18] sm:$0xff]
    %v3050 = vld [vmem:[#allocation7 + $0x20] sm:$0xff]
    %v3051 = vld [vmem:[#allocation7 + $0x28] sm:$0xff]
    %v3052 = vld [vmem:[#allocation7 + $0x48] sm:$0xff]
    %v3053 = vld [vmem:[#allocation7 + $0x50] sm:$0xff]
    %v3054 = vld [vmem:[#allocation7 + $0x58] sm:$0xff]
    %v3055 = vld [vmem:[#allocation7 + $0x78] sm:$0xff]
    %v3056 = vld [vmem:[#allocation7 + $0x80] sm:$0xff]
    %v3057 = vld [vmem:[#allocation7 + $0x88] sm:$0xff]
    %v3058 = vld [vmem:[#allocation7 + $0xa8] sm:$0xff]
    %v3059 = vld [vmem:[#allocation7 + $0xb0] sm:$0xff]
    %v3060 = vld [vmem:[#allocation7 + $0xb8] sm:$0xff]
    %v3061 = vld [vmem:[#allocation7 + $0xd8] sm:$0xff]
    %v3062 = vld [vmem:[#allocation7 + $0xe0] sm:$0xff]
    %v3063 = vld [vmem:[#allocation7 + $0xe8] sm:$0xff]
    %v3064 = vld [vmem:[#allocation7 + $0x108] sm:$0xff]
    %v3065 = vld [vmem:[#allocation7 + $0x110] sm:$0xff]
    %v3066 = vld [vmem:[#allocation7 + $0x118] sm:$0xff]
    %v3067 = vld [vmem:[#allocation7 + $0x138] sm:$0xff]
    %v3068 = vld [vmem:[#allocation7 + $0x140] sm:$0xff]
    %v3069 = vld [vmem:[#allocation7 + $0x148] sm:$0xff]
    %v3070 = vld [vmem:[#allocation7 + $0x168] sm:$0xff]
    %v3071 = vld [vmem:[#allocation7 + $0x170] sm:$0xff]
    %v3072 = vld [vmem:[#allocation7 + $0x178] sm:$0xff]
    %s3073 = scalar_lea.vmem [#allocation5], 24
    %v3074 = vld [vmem:[%s3073] ss:$8 sm:$0x7]
    %v3076 = vlaneseq
    %v3077 = vshrl.u32 %v3076, 7
    %v3078 = vsub.s32 0, %v3077
    %v3079 = vrot.slane %v3074, %v3078
    %v3080 = vlaneseq
    %v3081 = vshrl.u32 %v3080, 7
    %v3082 = vsub.s32 1, %v3081
    %v3083 = vrot.slane %v3074, %v3082
    %v3084 = vlaneseq
    %v3085 = vshrl.u32 %v3084, 7
    %v3086 = vsub.s32 2, %v3085
    %v3087 = vrot.slane %v3074, %v3086
    %3112 = vrot.lane.b32.xlu0 %v3049, 57
    %v3113 = vpop.permute.xlu0 %3112
    %3114 = vrot.lane.b32.xlu0 %v3050, 57
    %v3115 = vpop.permute.xlu0 %3114
    %3116 = vrot.lane.b32.xlu0 %v3051, 57
    %v3117 = vpop.permute.xlu0 %3116
    %3118 = vrot.lane.b32.xlu0 %v3052, 57
    %v3119 = vpop.permute.xlu0 %3118
    %3120 = vrot.lane.b32.xlu0 %v3053, 57
    %v3121 = vpop.permute.xlu0 %3120
    %3122 = vrot.lane.b32.xlu0 %v3054, 57
    %v3123 = vpop.permute.xlu0 %3122
    %3124 = vrot.lane.b32.xlu0 %v3055, 57
    %v3125 = vpop.permute.xlu0 %3124
    %3126 = vrot.lane.b32.xlu0 %v3056, 57
    %v3127 = vpop.permute.xlu0 %3126
    %3128 = vrot.lane.b32.xlu0 %v3057, 57
    %v3129 = vpop.permute.xlu0 %3128
    %3130 = vrot.lane.b32.xlu0 %v3058, 57
    %v3131 = vpop.permute.xlu0 %3130
    %3132 = vrot.lane.b32.xlu0 %v3059, 57
    %v3133 = vpop.permute.xlu0 %3132
    %3134 = vrot.lane.b32.xlu0 %v3060, 57
    %v3135 = vpop.permute.xlu0 %3134
    %3136 = vrot.lane.b32.xlu0 %v3061, 57
    %v3137 = vpop.permute.xlu0 %3136
    %3138 = vrot.lane.b32.xlu0 %v3062, 57
    %v3139 = vpop.permute.xlu0 %3138
    %3140 = vrot.lane.b32.xlu0 %v3063, 57
    %v3141 = vpop.permute.xlu0 %3140
    %3142 = vrot.lane.b32.xlu0 %v3064, 57
    %v3143 = vpop.permute.xlu0 %3142
    %3144 = vrot.lane.b32.xlu0 %v3065, 57
    %v3145 = vpop.permute.xlu0 %3144
    %3146 = vrot.lane.b32.xlu0 %v3066, 57
    %v3147 = vpop.permute.xlu0 %3146
    %3148 = vrot.lane.b32.xlu0 %v3067, 57
    %v3149 = vpop.permute.xlu0 %3148
    %3150 = vrot.lane.b32.xlu0 %v3068, 57
    %v3151 = vpop.permute.xlu0 %3150
    %3152 = vrot.lane.b32.xlu0 %v3069, 57
    %v3153 = vpop.permute.xlu0 %3152
    %3154 = vrot.lane.b32.xlu0 %v3070, 57
    %v3155 = vpop.permute.xlu0 %3154
    %3156 = vrot.lane.b32.xlu0 %v3071, 57
    %v3157 = vpop.permute.xlu0 %3156
    %3158 = vrot.lane.b32.xlu0 %v3072, 57
    %v3159 = vpop.permute.xlu0 %3158
    %vm3160 = vcmask 465920
    %v3161 = vsel %vm3160, %v3113, %v3115
    %v3162 = vsel %vm3160, %v3115, %v3117
    %v3163 = vsel %vm3160, %v3119, %v3121
    %v3164 = vsel %vm3160, %v3121, %v3123
    %v3165 = vsel %vm3160, %v3125, %v3127
    %v3166 = vsel %vm3160, %v3127, %v3129
    %v3167 = vsel %vm3160, %v3131, %v3133
    %v3168 = vsel %vm3160, %v3133, %v3135
    %v3169 = vsel %vm3160, %v3137, %v3139
    %v3170 = vsel %vm3160, %v3139, %v3141
    %v3171 = vsel %vm3160, %v3143, %v3145
    %v3172 = vsel %vm3160, %v3145, %v3147
    %v3173 = vsel %vm3160, %v3149, %v3151
    %v3174 = vsel %vm3160, %v3151, %v3153
    %v3175 = vsel %vm3160, %v3155, %v3157
    %v3176 = vsel %vm3160, %v3157, %v3159
    %3193 = vrot.lane.b32.xlu0 %v3079, 57
    %v3194 = vpop.permute.xlu0 %3193
    %3195 = vrot.lane.b32.xlu0 %v3083, 57
    %v3196 = vpop.permute.xlu0 %3195
    %3197 = vrot.lane.b32.xlu0 %v3087, 57
    %v3198 = vpop.permute.xlu0 %3197
    %v3199 = vsel %vm3160, %v3194, %v3196
    %v3200 = vsel %vm3160, %v3196, %v3198
    %v3204 = vsel %vm120, %v3041, 0
    %v3207 = vsel %vm120, %v3046, 0
    %3209 = vmatprep.subr.mxu0 %v3162
    %3210 = vmatpush1.msra.mxu0 %v3161
    %3211 = vmatprep.subr.mxu0 %v3164
    %3212 = vmatpush1.msra.mxu0 %v3163
    %3213 = vmatprep.subr.mxu0 %v3166
    %3214 = vmatpush1.msra.mxu0 %v3165
    %3215 = vmatprep.subr.mxu0 %v3168
    %3216 = vmatpush1.msra.mxu0 %v3167
    %3217 = vmatprep.subr.mxu0 %v3170
    %3218 = vmatpush1.msra.mxu0 %v3169
    %3219 = vmatprep.subr.mxu0 %v3172
    %3220 = vmatpush1.msra.mxu0 %v3171
    %3221 = vmatprep.subr.mxu0 %v3174
    %3222 = vmatpush1.msra.mxu0 %v3173
    %3223 = vmatprep.subr.mxu0 %v3176
    %3224 = vmatpush1.msra.mxu0 %v3175
    %3225 = vmatprep.subr.mxu0 0.0
    %3226 = vmatpush1.msra.mxu0 0.0
    %3227 = vmatprep.subr.mxu0 0.0
    %3228 = vmatpush1.msra.mxu0 0.0
    %3229 = vmatprep.subr.mxu0 0.0
    %3230 = vmatpush1.msra.mxu0 0.0
    %3231 = vmatprep.subr.mxu0 0.0
    %3232 = vmatpush1.msra.mxu0 0.0
    %3233 = vmatprep.subr.mxu0 0.0
    %3234 = vmatpush1.msra.mxu0 0.0
    %3235 = vmatprep.subr.mxu0 0.0
    %3236 = vmatpush1.msra.mxu0 0.0
    %3237 = vmatprep.subr.mxu0 0.0
    %3238 = vmatpush1.msra.mxu0 0.0
    %3239 = vmatprep.subr.mxu0 0.0
    %3240 = vmatpush1.msra.mxu0 0.0
    %3241 = vmatprep.subr.mxu0 0.0
    %3242 = vmatpush1.msra.mxu0 0.0
    %3243 = vmatprep.subr.mxu0 0.0
    %3244 = vmatpush1.msra.mxu0 0.0
    %3245 = vmatprep.subr.mxu0 0.0
    %3246 = vmatpush1.msra.mxu0 0.0
    %3247 = vmatprep.subr.mxu0 0.0
    %3248 = vmatpush1.msra.mxu0 0.0
    %3249 = vmatprep.subr.mxu0 0.0
    %3250 = vmatpush1.msra.mxu0 0.0
    %3251 = vmatprep.subr.mxu0 0.0
    %3252 = vmatpush1.msra.mxu0 0.0
    %3253 = vmatprep.subr.mxu0 0.0
    %3254 = vmatpush1.msra.mxu0 0.0
    %3255 = vmatprep.subr.mxu0 0.0
    %3256 = vmatpush1.msra.mxu0 0.0
    %3257 = vmatprep.subr.mxu0 0.0
    %3258 = vmatpush1.msra.mxu0 0.0
    %3259 = vmatprep.subr.mxu0 0.0
    %3260 = vmatpush1.msra.mxu0 0.0
    %3261 = vmatprep.subr.mxu0 0.0
    %3262 = vmatpush1.msra.mxu0 0.0
    %3263 = vmatprep.subr.mxu0 0.0
    %3264 = vmatpush1.msra.mxu0 0.0
    %3265 = vmatprep.subr.mxu0 0.0
    %3266 = vmatpush1.msra.mxu0 0.0
    %3267 = vmatprep.subr.mxu0 0.0
    %3268 = vmatpush1.msra.mxu0 0.0
    %3269 = vmatprep.subr.mxu0 0.0
    %3270 = vmatpush1.msra.mxu0 0.0
    %3271 = vmatprep.subr.mxu0 0.0
    %3272 = vmatpush1.msra.mxu0 0.0
    %3273 = vmatprep.mubr.f32.mxu0 0.0
    %3274 = vmatmul.mubr.f32.gmra.mrb[0].mxu0 %v3204
    %v3275 = vpop.f32.mrb[0].mxu0
    %v3276 = vadd.f32 %v3199, %v3275
    %v3277 = vpop.f32.mrb[0].mxu0
    %v3278 = vadd.f32 %v3200, %v3277
    %3279 = vmatprep.mubr.f32.mxu0 0.0
    %3280 = vmatmul.mubr.f32.gmra.mrb[0].mxu0 %v3207
    %v3281 = vpop.f32.mrb[0].mxu0
    %v3282 = vadd.f32 %v3199, %v3281
    %v3283 = vpop.f32.mrb[0].mxu0
    %v3284 = vadd.f32 %v3200, %v3283
    %3285 = vdwg.mxu0
    %v3286 = vmax.f32 %v3276, 0.0
    %v3287 = vmax.f32 %v3278, 0.0
    %v3288 = vmax.f32 %v3282, 0.0
    %v3289 = vmax.f32 %v3284, 0.0
    %v3290 = vld [vmem:[#allocation10] sm:$0xff]
    %v3291 = vld [vmem:[#allocation10 + $0x8] sm:$0xff]
    %v3292 = vld [vmem:[#allocation10 + $0x10] sm:$0xff]
    %v3293 = vld [vmem:[#allocation10 + $0x18] sm:$0xff]
    %v3294 = vld [vmem:[#allocation10 + $0x20] sm:$0xff]
    %v3295 = vld [vmem:[#allocation10 + $0x28] sm:$0xff]
    %v3296 = vld [vmem:[#allocation10 + $0x30] sm:$0xff]
    %v3297 = vld [vmem:[#allocation10 + $0x38] sm:$0xff]
    %v3298 = vld [vmem:[#allocation10 + $0x40] sm:$0xff]
    %v3299 = vld [vmem:[#allocation10 + $0x48] sm:$0xff]
    %v3300 = vld [vmem:[#allocation10 + $0x50] sm:$0xff]
    %v3301 = vld [vmem:[#allocation10 + $0x58] sm:$0xff]
    %v3302 = vld [vmem:[#allocation10 + $0x60] sm:$0xff]
    %v3303 = vld [vmem:[#allocation10 + $0x68] sm:$0xff]
    %v3304 = vld [vmem:[#allocation10 + $0x70] sm:$0xff]
    %v3305 = vld [vmem:[#allocation10 + $0x78] sm:$0xff]
    %v3306 = vld [vmem:[#allocation10 + $0x80] sm:$0xff]
    %v3307 = vld [vmem:[#allocation10 + $0x88] sm:$0xff]
    %v3308 = vld [vmem:[#allocation10 + $0x90] sm:$0xff]
    %v3309 = vld [vmem:[#allocation10 + $0x98] sm:$0xff]
    %v3310 = vld [vmem:[#allocation10 + $0xa0] sm:$0xff]
    %v3311 = vld [vmem:[#allocation10 + $0xa8] sm:$0xff]
    %v3312 = vld [vmem:[#allocation10 + $0xb0] sm:$0xff]
    %v3313 = vld [vmem:[#allocation10 + $0xb8] sm:$0xff]
    %v3314 = vld [vmem:[#allocation10 + $0xc0] sm:$0xff]
    %v3315 = vld [vmem:[#allocation10 + $0xc8] sm:$0xff]
    %v3316 = vld [vmem:[#allocation10 + $0xd0] sm:$0xff]
    %v3317 = vld [vmem:[#allocation10 + $0xd8] sm:$0xff]
    %v3318 = vld [vmem:[#allocation10 + $0xe0] sm:$0xff]
    %v3319 = vld [vmem:[#allocation10 + $0xe8] sm:$0xff]
    %v3320 = vld [vmem:[#allocation10 + $0xf0] sm:$0xff]
    %v3321 = vld [vmem:[#allocation10 + $0xf8] sm:$0xff]
    %v3322 = vld [vmem:[#allocation5 + $0x28] ss:$0 sm:$0xff]
    %v3323 = vld [vmem:[#allocation5 + $0x30] ss:$0 sm:$0xff]
    %3326 = vrot.lane.b32.xlu0 %v3322, 57
    %v3327 = vpop.permute.xlu0 %3326
    %3328 = vrot.lane.b32.xlu0 %v3323, 57
    %v3329 = vpop.permute.xlu0 %3328
    %v3330 = vsel %vm3160, %v3327, %v3329
    %3332 = vmatprep.subr.mxu0 0.0
    %3333 = vmatpush1.msra.mxu0 %v3290
    %3334 = vmatprep.subr.mxu0 0.0
    %3335 = vmatpush1.msra.mxu0 %v3291
    %3336 = vmatprep.subr.mxu0 0.0
    %3337 = vmatpush1.msra.mxu0 %v3292
    %3338 = vmatprep.subr.mxu0 0.0
    %3339 = vmatpush1.msra.mxu0 %v3293
    %3340 = vmatprep.subr.mxu0 0.0
    %3341 = vmatpush1.msra.mxu0 %v3294
    %3342 = vmatprep.subr.mxu0 0.0
    %3343 = vmatpush1.msra.mxu0 %v3295
    %3344 = vmatprep.subr.mxu0 0.0
    %3345 = vmatpush1.msra.mxu0 %v3296
    %3346 = vmatprep.subr.mxu0 0.0
    %3347 = vmatpush1.msra.mxu0 %v3297
    %3348 = vmatprep.subr.mxu0 0.0
    %3349 = vmatpush1.msra.mxu0 %v3298
    %3350 = vmatprep.subr.mxu0 0.0
    %3351 = vmatpush1.msra.mxu0 %v3299
    %3352 = vmatprep.subr.mxu0 0.0
    %3353 = vmatpush1.msra.mxu0 %v3300
    %3354 = vmatprep.subr.mxu0 0.0
    %3355 = vmatpush1.msra.mxu0 %v3301
    %3356 = vmatprep.subr.mxu0 0.0
    %3357 = vmatpush1.msra.mxu0 %v3302
    %3358 = vmatprep.subr.mxu0 0.0
    %3359 = vmatpush1.msra.mxu0 %v3303
    %3360 = vmatprep.subr.mxu0 0.0
    %3361 = vmatpush1.msra.mxu0 %v3304
    %3362 = vmatprep.subr.mxu0 0.0
    %3363 = vmatpush1.msra.mxu0 %v3305
    %3364 = vmatprep.subr.mxu0 0.0
    %3365 = vmatpush1.msra.mxu0 %v3306
    %3366 = vmatprep.subr.mxu0 0.0
    %3367 = vmatpush1.msra.mxu0 %v3307
    %3368 = vmatprep.subr.mxu0 0.0
    %3369 = vmatpush1.msra.mxu0 %v3308
    %3370 = vmatprep.subr.mxu0 0.0
    %3371 = vmatpush1.msra.mxu0 %v3309
    %3372 = vmatprep.subr.mxu0 0.0
    %3373 = vmatpush1.msra.mxu0 %v3310
    %3374 = vmatprep.subr.mxu0 0.0
    %3375 = vmatpush1.msra.mxu0 %v3311
    %3376 = vmatprep.subr.mxu0 0.0
    %3377 = vmatpush1.msra.mxu0 %v3312
    %3378 = vmatprep.subr.mxu0 0.0
    %3379 = vmatpush1.msra.mxu0 %v3313
    %3380 = vmatprep.subr.mxu0 0.0
    %3381 = vmatpush1.msra.mxu0 %v3314
    %3382 = vmatprep.subr.mxu0 0.0
    %3383 = vmatpush1.msra.mxu0 %v3315
    %3384 = vmatprep.subr.mxu0 0.0
    %3385 = vmatpush1.msra.mxu0 %v3316
    %3386 = vmatprep.subr.mxu0 0.0
    %3387 = vmatpush1.msra.mxu0 %v3317
    %3388 = vmatprep.subr.mxu0 0.0
    %3389 = vmatpush1.msra.mxu0 %v3318
    %3390 = vmatprep.subr.mxu0 0.0
    %3391 = vmatpush1.msra.mxu0 %v3319
    %3392 = vmatprep.subr.mxu0 0.0
    %3393 = vmatpush1.msra.mxu0 %v3320
    %3394 = vmatprep.subr.mxu0 0.0
    %3395 = vmatpush1.msra.mxu0 %v3321
    %3396 = vmatprep.mubr.f32.mxu0 %v3287
    %3397 = vmatmul.mubr.f32.gmra.mrb[0].mxu0 %v3286
    %v3398 = vpop.f32.mrb[0].mxu0
    %v3399 = vadd.f32 %v3330, %v3398
    %v3400 = vpop.f32.mrb[0].mxu0
    %3401 = vmatprep.mubr.f32.mxu0 %v3289
    %3402 = vmatmul.mubr.f32.gmra.mrb[0].mxu0 %v3288
    %v3403 = vpop.f32.mrb[0].mxu0
    %v3404 = vadd.f32 %v3330, %v3403
    %v3405 = vpop.f32.mrb[0].mxu0
    %3406 = vdwg.mxu0
    %v3407 = vmax.f32 %v3399, 0.0
    %v3408 = vmax.f32 %v3404, 0.0
    %3417 = vrot.lane.b32.xlu0 %v3323, 121
    %v3418 = vpop.permute.xlu0 %3417
    %v3421 = vsel %vm120, %v3407, 0
    %v3424 = vsel %vm120, %v3408, 0
    %3426 = vmatprep.subr.mxu0 0.0
    %3427 = vmatpush1.msra.mxu0 %v3117
    %3428 = vmatprep.subr.mxu0 0.0
    %3429 = vmatpush1.msra.mxu0 %v3123
    %3430 = vmatprep.subr.mxu0 0.0
    %3431 = vmatpush1.msra.mxu0 %v3129
    %3432 = vmatprep.subr.mxu0 0.0
    %3433 = vmatpush1.msra.mxu0 %v3135
    %3434 = vmatprep.subr.mxu0 0.0
    %3435 = vmatpush1.msra.mxu0 %v3141
    %3436 = vmatprep.subr.mxu0 0.0
    %3437 = vmatpush1.msra.mxu0 %v3147
    %3438 = vmatprep.subr.mxu0 0.0
    %3439 = vmatpush1.msra.mxu0 %v3153
    %3440 = vmatprep.subr.mxu0 0.0
    %3441 = vmatpush1.msra.mxu0 %v3159
    %3442 = vmatprep.subr.mxu0 0.0
    %3443 = vmatpush1.msra.mxu0 0.0
    %3444 = vmatprep.subr.mxu0 0.0
    %3445 = vmatpush1.msra.mxu0 0.0
    %3446 = vmatprep.subr.mxu0 0.0
    %3447 = vmatpush1.msra.mxu0 0.0
    %3448 = vmatprep.subr.mxu0 0.0
    %3449 = vmatpush1.msra.mxu0 0.0
    %3450 = vmatprep.subr.mxu0 0.0
    %3451 = vmatpush1.msra.mxu0 0.0
    %3452 = vmatprep.subr.mxu0 0.0
    %3453 = vmatpush1.msra.mxu0 0.0
    %3454 = vmatprep.subr.mxu0 0.0
    %3455 = vmatpush1.msra.mxu0 0.0
    %3456 = vmatprep.subr.mxu0 0.0
    %3457 = vmatpush1.msra.mxu0 0.0
    %3458 = vmatprep.subr.mxu0 0.0
    %3459 = vmatpush1.msra.mxu0 0.0
    %3460 = vmatprep.subr.mxu0 0.0
    %3461 = vmatpush1.msra.mxu0 0.0
    %3462 = vmatprep.subr.mxu0 0.0
    %3463 = vmatpush1.msra.mxu0 0.0
    %3464 = vmatprep.subr.mxu0 0.0
    %3465 = vmatpush1.msra.mxu0 0.0
    %3466 = vmatprep.subr.mxu0 0.0
    %3467 = vmatpush1.msra.mxu0 0.0
    %3468 = vmatprep.subr.mxu0 0.0
    %3469 = vmatpush1.msra.mxu0 0.0
    %3470 = vmatprep.subr.mxu0 0.0
    %3471 = vmatpush1.msra.mxu0 0.0
    %3472 = vmatprep.subr.mxu0 0.0
    %3473 = vmatpush1.msra.mxu0 0.0
    %3474 = vmatprep.subr.mxu0 0.0
    %3475 = vmatpush1.msra.mxu0 0.0
    %3476 = vmatprep.subr.mxu0 0.0
    %3477 = vmatpush1.msra.mxu0 0.0
    %3478 = vmatprep.subr.mxu0 0.0
    %3479 = vmatpush1.msra.mxu0 0.0
    %3480 = vmatprep.subr.mxu0 0.0
    %3481 = vmatpush1.msra.mxu0 0.0
    %3482 = vmatprep.subr.mxu0 0.0
    %3483 = vmatpush1.msra.mxu0 0.0
    %3484 = vmatprep.subr.mxu0 0.0
    %3485 = vmatpush1.msra.mxu0 0.0
    %3486 = vmatprep.subr.mxu0 0.0
    %3487 = vmatpush1.msra.mxu0 0.0
    %3488 = vmatprep.subr.mxu0 0.0
    %3489 = vmatpush1.msra.mxu0 0.0
    %3490 = vmatprep.mubr.f32.mxu0 0.0
    %3491 = vmatmul.mubr.f32.gmra.mrb[0].mxu0 %v3421
    %v3492 = vpop.f32.mrb[0].mxu0
    %v3493 = vadd.f32 %v3418, %v3492
    %v3494 = vpop.f32.mrb[0].mxu0
    %3495 = vmatprep.mubr.f32.mxu0 0.0
    %3496 = vmatmul.mubr.f32.gmra.mrb[0].mxu0 %v3424
    %v3497 = vpop.f32.mrb[0].mxu0
    %v3498 = vadd.f32 %v3418, %v3497
    %v3499 = vpop.f32.mrb[0].mxu0
    %3500 = vdwg.mxu0
    %v3501 = vxor.u32 %v3493, 2147483648
    %v3502 = vxor.u32 %v3498, 2147483648
    %v3503 = vmul.f32 %v3501, 1.442695
    %v3504 = vpow.pop %v3503
    %v3505 = vmul.f32 %v3502, 1.442695
    %v3506 = vpow.pop %v3505
    %v3507 = vadd.f32 %v3504, 1.0
    %v3508 = vadd.f32 %v3506, 1.0
    %v3509 = vrcp.pop %v3507
    %v3510 = vmul.f32 1.0, %v3509
    %v3511 = vrcp.pop %v3508
    %v3512 = vmul.f32 1.0, %v3511
    %v3513 = vld [vmem:[#allocation7 + $0x10] sm:$0xff]
    %v3514 = vld [vmem:[#allocation7 + $0x40] sm:$0xff]
    %v3515 = vld [vmem:[#allocation7 + $0x70] sm:$0xff]
    %v3516 = vld [vmem:[#allocation7 + $0xa0] sm:$0xff]
    %v3517 = vld [vmem:[#allocation7 + $0xd0] sm:$0xff]
    %v3518 = vld [vmem:[#allocation7 + $0x100] sm:$0xff]
    %v3519 = vld [vmem:[#allocation7 + $0x130] sm:$0xff]
    %v3520 = vld [vmem:[#allocation7 + $0x160] sm:$0xff]
    %v3521 = vld [vmem:[#allocation5 + $0x10] ss:$0 sm:$0xff]
    %3522 = vmatprep.subr.mxu0 0.0
    %3523 = vmatpush1.msra.mxu0 %v3513
    %3524 = vmatprep.subr.mxu0 0.0
    %3525 = vmatpush1.msra.mxu0 %v3514
    %3526 = vmatprep.subr.mxu0 0.0
    %3527 = vmatpush1.msra.mxu0 %v3515
    %3528 = vmatprep.subr.mxu0 0.0
    %3529 = vmatpush1.msra.mxu0 %v3516
    %3530 = vmatprep.subr.mxu0 0.0
    %3531 = vmatpush1.msra.mxu0 %v3517
    %3532 = vmatprep.subr.mxu0 0.0
    %3533 = vmatpush1.msra.mxu0 %v3518
    %3534 = vmatprep.subr.mxu0 0.0
    %3535 = vmatpush1.msra.mxu0 %v3519
    %3536 = vmatprep.subr.mxu0 0.0
    %3537 = vmatpush1.msra.mxu0 %v3520
    %3538 = vmatprep.subr.mxu0 0.0
    %3539 = vmatpush1.msra.mxu0 0.0
    %3540 = vmatprep.subr.mxu0 0.0
    %3541 = vmatpush1.msra.mxu0 0.0
    %3542 = vmatprep.subr.mxu0 0.0
    %3543 = vmatpush1.msra.mxu0 0.0
    %3544 = vmatprep.subr.mxu0 0.0
    %3545 = vmatpush1.msra.mxu0 0.0
    %3546 = vmatprep.subr.mxu0 0.0
    %3547 = vmatpush1.msra.mxu0 0.0
    %3548 = vmatprep.subr.mxu0 0.0
    %3549 = vmatpush1.msra.mxu0 0.0
    %3550 = vmatprep.subr.mxu0 0.0
    %3551 = vmatpush1.msra.mxu0 0.0
    %3552 = vmatprep.subr.mxu0 0.0
    %3553 = vmatpush1.msra.mxu0 0.0
    %3554 = vmatprep.subr.mxu0 0.0
    %3555 = vmatpush1.msra.mxu0 0.0
    %3556 = vmatprep.subr.mxu0 0.0
    %3557 = vmatpush1.msra.mxu0 0.0
    %3558 = vmatprep.subr.mxu0 0.0
    %3559 = vmatpush1.msra.mxu0 0.0
    %3560 = vmatprep.subr.mxu0 0.0
    %3561 = vmatpush1.msra.mxu0 0.0
    %3562 = vmatprep.subr.mxu0 0.0
    %3563 = vmatpush1.msra.mxu0 0.0
    %3564 = vmatprep.subr.mxu0 0.0
    %3565 = vmatpush1.msra.mxu0 0.0
    %3566 = vmatprep.subr.mxu0 0.0
    %3567 = vmatpush1.msra.mxu0 0.0
    %3568 = vmatprep.subr.mxu0 0.0
    %3569 = vmatpush1.msra.mxu0 0.0
    %3570 = vmatprep.subr.mxu0 0.0
    %3571 = vmatpush1.msra.mxu0 0.0
    %3572 = vmatprep.subr.mxu0 0.0
    %3573 = vmatpush1.msra.mxu0 0.0
    %3574 = vmatprep.subr.mxu0 0.0
    %3575 = vmatpush1.msra.mxu0 0.0
    %3576 = vmatprep.subr.mxu0 0.0
    %3577 = vmatpush1.msra.mxu0 0.0
    %3578 = vmatprep.subr.mxu0 0.0
    %3579 = vmatpush1.msra.mxu0 0.0
    %3580 = vmatprep.subr.mxu0 0.0
    %3581 = vmatpush1.msra.mxu0 0.0
    %3582 = vmatprep.subr.mxu0 0.0
    %3583 = vmatpush1.msra.mxu0 0.0
    %3584 = vmatprep.subr.mxu0 0.0
    %3585 = vmatpush1.msra.mxu0 0.0
    %3586 = vmatprep.mubr.f32.mxu0 0.0
    %3587 = vmatmul.mubr.f32.gmra.mrb[0].mxu0 %v122
    %v3588 = vpop.f32.mrb[0].mxu0
    %v3589 = vadd.f32 %v3521, %v3588
    %v3590 = vpop.f32.mrb[0].mxu0
    %3591 = vmatprep.mubr.f32.mxu0 0.0
    %3592 = vmatmul.mubr.f32.gmra.mrb[0].mxu0 %v125
    %v3593 = vpop.f32.mrb[0].mxu0
    %v3594 = vadd.f32 %v3521, %v3593
    %v3595 = vpop.f32.mrb[0].mxu0
    %3596 = vdwg.mxu0
    %v3597 = vld [vmem:[#allocation5 + $0x11] ss:$0 sm:$0xff]
    %v3598 = vld [vmem:[#allocation5 + $0x12] ss:$0 sm:$0xff]
    %vm3599 = vcmask 359424
    %v3600 = vsel %vm3599, %v3589, 0.0
    %3601 = vadd.xlane.f32.xlu0 %v3600
    %v3602 = vpop.xlane.xlu0 %3601
    %v3603 = vsel %vm3599, %v3594, 0.0
    %3604 = vadd.xlane.f32.xlu0 %v3603
    %v3605 = vpop.xlane.xlu0 %3604
    %v3606 = vrcp.pop 44.0
    %v3607 = vmul.f32 %v3602, %v3606
    %v3608 = vmul.f32 %v3605, %v3606
    %v3609 = vsub.f32 %v3589, %v3607
    %v3610 = vsub.f32 %v3594, %v3608
    %v3611 = vmul.f32 %v3609, %v3609
    %v3612 = vmul.f32 %v3610, %v3610
    %v3613 = vsel %vm3599, %v3611, 0.0
    %3614 = vadd.xlane.f32.xlu0 %v3613
    %v3615 = vpop.xlane.xlu0 %3614
    %v3616 = vsel %vm3599, %v3612, 0.0
    %3617 = vadd.xlane.f32.xlu0 %v3616
    %v3618 = vpop.xlane.xlu0 %3617
    %v3619 = vmul.f32 %v3615, %v3606
    %v3620 = vmul.f32 %v3618, %v3606
    %v3621 = vadd.f32 %v3619, 1e-05
    %v3622 = vadd.f32 %v3620, 1e-05
    %v3623 = vrsqrt.pop %v3621
    %v3624 = vrsqrt.pop %v3622
    %v3625 = vmul.f32 %v3609, %v3623
    %v3626 = vmul.f32 %v3610, %v3624
    %v3627 = vmul.f32 %v3625, %v3597
    %v3628 = vmul.f32 %v3626, %v3597
    %v3629 = vadd.f32 %v3627, %v3598
    %v3630 = vadd.f32 %v3628, %v3598
    %v3631 = vmax.f32 %v3629, 0.0
    %v3632 = vmax.f32 %v3630, 0.0
    %v3633 = vld [vmem:[#allocation7 + $0x10] sm:$0xff]
    %v3634 = vld [vmem:[#allocation7 + $0x40] sm:$0xff]
    %v3635 = vld [vmem:[#allocation7 + $0x70] sm:$0xff]
    %v3636 = vld [vmem:[#allocation7 + $0xa0] sm:$0xff]
    %v3637 = vld [vmem:[#allocation7 + $0xd0] sm:$0xff]
    %v3638 = vld [vmem:[#allocation7 + $0x100] sm:$0xf]
    %3645 = vrot.lane.b32.xlu0 %v3633, 84
    %v3646 = vpop.permute.xlu0 %3645
    %3647 = vrot.lane.b32.xlu0 %v3634, 84
    %v3648 = vpop.permute.xlu0 %3647
    %3649 = vrot.lane.b32.xlu0 %v3635, 84
    %v3650 = vpop.permute.xlu0 %3649
    %3651 = vrot.lane.b32.xlu0 %v3636, 84
    %v3652 = vpop.permute.xlu0 %3651
    %3653 = vrot.lane.b32.xlu0 %v3637, 84
    %v3654 = vpop.permute.xlu0 %3653
    %3655 = vrot.lane.b32.xlu0 %v3638, 84
    %v3656 = vpop.permute.xlu0 %3655
    %3663 = vrot.lane.b32.xlu0 %v3521, 84
    %v3664 = vpop.permute.xlu0 %3663
    %v3667 = vsel %vm3599, %v3631, 0
    %v3670 = vsel %vm3599, %v3632, 0
    %vm3672 = vcmask 1043456
    %v3673 = vsel %vm3672, %v3656, 0
    %3675 = vmatprep.subr.mxu0 0.0
    %3676 = vmatpush1.msra.mxu0 %v3646
    %3677 = vmatprep.subr.mxu0 0.0
    %3678 = vmatpush1.msra.mxu0 %v3648
    %3679 = vmatprep.subr.mxu0 0.0
    %3680 = vmatpush1.msra.mxu0 %v3650
    %3681 = vmatprep.subr.mxu0 0.0
    %3682 = vmatpush1.msra.mxu0 %v3652
    %3683 = vmatprep.subr.mxu0 0.0
    %3684 = vmatpush1.msra.mxu0 %v3654
    %3685 = vmatprep.subr.mxu0 0.0
    %3686 = vmatpush1.msra.mxu0 %v3673
    %3687 = vmatprep.subr.mxu0 0.0
    %3688 = vmatpush1.msra.mxu0 0.0
    %3689 = vmatprep.subr.mxu0 0.0
    %3690 = vmatpush1.msra.mxu0 0.0
    %3691 = vmatprep.subr.mxu0 0.0
    %3692 = vmatpush1.msra.mxu0 0.0
    %3693 = vmatprep.subr.mxu0 0.0
    %3694 = vmatpush1.msra.mxu0 0.0
    %3695 = vmatprep.subr.mxu0 0.0
    %3696 = vmatpush1.msra.mxu0 0.0
    %3697 = vmatprep.subr.mxu0 0.0
    %3698 = vmatpush1.msra.mxu0 0.0
    %3699 = vmatprep.subr.mxu0 0.0
    %3700 = vmatpush1.msra.mxu0 0.0
    %3701 = vmatprep.subr.mxu0 0.0
    %3702 = vmatpush1.msra.mxu0 0.0
    %3703 = vmatprep.subr.mxu0 0.0
    %3704 = vmatpush1.msra.mxu0 0.0
    %3705 = vmatprep.subr.mxu0 0.0
    %3706 = vmatpush1.msra.mxu0 0.0
    %3707 = vmatprep.subr.mxu0 0.0
    %3708 = vmatpush1.msra.mxu0 0.0
    %3709 = vmatprep.subr.mxu0 0.0
    %3710 = vmatpush1.msra.mxu0 0.0
    %3711 = vmatprep.subr.mxu0 0.0
    %3712 = vmatpush1.msra.mxu0 0.0
    %3713 = vmatprep.subr.mxu0 0.0
    %3714 = vmatpush1.msra.mxu0 0.0
    %3715 = vmatprep.subr.mxu0 0.0
    %3716 = vmatpush1.msra.mxu0 0.0
    %3717 = vmatprep.subr.mxu0 0.0
    %3718 = vmatpush1.msra.mxu0 0.0
    %3719 = vmatprep.subr.mxu0 0.0
    %3720 = vmatpush1.msra.mxu0 0.0
    %3721 = vmatprep.subr.mxu0 0.0
    %3722 = vmatpush1.msra.mxu0 0.0
    %3723 = vmatprep.subr.mxu0 0.0
    %3724 = vmatpush1.msra.mxu0 0.0
    %3725 = vmatprep.subr.mxu0 0.0
    %3726 = vmatpush1.msra.mxu0 0.0
    %3727 = vmatprep.subr.mxu0 0.0
    %3728 = vmatpush1.msra.mxu0 0.0
    %3729 = vmatprep.subr.mxu0 0.0
    %3730 = vmatpush1.msra.mxu0 0.0
    %3731 = vmatprep.subr.mxu0 0.0
    %3732 = vmatpush1.msra.mxu0 0.0
    %3733 = vmatprep.subr.mxu0 0.0
    %3734 = vmatpush1.msra.mxu0 0.0
    %3735 = vmatprep.subr.mxu0 0.0
    %3736 = vmatpush1.msra.mxu0 0.0
    %3737 = vmatprep.subr.mxu0 0.0
    %3738 = vmatpush1.msra.mxu0 0.0
    %3739 = vmatprep.mubr.f32.mxu0 0.0
    %3740 = vmatmul.mubr.f32.gmra.mrb[0].mxu0 %v3667
    %v3741 = vpop.f32.mrb[0].mxu0
    %v3742 = vadd.f32 %v3664, %v3741
    %v3743 = vpop.f32.mrb[0].mxu0
    %3744 = vmatprep.mubr.f32.mxu0 0.0
    %3745 = vmatmul.mubr.f32.gmra.mrb[0].mxu0 %v3670
    %v3746 = vpop.f32.mrb[0].mxu0
    %v3747 = vadd.f32 %v3664, %v3746
    %v3748 = vpop.f32.mrb[0].mxu0
    %3749 = vdwg.mxu0
    %vm3750 = vcmask 244736
    %v3751 = vsel %vm3750, %v3742, 0.0
    %3752 = vadd.xlane.f32.xlu0 %v3751
    %v3753 = vpop.xlane.xlu0 %3752
    %v3754 = vsel %vm3750, %v3747, 0.0
    %3755 = vadd.xlane.f32.xlu0 %v3754
    %v3756 = vpop.xlane.xlu0 %3755
    %v3757 = vrcp.pop 30.0
    %v3758 = vmul.f32 %v3753, %v3757
    %v3759 = vmul.f32 %v3756, %v3757
    %v3760 = vsub.f32 %v3742, %v3758
    %v3761 = vsub.f32 %v3747, %v3759
    %v3762 = vmul.f32 %v3760, %v3760
    %v3763 = vmul.f32 %v3761, %v3761
    %v3764 = vsel %vm3750, %v3762, 0.0
    %3765 = vadd.xlane.f32.xlu0 %v3764
    %v3766 = vpop.xlane.xlu0 %3765
    %v3767 = vsel %vm3750, %v3763, 0.0
    %3768 = vadd.xlane.f32.xlu0 %v3767
    %v3769 = vpop.xlane.xlu0 %3768
    %v3770 = vmul.f32 %v3766, %v3757
    %v3771 = vmul.f32 %v3769, %v3757
    %v3772 = vadd.f32 %v3770, 1e-05
    %v3773 = vadd.f32 %v3771, 1e-05
    %v3774 = vrsqrt.pop %v3772
    %v3775 = vrsqrt.pop %v3773
    %v3776 = vmul.f32 %v3760, %v3774
    %v3777 = vmul.f32 %v3761, %v3775
    %3779 = vrot.lane.b32.xlu0 %v3597, 84
    %v3780 = vpop.permute.xlu0 %3779
    %v3782 = vmul.f32 %v3776, %v3780
    %v3783 = vmul.f32 %v3777, %v3780
    %3785 = vrot.lane.b32.xlu0 %v3598, 84
    %v3786 = vpop.permute.xlu0 %3785
    %v3788 = vadd.f32 %v3782, %v3786
    %v3789 = vadd.f32 %v3783, %v3786
    %v3790 = vmax.f32 %v3788, 0.0
    %v3791 = vmax.f32 %v3789, 0.0
    %v3792 = vld [vmem:[#allocation7 + $0x10] sm:$0xff]
    %v3793 = vld [vmem:[#allocation7 + $0x40] sm:$0xff]
    %v3794 = vld [vmem:[#allocation7 + $0x70] sm:$0xff]
    %v3795 = vld [vmem:[#allocation7 + $0xa0] sm:$0x3f]
    %3800 = vrot.lane.b32.xlu0 %v3792, 54
    %v3801 = vpop.permute.xlu0 %3800
    %3802 = vrot.lane.b32.xlu0 %v3793, 54
    %v3803 = vpop.permute.xlu0 %3802
    %3804 = vrot.lane.b32.xlu0 %v3794, 54
    %v3805 = vpop.permute.xlu0 %3804
    %3806 = vrot.lane.b32.xlu0 %v3795, 54
    %v3807 = vpop.permute.xlu0 %3806
    %3811 = vrot.lane.b32.xlu0 %v3521, 54
    %v3812 = vpop.permute.xlu0 %3811
    %v3815 = vsel %vm3750, %v3790, 0
    %v3818 = vsel %vm3750, %v3791, 0
    %vm3820 = vcmask 1045504
    %v3821 = vsel %vm3820, %v3807, 0
    %3823 = vmatprep.subr.mxu0 0.0
    %3824 = vmatpush1.msra.mxu0 %v3801
    %3825 = vmatprep.subr.mxu0 0.0
    %3826 = vmatpush1.msra.mxu0 %v3803
    %3827 = vmatprep.subr.mxu0 0.0
    %3828 = vmatpush1.msra.mxu0 %v3805
    %3829 = vmatprep.subr.mxu0 0.0
    %3830 = vmatpush1.msra.mxu0 %v3821
    %3831 = vmatprep.subr.mxu0 0.0
    %3832 = vmatpush1.msra.mxu0 0.0
    %3833 = vmatprep.subr.mxu0 0.0
    %3834 = vmatpush1.msra.mxu0 0.0
    %3835 = vmatprep.subr.mxu0 0.0
    %3836 = vmatpush1.msra.mxu0 0.0
    %3837 = vmatprep.subr.mxu0 0.0
    %3838 = vmatpush1.msra.mxu0 0.0
    %3839 = vmatprep.subr.mxu0 0.0
    %3840 = vmatpush1.msra.mxu0 0.0
    %3841 = vmatprep.subr.mxu0 0.0
    %3842 = vmatpush1.msra.mxu0 0.0
    %3843 = vmatprep.subr.mxu0 0.0
    %3844 = vmatpush1.msra.mxu0 0.0
    %3845 = vmatprep.subr.mxu0 0.0
    %3846 = vmatpush1.msra.mxu0 0.0
    %3847 = vmatprep.subr.mxu0 0.0
    %3848 = vmatpush1.msra.mxu0 0.0
    %3849 = vmatprep.subr.mxu0 0.0
    %3850 = vmatpush1.msra.mxu0 0.0
    %3851 = vmatprep.subr.mxu0 0.0
    %3852 = vmatpush1.msra.mxu0 0.0
    %3853 = vmatprep.subr.mxu0 0.0
    %3854 = vmatpush1.msra.mxu0 0.0
    %3855 = vmatprep.subr.mxu0 0.0
    %3856 = vmatpush1.msra.mxu0 0.0
    %3857 = vmatprep.subr.mxu0 0.0
    %3858 = vmatpush1.msra.mxu0 0.0
    %3859 = vmatprep.subr.mxu0 0.0
    %3860 = vmatpush1.msra.mxu0 0.0
    %3861 = vmatprep.subr.mxu0 0.0
    %3862 = vmatpush1.msra.mxu0 0.0
    %3863 = vmatprep.subr.mxu0 0.0
    %3864 = vmatpush1.msra.mxu0 0.0
    %3865 = vmatprep.subr.mxu0 0.0
    %3866 = vmatpush1.msra.mxu0 0.0
    %3867 = vmatprep.subr.mxu0 0.0
    %3868 = vmatpush1.msra.mxu0 0.0
    %3869 = vmatprep.subr.mxu0 0.0
    %3870 = vmatpush1.msra.mxu0 0.0
    %3871 = vmatprep.subr.mxu0 0.0
    %3872 = vmatpush1.msra.mxu0 0.0
    %3873 = vmatprep.subr.mxu0 0.0
    %3874 = vmatpush1.msra.mxu0 0.0
    %3875 = vmatprep.subr.mxu0 0.0
    %3876 = vmatpush1.msra.mxu0 0.0
    %3877 = vmatprep.subr.mxu0 0.0
    %3878 = vmatpush1.msra.mxu0 0.0
    %3879 = vmatprep.subr.mxu0 0.0
    %3880 = vmatpush1.msra.mxu0 0.0
    %3881 = vmatprep.subr.mxu0 0.0
    %3882 = vmatpush1.msra.mxu0 0.0
    %3883 = vmatprep.subr.mxu0 0.0
    %3884 = vmatpush1.msra.mxu0 0.0
    %3885 = vmatprep.subr.mxu0 0.0
    %3886 = vmatpush1.msra.mxu0 0.0
    %3887 = vmatprep.mubr.f32.mxu0 0.0
    %3888 = vmatmul.mubr.f32.gmra.mrb[0].mxu0 %v3815
    %v3889 = vpop.f32.mrb[0].mxu0
    %v3890 = vadd.f32 %v3812, %v3889
    %v3891 = vpop.f32.mrb[0].mxu0
    %3892 = vmatprep.mubr.f32.mxu0 0.0
    %3893 = vmatmul.mubr.f32.gmra.mrb[0].mxu0 %v3818
    %v3894 = vpop.f32.mrb[0].mxu0
    %v3895 = vadd.f32 %v3812, %v3894
    %v3896 = vpop.f32.mrb[0].mxu0
    %3897 = vdwg.mxu0
    %vm3898 = vcmask 171008
    %v3899 = vsel %vm3898, %v3890, 0.0
    %3900 = vadd.xlane.f32.xlu0 %v3899
    %v3901 = vpop.xlane.xlu0 %3900
    %v3902 = vsel %vm3898, %v3895, 0.0
    %3903 = vadd.xlane.f32.xlu0 %v3902
    %v3904 = vpop.xlane.xlu0 %3903
    %v3905 = vrcp.pop 21.0
    %v3906 = vmul.f32 %v3901, %v3905
    %v3907 = vmul.f32 %v3904, %v3905
    %v3908 = vsub.f32 %v3890, %v3906
    %v3909 = vsub.f32 %v3895, %v3907
    %v3910 = vmul.f32 %v3908, %v3908
    %v3911 = vmul.f32 %v3909, %v3909
    %v3912 = vsel %vm3898, %v3910, 0.0
    %3913 = vadd.xlane.f32.xlu0 %v3912
    %v3914 = vpop.xlane.xlu0 %3913
    %v3915 = vsel %vm3898, %v3911, 0.0
    %3916 = vadd.xlane.f32.xlu0 %v3915
    %v3917 = vpop.xlane.xlu0 %3916
    %v3918 = vmul.f32 %v3914, %v3905
    %v3919 = vmul.f32 %v3917, %v3905
    %v3920 = vadd.f32 %v3918, 1e-05
    %v3921 = vadd.f32 %v3919, 1e-05
    %v3922 = vrsqrt.pop %v3920
    %v3923 = vrsqrt.pop %v3921
    %v3924 = vmul.f32 %v3908, %v3922
    %v3925 = vmul.f32 %v3909, %v3923
    %3926 = vrot.lane.b32.xlu0 %v3597, 54
    %v3927 = vpop.permute.xlu0 %3926
    %v3929 = vmul.f32 %v3924, %v3927
    %v3930 = vmul.f32 %v3925, %v3927
    %3931 = vrot.lane.b32.xlu0 %v3598, 54
    %v3932 = vpop.permute.xlu0 %3931
    %v3934 = vadd.f32 %v3929, %v3932
    %v3935 = vadd.f32 %v3930, %v3932
    %v3936 = vmax.f32 %v3934, 0.0
    %v3937 = vmax.f32 %v3935, 0.0
    %v3938 = vld [vmem:[#allocation7 + $0x10] sm:$0xff]
    %v3939 = vld [vmem:[#allocation7 + $0x40] sm:$0xff]
    %v3940 = vld [vmem:[#allocation7 + $0x70] sm:$0x1f]
    %3944 = vrot.lane.b32.xlu0 %v3938, 33
    %v3945 = vpop.permute.xlu0 %3944
    %3946 = vrot.lane.b32.xlu0 %v3939, 33
    %v3947 = vpop.permute.xlu0 %3946
    %3948 = vrot.lane.b32.xlu0 %v3940, 33
    %v3949 = vpop.permute.xlu0 %3948
    %3952 = vrot.lane.b32.xlu0 %v3521, 33
    %v3953 = vpop.permute.xlu0 %3952
    %v3956 = vsel %vm3898, %v3936, 0
    %v3959 = vsel %vm3898, %v3937, 0
    %vm3961 = vcmask 1044480
    %v3962 = vsel %vm3961, %v3949, 0
    %3964 = vmatprep.subr.mxu0 0.0
    %3965 = vmatpush1.msra.mxu0 %v3945
    %3966 = vmatprep.subr.mxu0 0.0
    %3967 = vmatpush1.msra.mxu0 %v3947
    %3968 = vmatprep.subr.mxu0 0.0
    %3969 = vmatpush1.msra.mxu0 %v3962
    %3970 = vmatprep.subr.mxu0 0.0
    %3971 = vmatpush1.msra.mxu0 0.0
    %3972 = vmatprep.subr.mxu0 0.0
    %3973 = vmatpush1.msra.mxu0 0.0
    %3974 = vmatprep.subr.mxu0 0.0
    %3975 = vmatpush1.msra.mxu0 0.0
    %3976 = vmatprep.subr.mxu0 0.0
    %3977 = vmatpush1.msra.mxu0 0.0
    %3978 = vmatprep.subr.mxu0 0.0
    %3979 = vmatpush1.msra.mxu0 0.0
    %3980 = vmatprep.subr.mxu0 0.0
    %3981 = vmatpush1.msra.mxu0 0.0
    %3982 = vmatprep.subr.mxu0 0.0
    %3983 = vmatpush1.msra.mxu0 0.0
    %3984 = vmatprep.subr.mxu0 0.0
    %3985 = vmatpush1.msra.mxu0 0.0
    %3986 = vmatprep.subr.mxu0 0.0
    %3987 = vmatpush1.msra.mxu0 0.0
    %3988 = vmatprep.subr.mxu0 0.0
    %3989 = vmatpush1.msra.mxu0 0.0
    %3990 = vmatprep.subr.mxu0 0.0
    %3991 = vmatpush1.msra.mxu0 0.0
    %3992 = vmatprep.subr.mxu0 0.0
    %3993 = vmatpush1.msra.mxu0 0.0
    %3994 = vmatprep.subr.mxu0 0.0
    %3995 = vmatpush1.msra.mxu0 0.0
    %3996 = vmatprep.subr.mxu0 0.0
    %3997 = vmatpush1.msra.mxu0 0.0
    %3998 = vmatprep.subr.mxu0 0.0
    %3999 = vmatpush1.msra.mxu0 0.0
    %4000 = vmatprep.subr.mxu0 0.0
    %4001 = vmatpush1.msra.mxu0 0.0
    %4002 = vmatprep.subr.mxu0 0.0
    %4003 = vmatpush1.msra.mxu0 0.0
    %4004 = vmatprep.subr.mxu0 0.0
    %4005 = vmatpush1.msra.mxu0 0.0
    %4006 = vmatprep.subr.mxu0 0.0
    %4007 = vmatpush1.msra.mxu0 0.0
    %4008 = vmatprep.subr.mxu0 0.0
    %4009 = vmatpush1.msra.mxu0 0.0
    %4010 = vmatprep.subr.mxu0 0.0
    %4011 = vmatpush1.msra.mxu0 0.0
    %4012 = vmatprep.subr.mxu0 0.0
    %4013 = vmatpush1.msra.mxu0 0.0
    %4014 = vmatprep.subr.mxu0 0.0
    %4015 = vmatpush1.msra.mxu0 0.0
    %4016 = vmatprep.subr.mxu0 0.0
    %4017 = vmatpush1.msra.mxu0 0.0
    %4018 = vmatprep.subr.mxu0 0.0
    %4019 = vmatpush1.msra.mxu0 0.0
    %4020 = vmatprep.subr.mxu0 0.0
    %4021 = vmatpush1.msra.mxu0 0.0
    %4022 = vmatprep.subr.mxu0 0.0
    %4023 = vmatpush1.msra.mxu0 0.0
    %4024 = vmatprep.subr.mxu0 0.0
    %4025 = vmatpush1.msra.mxu0 0.0
    %4026 = vmatprep.subr.mxu0 0.0
    %4027 = vmatpush1.msra.mxu0 0.0
    %4028 = vmatprep.mubr.f32.mxu0 0.0
    %4029 = vmatmul.mubr.f32.gmra.mrb[0].mxu0 %v3956
    %v4030 = vpop.f32.mrb[0].mxu0
    %v4031 = vadd.f32 %v3953, %v4030
    %v4032 = vpop.f32.mrb[0].mxu0
    %4033 = vmatprep.mubr.f32.mxu0 0.0
    %4034 = vmatmul.mubr.f32.gmra.mrb[0].mxu0 %v3959
    %v4035 = vpop.f32.mrb[0].mxu0
    %v4036 = vadd.f32 %v3953, %v4035
    %v4037 = vpop.f32.mrb[0].mxu0
    %4038 = vdwg.mxu0
    %vm4039 = vcmask 48128
    %v4040 = vsel %vm4039, %v4031, 0.0
    %4041 = vadd.xlane.f32.xlu0 %v4040
    %v4042 = vpop.xlane.xlu0 %4041
    %v4043 = vsel %vm4039, %v4036, 0.0
    %4044 = vadd.xlane.f32.xlu0 %v4043
    %v4045 = vpop.xlane.xlu0 %4044
    %v4046 = vrcp.pop 6.0
    %v4047 = vmul.f32 %v4042, %v4046
    %v4048 = vmul.f32 %v4045, %v4046
    %v4049 = vsub.f32 %v4031, %v4047
    %v4050 = vsub.f32 %v4036, %v4048
    %v4051 = vmul.f32 %v4049, %v4049
    %v4052 = vmul.f32 %v4050, %v4050
    %v4053 = vsel %vm4039, %v4051, 0.0
    %4054 = vadd.xlane.f32.xlu0 %v4053
    %v4055 = vpop.xlane.xlu0 %4054
    %v4056 = vsel %vm4039, %v4052, 0.0
    %4057 = vadd.xlane.f32.xlu0 %v4056
    %v4058 = vpop.xlane.xlu0 %4057
    %v4059 = vmul.f32 %v4055, %v4046
    %v4060 = vmul.f32 %v4058, %v4046
    %v4061 = vadd.f32 %v4059, 1e-05
    %v4062 = vadd.f32 %v4060, 1e-05
    %v4063 = vrsqrt.pop %v4061
    %v4064 = vrsqrt.pop %v4062
    %v4065 = vmul.f32 %v4049, %v4063
    %v4066 = vmul.f32 %v4050, %v4064
    %4067 = vrot.lane.b32.xlu0 %v3597, 33
    %v4068 = vpop.permute.xlu0 %4067
    %v4070 = vmul.f32 %v4065, %v4068
    %v4071 = vmul.f32 %v4066, %v4068
    %4072 = vrot.lane.b32.xlu0 %v3598, 33
    %v4073 = vpop.permute.xlu0 %4072
    %v4075 = vadd.f32 %v4070, %v4073
    %v4076 = vadd.f32 %v4071, %v4073
    %v4077 = vmax.f32 %v4075, 0.0
    %v4078 = vmax.f32 %v4076, 0.0
    %v4079 = vld [vmem:[#allocation7 + $0x10] sm:$0x3f]
    %4081 = vrot.lane.b32.xlu0 %v4079, 27
    %v4082 = vpop.permute.xlu0 %4081
    %4083 = vrot.lane.b32.xlu0 %v3521, 27
    %v4084 = vpop.permute.xlu0 %4083
    %v4087 = vsel %vm4039, %v4077, 0
    %v4090 = vsel %vm4039, %v4078, 0
    %v4092 = vsel %vm3820, %v4082, 0
    %4094 = vmatprep.subr.mxu0 0.0
    %4095 = vmatpush1.msra.mxu0 %v4092
    %4096 = vmatprep.subr.mxu0 0.0
    %4097 = vmatpush1.msra.mxu0 0.0
    %4098 = vmatprep.subr.mxu0 0.0
    %4099 = vmatpush1.msra.mxu0 0.0
    %4100 = vmatprep.subr.mxu0 0.0
    %4101 = vmatpush1.msra.mxu0 0.0
    %4102 = vmatprep.subr.mxu0 0.0
    %4103 = vmatpush1.msra.mxu0 0.0
    %4104 = vmatprep.subr.mxu0 0.0
    %4105 = vmatpush1.msra.mxu0 0.0
    %4106 = vmatprep.subr.mxu0 0.0
    %4107 = vmatpush1.msra.mxu0 0.0
    %4108 = vmatprep.subr.mxu0 0.0
    %4109 = vmatpush1.msra.mxu0 0.0
    %4110 = vmatprep.subr.mxu0 0.0
    %4111 = vmatpush1.msra.mxu0 0.0
    %4112 = vmatprep.subr.mxu0 0.0
    %4113 = vmatpush1.msra.mxu0 0.0
    %4114 = vmatprep.subr.mxu0 0.0
    %4115 = vmatpush1.msra.mxu0 0.0
    %4116 = vmatprep.subr.mxu0 0.0
    %4117 = vmatpush1.msra.mxu0 0.0
    %4118 = vmatprep.subr.mxu0 0.0
    %4119 = vmatpush1.msra.mxu0 0.0
    %4120 = vmatprep.subr.mxu0 0.0
    %4121 = vmatpush1.msra.mxu0 0.0
    %4122 = vmatprep.subr.mxu0 0.0
    %4123 = vmatpush1.msra.mxu0 0.0
    %4124 = vmatprep.subr.mxu0 0.0
    %4125 = vmatpush1.msra.mxu0 0.0
    %4126 = vmatprep.subr.mxu0 0.0
    %4127 = vmatpush1.msra.mxu0 0.0
    %4128 = vmatprep.subr.mxu0 0.0
    %4129 = vmatpush1.msra.mxu0 0.0
    %4130 = vmatprep.subr.mxu0 0.0
    %4131 = vmatpush1.msra.mxu0 0.0
    %4132 = vmatprep.subr.mxu0 0.0
    %4133 = vmatpush1.msra.mxu0 0.0
    %4134 = vmatprep.subr.mxu0 0.0
    %4135 = vmatpush1.msra.mxu0 0.0
    %4136 = vmatprep.subr.mxu0 0.0
    %4137 = vmatpush1.msra.mxu0 0.0
    %4138 = vmatprep.subr.mxu0 0.0
    %4139 = vmatpush1.msra.mxu0 0.0
    %4140 = vmatprep.subr.mxu0 0.0
    %4141 = vmatpush1.msra.mxu0 0.0
    %4142 = vmatprep.subr.mxu0 0.0
    %4143 = vmatpush1.msra.mxu0 0.0
    %4144 = vmatprep.subr.mxu0 0.0
    %4145 = vmatpush1.msra.mxu0 0.0
    %4146 = vmatprep.subr.mxu0 0.0
    %4147 = vmatpush1.msra.mxu0 0.0
    %4148 = vmatprep.subr.mxu0 0.0
    %4149 = vmatpush1.msra.mxu0 0.0
    %4150 = vmatprep.subr.mxu0 0.0
    %4151 = vmatpush1.msra.mxu0 0.0
    %4152 = vmatprep.subr.mxu0 0.0
    %4153 = vmatpush1.msra.mxu0 0.0
    %4154 = vmatprep.subr.mxu0 0.0
    %4155 = vmatpush1.msra.mxu0 0.0
    %4156 = vmatprep.subr.mxu0 0.0
    %4157 = vmatpush1.msra.mxu0 0.0
    %4158 = vmatprep.mubr.f32.mxu0 0.0
    %4159 = vmatmul.mubr.f32.gmra.mrb[0].mxu0 %v4087
    %v4160 = vpop.f32.mrb[0].mxu0
    %v4161 = vadd.f32 %v4084, %v4160
    %v4162 = vpop.f32.mrb[0].mxu0
    %4163 = vmatprep.mubr.f32.mxu0 0.0
    %4164 = vmatmul.mubr.f32.gmra.mrb[0].mxu0 %v4090
    %v4165 = vpop.f32.mrb[0].mxu0
    %v4166 = vadd.f32 %v4084, %v4165
    %v4167 = vpop.f32.mrb[0].mxu0
    %4168 = vdwg.mxu0
    %v4169 = vsel %vm243, %v4161, 0.0
    %4170 = vadd.xlane.f32.xlu0 %v4169
    %v4171 = vpop.xlane.xlu0 %4170
    %v4172 = vsel %vm243, %v4166, 0.0
    %4173 = vadd.xlane.f32.xlu0 %v4172
    %v4174 = vpop.xlane.xlu0 %4173
    %v4175 = vrcp.pop 8.0
    %v4176 = vmul.f32 %v4171, %v4175
    %v4177 = vmul.f32 %v4174, %v4175
    %v4178 = vsub.f32 %v4161, %v4176
    %v4179 = vsub.f32 %v4166, %v4177
    %v4180 = vmul.f32 %v4178, %v4178
    %v4181 = vmul.f32 %v4179, %v4179
    %v4182 = vsel %vm243, %v4180, 0.0
    %4183 = vadd.xlane.f32.xlu0 %v4182
    %v4184 = vpop.xlane.xlu0 %4183
    %v4185 = vsel %vm243, %v4181, 0.0
    %4186 = vadd.xlane.f32.xlu0 %v4185
    %v4187 = vpop.xlane.xlu0 %4186
    %v4188 = vmul.f32 %v4184, %v4175
    %v4189 = vmul.f32 %v4187, %v4175
    %v4190 = vadd.f32 %v4188, 1e-05
    %v4191 = vadd.f32 %v4189, 1e-05
    %v4192 = vrsqrt.pop %v4190
    %v4193 = vrsqrt.pop %v4191
    %v4194 = vmul.f32 %v4178, %v4192
    %v4195 = vmul.f32 %v4179, %v4193
    %4196 = vrot.lane.b32.xlu0 %v3597, 27
    %v4197 = vpop.permute.xlu0 %4196
    %v4199 = vmul.f32 %v4194, %v4197
    %v4200 = vmul.f32 %v4195, %v4197
    %4201 = vrot.lane.b32.xlu0 %v3598, 27
    %v4202 = vpop.permute.xlu0 %4201
    %v4204 = vadd.f32 %v4199, %v4202
    %v4205 = vadd.f32 %v4200, %v4202
    %v4206 = vmax.f32 %v4204, 0.0
    %v4207 = vmax.f32 %v4205, 0.0
    %v4208 = vld [vmem:[#allocation7 + $0x10] sm:$0xff]
    %4210 = vrot.lane.b32.xlu0 %v4208, 19
    %v4211 = vpop.permute.xlu0 %4210
    %4213 = vrot.lane.b32.xlu0 %v3521, 19
    %v4214 = vpop.permute.xlu0 %4213
    %v4217 = vsel %vm243, %v4206, 0
    %v4220 = vsel %vm243, %v4207, 0
    %4222 = vmatprep.subr.mxu0 0.0
    %4223 = vmatpush1.msra.mxu0 %v4211
    %4224 = vmatprep.subr.mxu0 0.0
    %4225 = vmatpush1.msra.mxu0 0.0
    %4226 = vmatprep.subr.mxu0 0.0
    %4227 = vmatpush1.msra.mxu0 0.0
    %4228 = vmatprep.subr.mxu0 0.0
    %4229 = vmatpush1.msra.mxu0 0.0
    %4230 = vmatprep.subr.mxu0 0.0
    %4231 = vmatpush1.msra.mxu0 0.0
    %4232 = vmatprep.subr.mxu0 0.0
    %4233 = vmatpush1.msra.mxu0 0.0
    %4234 = vmatprep.subr.mxu0 0.0
    %4235 = vmatpush1.msra.mxu0 0.0
    %4236 = vmatprep.subr.mxu0 0.0
    %4237 = vmatpush1.msra.mxu0 0.0
    %4238 = vmatprep.subr.mxu0 0.0
    %4239 = vmatpush1.msra.mxu0 0.0
    %4240 = vmatprep.subr.mxu0 0.0
    %4241 = vmatpush1.msra.mxu0 0.0
    %4242 = vmatprep.subr.mxu0 0.0
    %4243 = vmatpush1.msra.mxu0 0.0
    %4244 = vmatprep.subr.mxu0 0.0
    %4245 = vmatpush1.msra.mxu0 0.0
    %4246 = vmatprep.subr.mxu0 0.0
    %4247 = vmatpush1.msra.mxu0 0.0
    %4248 = vmatprep.subr.mxu0 0.0
    %4249 = vmatpush1.msra.mxu0 0.0
    %4250 = vmatprep.subr.mxu0 0.0
    %4251 = vmatpush1.msra.mxu0 0.0
    %4252 = vmatprep.subr.mxu0 0.0
    %4253 = vmatpush1.msra.mxu0 0.0
    %4254 = vmatprep.subr.mxu0 0.0
    %4255 = vmatpush1.msra.mxu0 0.0
    %4256 = vmatprep.subr.mxu0 0.0
    %4257 = vmatpush1.msra.mxu0 0.0
    %4258 = vmatprep.subr.mxu0 0.0
    %4259 = vmatpush1.msra.mxu0 0.0
    %4260 = vmatprep.subr.mxu0 0.0
    %4261 = vmatpush1.msra.mxu0 0.0
    %4262 = vmatprep.subr.mxu0 0.0
    %4263 = vmatpush1.msra.mxu0 0.0
    %4264 = vmatprep.subr.mxu0 0.0
    %4265 = vmatpush1.msra.mxu0 0.0
    %4266 = vmatprep.subr.mxu0 0.0
    %4267 = vmatpush1.msra.mxu0 0.0
    %4268 = vmatprep.subr.mxu0 0.0
    %4269 = vmatpush1.msra.mxu0 0.0
    %4270 = vmatprep.subr.mxu0 0.0
    %4271 = vmatpush1.msra.mxu0 0.0
    %4272 = vmatprep.subr.mxu0 0.0
    %4273 = vmatpush1.msra.mxu0 0.0
    %4274 = vmatprep.subr.mxu0 0.0
    %4275 = vmatpush1.msra.mxu0 0.0
    %4276 = vmatprep.subr.mxu0 0.0
    %4277 = vmatpush1.msra.mxu0 0.0
    %4278 = vmatprep.subr.mxu0 0.0
    %4279 = vmatpush1.msra.mxu0 0.0
    %4280 = vmatprep.subr.mxu0 0.0
    %4281 = vmatpush1.msra.mxu0 0.0
    %4282 = vmatprep.subr.mxu0 0.0
    %4283 = vmatpush1.msra.mxu0 0.0
    %4284 = vmatprep.subr.mxu0 0.0
    %4285 = vmatpush1.msra.mxu0 0.0
    %4286 = vmatprep.mubr.f32.mxu0 0.0
    %4287 = vmatmul.mubr.f32.gmra.mrb[0].mxu0 %v4217
    %v4288 = vpop.f32.mrb[0].mxu0
    %v4289 = vadd.f32 %v4214, %v4288
    %v4290 = vpop.f32.mrb[0].mxu0
    %4291 = vmatprep.mubr.f32.mxu0 0.0
    %4292 = vmatmul.mubr.f32.gmra.mrb[0].mxu0 %v4220
    %v4293 = vpop.f32.mrb[0].mxu0
    %v4294 = vadd.f32 %v4214, %v4293
    %v4295 = vpop.f32.mrb[0].mxu0
    %4296 = vdwg.mxu0
    %vm4297 = vcmask 89088
    %v4298 = vsel %vm4297, %v4289, 0.0
    %4299 = vadd.xlane.f32.xlu0 %v4298
    %v4300 = vpop.xlane.xlu0 %4299
    %v4301 = vsel %vm4297, %v4294, 0.0
    %4302 = vadd.xlane.f32.xlu0 %v4301
    %v4303 = vpop.xlane.xlu0 %4302
    %v4304 = vrcp.pop 11.0
    %v4305 = vmul.f32 %v4300, %v4304
    %v4306 = vmul.f32 %v4303, %v4304
    %v4307 = vsub.f32 %v4289, %v4305
    %v4308 = vsub.f32 %v4294, %v4306
    %v4309 = vmul.f32 %v4307, %v4307
    %v4310 = vmul.f32 %v4308, %v4308
    %v4311 = vsel %vm4297, %v4309, 0.0
    %4312 = vadd.xlane.f32.xlu0 %v4311
    %v4313 = vpop.xlane.xlu0 %4312
    %v4314 = vsel %vm4297, %v4310, 0.0
    %4315 = vadd.xlane.f32.xlu0 %v4314
    %v4316 = vpop.xlane.xlu0 %4315
    %v4317 = vmul.f32 %v4313, %v4304
    %v4318 = vmul.f32 %v4316, %v4304
    %v4319 = vadd.f32 %v4317, 1e-05
    %v4320 = vadd.f32 %v4318, 1e-05
    %v4321 = vrsqrt.pop %v4319
    %v4322 = vrsqrt.pop %v4320
    %v4323 = vmul.f32 %v4307, %v4321
    %v4324 = vmul.f32 %v4308, %v4322
    %4325 = vrot.lane.b32.xlu0 %v3597, 19
    %v4326 = vpop.permute.xlu0 %4325
    %v4328 = vmul.f32 %v4323, %v4326
    %v4329 = vmul.f32 %v4324, %v4326
    %4330 = vrot.lane.b32.xlu0 %v3598, 19
    %v4331 = vpop.permute.xlu0 %4330
    %v4333 = vadd.f32 %v4328, %v4331
    %v4334 = vadd.f32 %v4329, %v4331
    %v4335 = vmax.f32 %v4333, 0.0
    %v4336 = vmax.f32 %v4334, 0.0
    %v4337 = vld [vmem:[#allocation7 + $0x10] sm:$0xff]
    %v4338 = vld [vmem:[#allocation7 + $0x18] sm:$0xff]
    %v4339 = vld [vmem:[#allocation7 + $0x40] sm:$0x7]
    %v4340 = vld [vmem:[#allocation7 + $0x48] sm:$0x7]
    %v4341 = vld [vmem:[#allocation5 + $0x10] ss:$0 sm:$0xff]
    %v4342 = vld [vmem:[#allocation5 + $0x18] ss:$0 sm:$0xff]
    %4347 = vrot.lane.b32.xlu0 %v4337, 8
    %v4348 = vpop.permute.xlu0 %4347
    %4349 = vrot.lane.b32.xlu0 %v4338, 8
    %v4350 = vpop.permute.xlu0 %4349
    %4351 = vrot.lane.b32.xlu0 %v4339, 8
    %v4352 = vpop.permute.xlu0 %4351
    %4353 = vrot.lane.b32.xlu0 %v4340, 8
    %v4354 = vpop.permute.xlu0 %4353
    %v4355 = vsel %vm243, %v4348, %v4350
    %v4356 = vsel %vm243, %v4352, %v4354
    %4360 = vrot.lane.b32.xlu0 %v4341, 8
    %v4361 = vpop.permute.xlu0 %4360
    %4362 = vrot.lane.b32.xlu0 %v4342, 8
    %v4363 = vpop.permute.xlu0 %4362
    %v4364 = vsel %vm243, %v4361, %v4363
    %v4367 = vsel %vm4297, %v4335, 0
    %v4370 = vsel %vm4297, %v4336, 0
    %vm4372 = vcmask 1042432
    %v4373 = vsel %vm4372, %v4356, 0
    %4375 = vmatprep.subr.mxu0 0.0
    %4376 = vmatpush1.msra.mxu0 %v4355
    %4377 = vmatprep.subr.mxu0 0.0
    %4378 = vmatpush1.msra.mxu0 %v4373
    %4379 = vmatprep.subr.mxu0 0.0
    %4380 = vmatpush1.msra.mxu0 0.0
    %4381 = vmatprep.subr.mxu0 0.0
    %4382 = vmatpush1.msra.mxu0 0.0
    %4383 = vmatprep.subr.mxu0 0.0
    %4384 = vmatpush1.msra.mxu0 0.0
    %4385 = vmatprep.subr.mxu0 0.0
    %4386 = vmatpush1.msra.mxu0 0.0
    %4387 = vmatprep.subr.mxu0 0.0
    %4388 = vmatpush1.msra.mxu0 0.0
    %4389 = vmatprep.subr.mxu0 0.0
    %4390 = vmatpush1.msra.mxu0 0.0
    %4391 = vmatprep.subr.mxu0 0.0
    %4392 = vmatpush1.msra.mxu0 0.0
    %4393 = vmatprep.subr.mxu0 0.0
    %4394 = vmatpush1.msra.mxu0 0.0
    %4395 = vmatprep.subr.mxu0 0.0
    %4396 = vmatpush1.msra.mxu0 0.0
    %4397 = vmatprep.subr.mxu0 0.0
    %4398 = vmatpush1.msra.mxu0 0.0
    %4399 = vmatprep.subr.mxu0 0.0
    %4400 = vmatpush1.msra.mxu0 0.0
    %4401 = vmatprep.subr.mxu0 0.0
    %4402 = vmatpush1.msra.mxu0 0.0
    %4403 = vmatprep.subr.mxu0 0.0
    %4404 = vmatpush1.msra.mxu0 0.0
    %4405 = vmatprep.subr.mxu0 0.0
    %4406 = vmatpush1.msra.mxu0 0.0
    %4407 = vmatprep.subr.mxu0 0.0
    %4408 = vmatpush1.msra.mxu0 0.0
    %4409 = vmatprep.subr.mxu0 0.0
    %4410 = vmatpush1.msra.mxu0 0.0
    %4411 = vmatprep.subr.mxu0 0.0
    %4412 = vmatpush1.msra.mxu0 0.0
    %4413 = vmatprep.subr.mxu0 0.0
    %4414 = vmatpush1.msra.mxu0 0.0
    %4415 = vmatprep.subr.mxu0 0.0
    %4416 = vmatpush1.msra.mxu0 0.0
    %4417 = vmatprep.subr.mxu0 0.0
    %4418 = vmatpush1.msra.mxu0 0.0
    %4419 = vmatprep.subr.mxu0 0.0
    %4420 = vmatpush1.msra.mxu0 0.0
    %4421 = vmatprep.subr.mxu0 0.0
    %4422 = vmatpush1.msra.mxu0 0.0
    %4423 = vmatprep.subr.mxu0 0.0
    %4424 = vmatpush1.msra.mxu0 0.0
    %4425 = vmatprep.subr.mxu0 0.0
    %4426 = vmatpush1.msra.mxu0 0.0
    %4427 = vmatprep.subr.mxu0 0.0
    %4428 = vmatpush1.msra.mxu0 0.0
    %4429 = vmatprep.subr.mxu0 0.0
    %4430 = vmatpush1.msra.mxu0 0.0
    %4431 = vmatprep.subr.mxu0 0.0
    %4432 = vmatpush1.msra.mxu0 0.0
    %4433 = vmatprep.subr.mxu0 0.0
    %4434 = vmatpush1.msra.mxu0 0.0
    %4435 = vmatprep.subr.mxu0 0.0
    %4436 = vmatpush1.msra.mxu0 0.0
    %4437 = vmatprep.subr.mxu0 0.0
    %4438 = vmatpush1.msra.mxu0 0.0
    %4439 = vmatprep.mubr.f32.mxu0 0.0
    %4440 = vmatmul.mubr.f32.gmra.mrb[0].mxu0 %v4367
    %v4441 = vpop.f32.mrb[0].mxu0
    %v4442 = vadd.f32 %v4364, %v4441
    %v4443 = vpop.f32.mrb[0].mxu0
    %4444 = vmatprep.mubr.f32.mxu0 0.0
    %4445 = vmatmul.mubr.f32.gmra.mrb[0].mxu0 %v4370
    %v4446 = vpop.f32.mrb[0].mxu0
    %v4447 = vadd.f32 %v4364, %v4446
    %v4448 = vpop.f32.mrb[0].mxu0
    %4449 = vdwg.mxu0
    %v4450 = vld [vmem:[#allocation5 + $0x11] ss:$0 sm:$0xff]
    %v4451 = vld [vmem:[#allocation5 + $0x19] ss:$0 sm:$0xff]
    %v4452 = vld [vmem:[#allocation5 + $0x12] ss:$0 sm:$0xff]
    %v4453 = vld [vmem:[#allocation5 + $0x1a] ss:$0 sm:$0xff]
    %vm4454 = vcmask 121856
    %v4455 = vsel %vm4454, %v4442, 0.0
    %4456 = vadd.xlane.f32.xlu0 %v4455
    %v4457 = vpop.xlane.xlu0 %4456
    %v4458 = vsel %vm4454, %v4447, 0.0
    %4459 = vadd.xlane.f32.xlu0 %v4458
    %v4460 = vpop.xlane.xlu0 %4459
    %v4461 = vrcp.pop 15.0
    %v4462 = vmul.f32 %v4457, %v4461
    %v4463 = vmul.f32 %v4460, %v4461
    %v4464 = vsub.f32 %v4442, %v4462
    %v4465 = vsub.f32 %v4447, %v4463
    %v4466 = vmul.f32 %v4464, %v4464
    %v4467 = vmul.f32 %v4465, %v4465
    %v4468 = vsel %vm4454, %v4466, 0.0
    %4469 = vadd.xlane.f32.xlu0 %v4468
    %v4470 = vpop.xlane.xlu0 %4469
    %v4471 = vsel %vm4454, %v4467, 0.0
    %4472 = vadd.xlane.f32.xlu0 %v4471
    %v4473 = vpop.xlane.xlu0 %4472
    %v4474 = vmul.f32 %v4470, %v4461
    %v4475 = vmul.f32 %v4473, %v4461
    %v4476 = vadd.f32 %v4474, 1e-05
    %v4477 = vadd.f32 %v4475, 1e-05
    %v4478 = vrsqrt.pop %v4476
    %v4479 = vrsqrt.pop %v4477
    %v4480 = vmul.f32 %v4464, %v4478
    %v4481 = vmul.f32 %v4465, %v4479
    %4484 = vrot.lane.b32.xlu0 %v4450, 8
    %v4485 = vpop.permute.xlu0 %4484
    %4486 = vrot.lane.b32.xlu0 %v4451, 8
    %v4487 = vpop.permute.xlu0 %4486
    %v4488 = vsel %vm243, %v4485, %v4487
    %v4490 = vmul.f32 %v4480, %v4488
    %v4491 = vmul.f32 %v4481, %v4488
    %4494 = vrot.lane.b32.xlu0 %v4452, 8
    %v4495 = vpop.permute.xlu0 %4494
    %4496 = vrot.lane.b32.xlu0 %v4453, 8
    %v4497 = vpop.permute.xlu0 %4496
    %v4498 = vsel %vm243, %v4495, %v4497
    %v4500 = vadd.f32 %v4490, %v4498
    %v4501 = vadd.f32 %v4491, %v4498
    %v4502 = vmax.f32 %v4500, 0.0
    %v4503 = vmax.f32 %v4501, 0.0
    %v4504 = vld [vmem:[#allocation7 + $0x48] sm:$0x7f]
    %4506 = vrot.lane.b32.xlu0 %v4338, 121
    %v4507 = vpop.permute.xlu0 %4506
    %4508 = vrot.lane.b32.xlu0 %v4504, 121
    %v4509 = vpop.permute.xlu0 %4508
    %4511 = vrot.lane.b32.xlu0 %v4342, 121
    %v4512 = vpop.permute.xlu0 %4511
    %v4515 = vsel %vm4454, %v4502, 0
    %v4518 = vsel %vm4454, %v4503, 0
    %vm4520 = vcmask 1046528
    %v4521 = vsel %vm4520, %v4509, 0
    %4523 = vmatprep.subr.mxu0 0.0
    %4524 = vmatpush1.msra.mxu0 %v4507
    %4525 = vmatprep.subr.mxu0 0.0
    %4526 = vmatpush1.msra.mxu0 %v4521
    %4527 = vmatprep.subr.mxu0 0.0
    %4528 = vmatpush1.msra.mxu0 0.0
    %4529 = vmatprep.subr.mxu0 0.0
    %4530 = vmatpush1.msra.mxu0 0.0
    %4531 = vmatprep.subr.mxu0 0.0
    %4532 = vmatpush1.msra.mxu0 0.0
    %4533 = vmatprep.subr.mxu0 0.0
    %4534 = vmatpush1.msra.mxu0 0.0
    %4535 = vmatprep.subr.mxu0 0.0
    %4536 = vmatpush1.msra.mxu0 0.0
    %4537 = vmatprep.subr.mxu0 0.0
    %4538 = vmatpush1.msra.mxu0 0.0
    %4539 = vmatprep.subr.mxu0 0.0
    %4540 = vmatpush1.msra.mxu0 0.0
    %4541 = vmatprep.subr.mxu0 0.0
    %4542 = vmatpush1.msra.mxu0 0.0
    %4543 = vmatprep.subr.mxu0 0.0
    %4544 = vmatpush1.msra.mxu0 0.0
    %4545 = vmatprep.subr.mxu0 0.0
    %4546 = vmatpush1.msra.mxu0 0.0
    %4547 = vmatprep.subr.mxu0 0.0
    %4548 = vmatpush1.msra.mxu0 0.0
    %4549 = vmatprep.subr.mxu0 0.0
    %4550 = vmatpush1.msra.mxu0 0.0
    %4551 = vmatprep.subr.mxu0 0.0
    %4552 = vmatpush1.msra.mxu0 0.0
    %4553 = vmatprep.subr.mxu0 0.0
    %4554 = vmatpush1.msra.mxu0 0.0
    %4555 = vmatprep.subr.mxu0 0.0
    %4556 = vmatpush1.msra.mxu0 0.0
    %4557 = vmatprep.subr.mxu0 0.0
    %4558 = vmatpush1.msra.mxu0 0.0
    %4559 = vmatprep.subr.mxu0 0.0
    %4560 = vmatpush1.msra.mxu0 0.0
    %4561 = vmatprep.subr.mxu0 0.0
    %4562 = vmatpush1.msra.mxu0 0.0
    %4563 = vmatprep.subr.mxu0 0.0
    %4564 = vmatpush1.msra.mxu0 0.0
    %4565 = vmatprep.subr.mxu0 0.0
    %4566 = vmatpush1.msra.mxu0 0.0
    %4567 = vmatprep.subr.mxu0 0.0
    %4568 = vmatpush1.msra.mxu0 0.0
    %4569 = vmatprep.subr.mxu0 0.0
    %4570 = vmatpush1.msra.mxu0 0.0
    %4571 = vmatprep.subr.mxu0 0.0
    %4572 = vmatpush1.msra.mxu0 0.0
    %4573 = vmatprep.subr.mxu0 0.0
    %4574 = vmatpush1.msra.mxu0 0.0
    %4575 = vmatprep.subr.mxu0 0.0
    %4576 = vmatpush1.msra.mxu0 0.0
    %4577 = vmatprep.subr.mxu0 0.0
    %4578 = vmatpush1.msra.mxu0 0.0
    %4579 = vmatprep.subr.mxu0 0.0
    %4580 = vmatpush1.msra.mxu0 0.0
    %4581 = vmatprep.subr.mxu0 0.0
    %4582 = vmatpush1.msra.mxu0 0.0
    %4583 = vmatprep.subr.mxu0 0.0
    %4584 = vmatpush1.msra.mxu0 0.0
    %4585 = vmatprep.subr.mxu0 0.0
    %4586 = vmatpush1.msra.mxu0 0.0
    %4587 = vmatprep.mubr.f32.mxu0 0.0
    %4588 = vmatmul.mubr.f32.gmra.mrb[0].mxu0 %v4515
    %v4589 = vpop.f32.mrb[0].mxu0
    %v4590 = vadd.f32 %v4512, %v4589
    %v4591 = vpop.f32.mrb[0].mxu0
    %4592 = vmatprep.mubr.f32.mxu0 0.0
    %4593 = vmatmul.mubr.f32.gmra.mrb[0].mxu0 %v4518
    %v4594 = vpop.f32.mrb[0].mxu0
    %v4595 = vadd.f32 %v4512, %v4594
    %v4596 = vpop.f32.mrb[0].mxu0
    %4597 = vdwg.mxu0
    %v4598 = vsel %vm120, %v90, 0.0
    %v4599 = vrot.slane %v4598, 4
    %v4600 = vadd.f32 %v4598, %v4599
    %v4601 = vrot.slane %v4600, 2
    %v4602 = vadd.f32 %v4600, %v4601
    %v4603 = vrot.slane %v4602, 1
    %v4604 = vadd.f32 %v4602, %v4603
    %v4605 = vsel %vm120, %v91, 0.0
    %v4606 = vrot.slane %v4605, 4
    %v4607 = vadd.f32 %v4605, %v4606
    %v4608 = vrot.slane %v4607, 2
    %v4609 = vadd.f32 %v4607, %v4608
    %v4610 = vrot.slane %v4609, 1
    %v4611 = vadd.f32 %v4609, %v4610
    %v4612 = vmul.f32 %v4604, %v4175
    %v4613 = vmul.f32 %v4611, %v4175
    %vm4616 = vcmask 1041409
    %v4617 = vsel %vm4616, %v4613, %v4612
    %4619 = vrot.lane.b32.xlu0 %v4617, 64
    %v4620 = vpop.permute.xlu0 %4619
    %v4622 = vsel %vm120, %v4617, %v4620
    %v4623 = vld [vmem:[#allocation8] sm:$0xff]
    %v4624 = vld [vmem:[#allocation8 + $0x8] sm:$0xff]
    %v4625 = vld [vmem:[#allocation8 + $0x10] sm:$0xff]
    %v4626 = vld [vmem:[#allocation8 + $0x18] sm:$0xff]
    %v4627 = vld [vmem:[#allocation8 + $0x20] sm:$0xff]
    %v4628 = vld [vmem:[#allocation8 + $0x28] sm:$0xff]
    %v4629 = vld [vmem:[#allocation8 + $0x30] sm:$0xff]
    %v4630 = vld [vmem:[#allocation8 + $0x38] sm:$0xff]
    %v4631 = vld [vmem:[#allocation8 + $0x40] sm:$0xff]
    %v4632 = vld [vmem:[#allocation8 + $0x48] sm:$0xff]
    %v4633 = vld [vmem:[#allocation8 + $0x50] sm:$0xff]
    %v4634 = vld [vmem:[#allocation8 + $0x58] sm:$0xff]
    %v4635 = vld [vmem:[#allocation8 + $0x60] sm:$0xff]
    %v4636 = vld [vmem:[#allocation8 + $0x68] sm:$0xff]
    %v4637 = vld [vmem:[#allocation8 + $0x70] sm:$0xff]
    %v4638 = vld [vmem:[#allocation8 + $0x78] sm:$0xff]
    %v4639 = vld [vmem:[#allocation8 + $0x80] sm:$0xff]
    %v4640 = vld [vmem:[#allocation8 + $0x88] sm:$0xff]
    %v4641 = vld [vmem:[#allocation8 + $0x90] sm:$0xff]
    %v4642 = vld [vmem:[#allocation8 + $0x98] sm:$0xff]
    %v4643 = vld [vmem:[#allocation8 + $0xa0] sm:$0xff]
    %v4644 = vld [vmem:[#allocation8 + $0xa8] sm:$0xff]
    %v4645 = vld [vmem:[#allocation8 + $0xb0] sm:$0xff]
    %v4646 = vld [vmem:[#allocation8 + $0xb8] sm:$0xff]
    %v4647 = vld [vmem:[#allocation8 + $0xc0] sm:$0xff]
    %v4648 = vld [vmem:[#allocation8 + $0xc8] sm:$0xff]
    %v4649 = vld [vmem:[#allocation8 + $0xd0] sm:$0xff]
    %v4650 = vld [vmem:[#allocation8 + $0xd8] sm:$0xff]
    %v4651 = vld [vmem:[#allocation8 + $0xe0] sm:$0xff]
    %v4652 = vld [vmem:[#allocation8 + $0xe8] sm:$0xff]
    %v4653 = vld [vmem:[#allocation8 + $0xf0] sm:$0xff]
    %v4654 = vld [vmem:[#allocation8 + $0xf8] sm:$0xff]
    %s4655 = scalar_lea.vmem [#allocation5], 48
    %v4656 = vld [vmem:[%s4655] ss:$8 sm:$0x7]
    %v4658 = vlaneseq
    %v4659 = vshrl.u32 %v4658, 7
    %v4660 = vsub.s32 0, %v4659
    %v4661 = vrot.slane %v4656, %v4660
    %v4662 = vlaneseq
    %v4663 = vshrl.u32 %v4662, 7
    %v4664 = vsub.s32 1, %v4663
    %v4665 = vrot.slane %v4656, %v4664
    %v4666 = vlaneseq
    %v4667 = vshrl.u32 %v4666, 7
    %v4668 = vsub.s32 2, %v4667
    %v4669 = vrot.slane %v4656, %v4668
    %4670 = vrot.lane.b32.xlu0 %v4661, 120
    %v4671 = vpop.permute.xlu0 %4670
    %4672 = vrot.lane.b32.xlu0 %v4665, 120
    %v4673 = vpop.permute.xlu0 %4672
    %4674 = vrot.lane.b32.xlu0 %v4669, 120
    %v4675 = vpop.permute.xlu0 %4674
    %vm4676 = vcmask 982016
    %v4677 = vsel %vm4676, %v4671, %v4673
    %v4678 = vsel %vm4676, %v4673, %v4675
    %4681 = vmatprep.subr.mxu0 %v4624
    %4682 = vmatpush1.msra.mxu0 %v4623
    %4683 = vmatprep.subr.mxu0 %v4626
    %4684 = vmatpush1.msra.mxu0 %v4625
    %4685 = vmatprep.subr.mxu0 %v4628
    %4686 = vmatpush1.msra.mxu0 %v4627
    %4687 = vmatprep.subr.mxu0 %v4630
    %4688 = vmatpush1.msra.mxu0 %v4629
    %4689 = vmatprep.subr.mxu0 %v4632
    %4690 = vmatpush1.msra.mxu0 %v4631
    %4691 = vmatprep.subr.mxu0 %v4634
    %4692 = vmatpush1.msra.mxu0 %v4633
    %4693 = vmatprep.subr.mxu0 %v4636
    %4694 = vmatpush1.msra.mxu0 %v4635
    %4695 = vmatprep.subr.mxu0 %v4638
    %4696 = vmatpush1.msra.mxu0 %v4637
    %4697 = vmatprep.subr.mxu0 %v4640
    %4698 = vmatpush1.msra.mxu0 %v4639
    %4699 = vmatprep.subr.mxu0 %v4642
    %4700 = vmatpush1.msra.mxu0 %v4641
    %4701 = vmatprep.subr.mxu0 %v4644
    %4702 = vmatpush1.msra.mxu0 %v4643
    %4703 = vmatprep.subr.mxu0 %v4646
    %4704 = vmatpush1.msra.mxu0 %v4645
    %4705 = vmatprep.subr.mxu0 %v4648
    %4706 = vmatpush1.msra.mxu0 %v4647
    %4707 = vmatprep.subr.mxu0 %v4650
    %4708 = vmatpush1.msra.mxu0 %v4649
    %4709 = vmatprep.subr.mxu0 %v4652
    %4710 = vmatpush1.msra.mxu0 %v4651
    %4711 = vmatprep.subr.mxu0 %v4654
    %4712 = vmatpush1.msra.mxu0 %v4653
    %4713 = vmatprep.subr.mxu0 0.0
    %4714 = vmatpush1.msra.mxu0 0.0
    %4715 = vmatprep.subr.mxu0 0.0
    %4716 = vmatpush1.msra.mxu0 0.0
    %4717 = vmatprep.subr.mxu0 0.0
    %4718 = vmatpush1.msra.mxu0 0.0
    %4719 = vmatprep.subr.mxu0 0.0
    %4720 = vmatpush1.msra.mxu0 0.0
    %4721 = vmatprep.subr.mxu0 0.0
    %4722 = vmatpush1.msra.mxu0 0.0
    %4723 = vmatprep.subr.mxu0 0.0
    %4724 = vmatpush1.msra.mxu0 0.0
    %4725 = vmatprep.subr.mxu0 0.0
    %4726 = vmatpush1.msra.mxu0 0.0
    %4727 = vmatprep.subr.mxu0 0.0
    %4728 = vmatpush1.msra.mxu0 0.0
    %4729 = vmatprep.subr.mxu0 0.0
    %4730 = vmatpush1.msra.mxu0 0.0
    %4731 = vmatprep.subr.mxu0 0.0
    %4732 = vmatpush1.msra.mxu0 0.0
    %4733 = vmatprep.subr.mxu0 0.0
    %4734 = vmatpush1.msra.mxu0 0.0
    %4735 = vmatprep.subr.mxu0 0.0
    %4736 = vmatpush1.msra.mxu0 0.0
    %4737 = vmatprep.subr.mxu0 0.0
    %4738 = vmatpush1.msra.mxu0 0.0
    %4739 = vmatprep.subr.mxu0 0.0
    %4740 = vmatpush1.msra.mxu0 0.0
    %4741 = vmatprep.subr.mxu0 0.0
    %4742 = vmatpush1.msra.mxu0 0.0
    %4743 = vmatprep.subr.mxu0 0.0
    %4744 = vmatpush1.msra.mxu0 0.0
    %4745 = vmatprep.mubr.f32.mxu0 0.0
    %4746 = vmatmul.mubr.f32.gmra.mrb[0].mxu0 %v4622
    %v4747 = vpop.f32.mrb[0].mxu0
    %v4748 = vadd.f32 %v4677, %v4747
    %v4749 = vpop.f32.mrb[0].mxu0
    %v4750 = vadd.f32 %v4678, %v4749
    %4751 = vdwg.mxu0
    %v4752 = vmax.f32 %v4748, 0.0
    %v4753 = vmax.f32 %v4750, 0.0
    %v4754 = vld [vmem:[#allocation5 + $0x40] ss:$0 sm:$0xff]
    %4787 = vrot.lane.b32.xlu0 %v3290, 64
    %v4788 = vpop.permute.xlu0 %4787
    %4789 = vrot.lane.b32.xlu0 %v3291, 64
    %v4790 = vpop.permute.xlu0 %4789
    %4791 = vrot.lane.b32.xlu0 %v3292, 64
    %v4792 = vpop.permute.xlu0 %4791
    %4793 = vrot.lane.b32.xlu0 %v3293, 64
    %v4794 = vpop.permute.xlu0 %4793
    %4795 = vrot.lane.b32.xlu0 %v3294, 64
    %v4796 = vpop.permute.xlu0 %4795
    %4797 = vrot.lane.b32.xlu0 %v3295, 64
    %v4798 = vpop.permute.xlu0 %4797
    %4799 = vrot.lane.b32.xlu0 %v3296, 64
    %v4800 = vpop.permute.xlu0 %4799
    %4801 = vrot.lane.b32.xlu0 %v3297, 64
    %v4802 = vpop.permute.xlu0 %4801
    %4803 = vrot.lane.b32.xlu0 %v3298, 64
    %v4804 = vpop.permute.xlu0 %4803
    %4805 = vrot.lane.b32.xlu0 %v3299, 64
    %v4806 = vpop.permute.xlu0 %4805
    %4807 = vrot.lane.b32.xlu0 %v3300, 64
    %v4808 = vpop.permute.xlu0 %4807
    %4809 = vrot.lane.b32.xlu0 %v3301, 64
    %v4810 = vpop.permute.xlu0 %4809
    %4811 = vrot.lane.b32.xlu0 %v3302, 64
    %v4812 = vpop.permute.xlu0 %4811
    %4813 = vrot.lane.b32.xlu0 %v3303, 64
    %v4814 = vpop.permute.xlu0 %4813
    %4815 = vrot.lane.b32.xlu0 %v3304, 64
    %v4816 = vpop.permute.xlu0 %4815
    %4817 = vrot.lane.b32.xlu0 %v3305, 64
    %v4818 = vpop.permute.xlu0 %4817
    %4819 = vrot.lane.b32.xlu0 %v3306, 64
    %v4820 = vpop.permute.xlu0 %4819
    %4821 = vrot.lane.b32.xlu0 %v3307, 64
    %v4822 = vpop.permute.xlu0 %4821
    %4823 = vrot.lane.b32.xlu0 %v3308, 64
    %v4824 = vpop.permute.xlu0 %4823
    %4825 = vrot.lane.b32.xlu0 %v3309, 64
    %v4826 = vpop.permute.xlu0 %4825
    %4827 = vrot.lane.b32.xlu0 %v3310, 64
    %v4828 = vpop.permute.xlu0 %4827
    %4829 = vrot.lane.b32.xlu0 %v3311, 64
    %v4830 = vpop.permute.xlu0 %4829
    %4831 = vrot.lane.b32.xlu0 %v3312, 64
    %v4832 = vpop.permute.xlu0 %4831
    %4833 = vrot.lane.b32.xlu0 %v3313, 64
    %v4834 = vpop.permute.xlu0 %4833
    %4835 = vrot.lane.b32.xlu0 %v3314, 64
    %v4836 = vpop.permute.xlu0 %4835
    %4837 = vrot.lane.b32.xlu0 %v3315, 64
    %v4838 = vpop.permute.xlu0 %4837
    %4839 = vrot.lane.b32.xlu0 %v3316, 64
    %v4840 = vpop.permute.xlu0 %4839
    %4841 = vrot.lane.b32.xlu0 %v3317, 64
    %v4842 = vpop.permute.xlu0 %4841
    %4843 = vrot.lane.b32.xlu0 %v3318, 64
    %v4844 = vpop.permute.xlu0 %4843
    %4845 = vrot.lane.b32.xlu0 %v3319, 64
    %v4846 = vpop.permute.xlu0 %4845
    %4847 = vrot.lane.b32.xlu0 %v3320, 64
    %v4848 = vpop.permute.xlu0 %4847
    %4849 = vrot.lane.b32.xlu0 %v3321, 64
    %v4850 = vpop.permute.xlu0 %4849
    %4884 = vrot.lane.b32.xlu0 %v4754, 120
    %v4885 = vpop.permute.xlu0 %4884
    %4887 = vmatprep.subr.mxu0 0.0
    %4888 = vmatpush1.msra.mxu0 %v4788
    %4889 = vmatprep.subr.mxu0 0.0
    %4890 = vmatpush1.msra.mxu0 %v4790
    %4891 = vmatprep.subr.mxu0 0.0
    %4892 = vmatpush1.msra.mxu0 %v4792
    %4893 = vmatprep.subr.mxu0 0.0
    %4894 = vmatpush1.msra.mxu0 %v4794
    %4895 = vmatprep.subr.mxu0 0.0
    %4896 = vmatpush1.msra.mxu0 %v4796
    %4897 = vmatprep.subr.mxu0 0.0
    %4898 = vmatpush1.msra.mxu0 %v4798
    %4899 = vmatprep.subr.mxu0 0.0
    %4900 = vmatpush1.msra.mxu0 %v4800
    %4901 = vmatprep.subr.mxu0 0.0
    %4902 = vmatpush1.msra.mxu0 %v4802
    %4903 = vmatprep.subr.mxu0 0.0
    %4904 = vmatpush1.msra.mxu0 %v4804
    %4905 = vmatprep.subr.mxu0 0.0
    %4906 = vmatpush1.msra.mxu0 %v4806
    %4907 = vmatprep.subr.mxu0 0.0
    %4908 = vmatpush1.msra.mxu0 %v4808
    %4909 = vmatprep.subr.mxu0 0.0
    %4910 = vmatpush1.msra.mxu0 %v4810
    %4911 = vmatprep.subr.mxu0 0.0
    %4912 = vmatpush1.msra.mxu0 %v4812
    %4913 = vmatprep.subr.mxu0 0.0
    %4914 = vmatpush1.msra.mxu0 %v4814
    %4915 = vmatprep.subr.mxu0 0.0
    %4916 = vmatpush1.msra.mxu0 %v4816
    %4917 = vmatprep.subr.mxu0 0.0
    %4918 = vmatpush1.msra.mxu0 %v4818
    %4919 = vmatprep.subr.mxu0 0.0
    %4920 = vmatpush1.msra.mxu0 %v4820
    %4921 = vmatprep.subr.mxu0 0.0
    %4922 = vmatpush1.msra.mxu0 %v4822
    %4923 = vmatprep.subr.mxu0 0.0
    %4924 = vmatpush1.msra.mxu0 %v4824
    %4925 = vmatprep.subr.mxu0 0.0
    %4926 = vmatpush1.msra.mxu0 %v4826
    %4927 = vmatprep.subr.mxu0 0.0
    %4928 = vmatpush1.msra.mxu0 %v4828
    %4929 = vmatprep.subr.mxu0 0.0
    %4930 = vmatpush1.msra.mxu0 %v4830
    %4931 = vmatprep.subr.mxu0 0.0
    %4932 = vmatpush1.msra.mxu0 %v4832
    %4933 = vmatprep.subr.mxu0 0.0
    %4934 = vmatpush1.msra.mxu0 %v4834
    %4935 = vmatprep.subr.mxu0 0.0
    %4936 = vmatpush1.msra.mxu0 %v4836
    %4937 = vmatprep.subr.mxu0 0.0
    %4938 = vmatpush1.msra.mxu0 %v4838
    %4939 = vmatprep.subr.mxu0 0.0
    %4940 = vmatpush1.msra.mxu0 %v4840
    %4941 = vmatprep.subr.mxu0 0.0
    %4942 = vmatpush1.msra.mxu0 %v4842
    %4943 = vmatprep.subr.mxu0 0.0
    %4944 = vmatpush1.msra.mxu0 %v4844
    %4945 = vmatprep.subr.mxu0 0.0
    %4946 = vmatpush1.msra.mxu0 %v4846
    %4947 = vmatprep.subr.mxu0 0.0
    %4948 = vmatpush1.msra.mxu0 %v4848
    %4949 = vmatprep.subr.mxu0 0.0
    %4950 = vmatpush1.msra.mxu0 %v4850
    %4951 = vmatprep.mubr.f32.mxu0 %v4753
    %4952 = vmatmul.mubr.f32.gmra.mrb[0].mxu0 %v4752
    %v4953 = vpop.f32.mrb[0].mxu0
    %v4954 = vadd.f32 %v4885, %v4953
    %v4955 = vpop.f32.mrb[0].mxu0
    %4956 = vdwg.mxu0
    %vm4957 = vcmask 41984
    %v4958 = vsel %vm4957, %v4954, -inf
    %4959 = vmax.xlane.f32.xlu0 %v4958
    %v4960 = vpop.xlane.xlu0 %4959
    %v4961 = vsub.f32 %v4954, %v4960
    %v4962 = vmul.f32 %v4961, 1.442695
    %v4963 = vpow.pop %v4962
    %v4964 = vsel %vm4957, %v4963, 0.0
    %4965 = vadd.xlane.f32.xlu0 %v4964
    %v4966 = vpop.xlane.xlu0 %4965
    %v4967 = vrcp.pop %v4966
    %v4968 = vmul.f32 %v4963, %v4967
    %v4969 = vlaneseq
    %v4970 = vshrl.u32 %v4969, 7
    %v4971 = vsub.s32 0, %v4970
    %v4972 = vrot.slane %v4968, %v4971
    %v4973 = vlaneseq
    %v4974 = vshrl.u32 %v4973, 7
    %v4975 = vsub.s32 1, %v4974
    %v4976 = vrot.slane %v4968, %v4975
    %4979 = vrot.lane.b32.xlu0 %v4590, 6
    %v4980 = vpop.permute.xlu0 %4979
    %4981 = vrot.lane.b32.xlu0 %v4595, 6
    %v4982 = vpop.permute.xlu0 %4981
    %4987 = vrot.lane.b32.xlu0 %v3510, 70
    %v4988 = vpop.permute.xlu0 %4987
    %4989 = vrot.lane.b32.xlu0 %v3512, 70
    %v4990 = vpop.permute.xlu0 %4989
    %4995 = vrot.lane.b32.xlu0 %v4972, 71
    %v4996 = vpop.permute.xlu0 %4995
    %4997 = vrot.lane.b32.xlu0 %v4976, 71
    %v4998 = vpop.permute.xlu0 %4997
    %v5001 = vsel %vm4039, %v4077, %v4980
    %v5002 = vsel %vm4039, %v4078, %v4982
    %vm5003 = vcmask 572416
    %v5004 = vsel %vm5003, %v5001, %v4988
    %v5005 = vsel %vm5003, %v5002, %v4990
    %vm5006 = vcmask 580608
    %v5007 = vsel %vm5006, %v5004, %v4996
    %v5008 = vsel %vm5006, %v5005, %v4998
    %vm5009 = vcmask 629760
    %v5010 = vsel %vm5009, %v5007, 0.0
    %v5011 = vsel %vm5009, %v5008, 0.0
    %5012 = vst [vmem:[#allocation11] sm:$0xff] %v5010
    %5013 = vst [vmem:[#allocation11 + $0x8] sm:$0xff] %v5011
    // Predicated region
    $region46: #{tpu_custom_call.1} parent=1 // pred_check
      _
    $region47: #{tpu_custom_call.1} parent=1 // pred_check_branch
      %5015 = sbr.rel (0) target = $region49
    $region48: #{tpu_custom_call.1} parent=1 // pred_region
      %s5017 = ssub.s32 256, 256
      %5018 = vsyncadd [#allocation4], %s5017
      %s5019 = sshll.u32 [#allocation11], 4
      %s5020 = int_to_ptr.vmem [resolvable:$true] %s5019
      %5025 = dma.vmem_to_hbm [thread:$0]  %s5020, 256, %s6, [#allocation4], 128, 128, 8
    $region49: #{tpu_custom_call.1} parent=1 // pred_fallthru
      _
    // Predicated region
    $region50: #{tpu_custom_call.1} parent=1 // pred_check
      _
    $region51: #{tpu_custom_call.1} parent=1 // pred_check_branch
      %5027 = sbr.rel (0) target = $region53
    $region52: #{tpu_custom_call.1} parent=1 // pred_region
      %5028 = dma.done [#allocation4], 256
    $region53: #{tpu_custom_call.1} parent=1 // pred_fallthru
      _
    %5029 = vsyncpa [#allocation3], 1
    %5030 = vsyncpa [#allocation6], 1
    %5031 = vsyncpa [#allocation9], 1
    %5032 = vsyncpa [#allocation4], 1

</llo_original>
